<compile_context>
chip_gen: v5e
topology: v5e:2x2
jax: 0.10.0
libtpu: 0.0.40
codegen_flags: <defaults>
</compile_context>

<pallas_src>
import jax
import jax.numpy as jnp
import numpy as np
from jax.experimental import pallas as pl
from jax.experimental.pallas import tpu as pltpu


# ----------------------------------------------------------------------------
# Fused kernel
# ----------------------------------------------------------------------------
def _make_fused_kernel(B_blk, M1p, W1n, KH2, KW2, KH3, KW3, C2, C3, pad2):
    phase_span = B_blk * M1p            # rows per parity phase inside y1
    M3 = B_blk * M1p                    # layer-3 rows (valid + junk columns)
    M2 = M3 + pad2                      # layer-2 rows (pad rows feed layer 3)

    def kernel(p_ref, w1_ref, b1_ref, w2_ref, b2_ref, w3_ref, b3_ref, o_ref):
        # ---------------- layer 1 (k=8, s=4): ONE MXU matmul ----------------
        # p_ref rows are laid out (phase, image, position), so a single dot
        # covers all 4 stride-2 parity phases of all B_blk images.
        y1 = jnp.dot(p_ref[...], w1_ref[...],
                     preferred_element_type=jnp.float32)
        y1 = jnp.maximum(y1 + b1_ref[...], 0.0).astype(jnp.bfloat16)

        # ------------- layer 2 (k=4, s=2): 16 large-M tap matmuls -----------
        # Tap (ki, kj) reads parity phase (ki%2, kj%2) at a constant offset,
        # so its lhs is one contiguous slice of y1 spanning the whole block.
        acc2 = jnp.zeros((M2, C2), jnp.float32)
        for ki in range(KH2):
            for kj in range(KW2):
                ph = (ki % 2) * 2 + (kj % 2)
                start = ph * phase_span + (ki // 2) * W1n + (kj // 2)
                lhs = y1[start:start + M2, :]
                acc2 = acc2 + jnp.dot(lhs, w2_ref[ki * KW2 + kj],
                                      preferred_element_type=jnp.float32)
        y2 = jnp.maximum(acc2 + b2_ref[...], 0.0).astype(jnp.bfloat16)

        # ------------- layer 3 (k=3, s=1): 9 large-M tap matmuls ------------
        acc3 = jnp.zeros((M3, C3), jnp.float32)
        for ki in range(KH3):
            for kj in range(KW3):
                start = ki * W1n + kj
                lhs = y2[start:start + M3, :]
                acc3 = acc3 + jnp.dot(lhs, w3_ref[ki * KW3 + kj],
                                      preferred_element_type=jnp.float32)

        # Single slab store; junk rows/columns are cropped by the wrapper.
        o_ref[...] = jnp.maximum(acc3 + b3_ref[...], 0.0)

    return kernel


# ----------------------------------------------------------------------------
# Host-side glue (pure data movement, no FLOPs)
# ----------------------------------------------------------------------------
def _layer1_phase_patches(x, KH, KW, stride, H1n, W1n):
    """x: (N,H,W,Cin) f32 -> (N, 4, H1n*W1n, KH*KW*Cin) bf16.

    Phase index p*2+q; row m*W1n+n holds the im2col patch of conv1 output
    position (2m+p, 2n+q) -- exactly the conv1 outputs conv2 consumes.
    """
    N, H, W, Cin = x.shape
    sp = 2 * stride
    phases = []
    for p in range(2):
        for q in range(2):
            rows = []
            for ki in range(KH):
                cols = []
                for kj in range(KW):
                    r0 = p * stride + ki
                    c0 = q * stride + kj
                    cols.append(jax.lax.slice(
                        x, (0, r0, c0, 0),
                        (N, r0 + (H1n - 1) * sp + 1,
                         c0 + (W1n - 1) * sp + 1, Cin),
                        (1, sp, sp, 1)))                    # (N,H1n,W1n,Cin)
                rows.append(jnp.stack(cols, axis=3))        # (N,H1n,W1n,KW,Cin)
            pat = jnp.stack(rows, axis=3)                   # (N,H1n,W1n,KH,KW,Cin)
            phases.append(pat.reshape(N, H1n * W1n, KH * KW * Cin))
    return jnp.stack(phases, axis=1).astype(jnp.bfloat16)   # (N,4,M1p,K1)


def conv_front_end(x_nchw, params, batch_block=None):
    """Forward pass equivalent to ConvFrontEnd.forward (NCHW in, NCHW out)."""
    x = jnp.transpose(x_nchw, (0, 2, 3, 1)).astype(jnp.float32)   # NHWC
    N, H, W, Cin = x.shape

    KH1, KW1, _, C1 = params["w1"].shape      # (8, 8, Cin, 32)
    KH2, KW2, _, C2 = params["w2"].shape      # (4, 4, 32, 64)
    KH3, KW3, _, C3 = params["w3"].shape      # (3, 3, 64, 64)
    s1, s2 = 4, 2                             # strides of conv1 / conv2

    Ho1 = (H - KH1) // s1 + 1
    Wo1 = (W - KW1) // s1 + 1
    Ho2 = (Ho1 - KH2) // s2 + 1
    Wo2 = (Wo1 - KW2) // s2 + 1
    Ho3 = Ho2 - KH3 + 1
    Wo3 = Wo2 - KW3 + 1
    assert Ho3 >= 1 and Wo3 >= 1, "input spatial size too small for the stack"
    assert s2 == 2, "parity-phase decomposition assumes conv2 stride == 2"

    # Per-parity-phase extent of the conv1 outputs that conv2 actually reads.
    H1n = Ho2 + (KH2 - 1) // 2
    W1n = Wo2 + (KW2 - 1) // 2
    M1p = H1n * W1n
    K1 = KH1 * KW1 * Cin
    # Guard: host-side phase gather must stay inside the image.
    assert (s1 + KH1 - 1) + (H1n - 1) * 2 * s1 <= H - 1, "phase gather OOB (rows)"
    assert (s1 + KW1 - 1) + (W1n - 1) * 2 * s1 <= W - 1, "phase gather OOB (cols)"

    # ---- choose the batch block (per-step images) from a VMEM budget -------
    if batch_block is None:
        per_img = 2 * (4 * M1p * K1 * 2 + M1p * C3 * 4)   # dbl-buffered in/out
        budget = 8 * 1024 * 1024                          # safe on all gens
        batch_block = max(1, min(budget // per_img, 32))
        if N >= 2:
            batch_block = min(batch_block, (N + 1) // 2)  # >= 2 grid steps
        batch_block = min(batch_block, N)
    B_blk = int(batch_block)
    G = -(-N // B_blk)
    N_pad = G * B_blk
    if N_pad != N:
        x = jnp.concatenate(
            [x, jnp.zeros((N_pad - N, H, W, Cin), x.dtype)], axis=0)

    # ---- padding so every in-kernel tap slice stays in bounds --------------
    off2_max = ((KH2 - 1) // 2) * W1n + (KW2 - 1) // 2
    pad2 = (KH3 - 1) * W1n + (KW3 - 1)       # extra layer-2 rows for layer 3
    pad1 = off2_max + pad2                   # extra layer-1 rows for layer 2
    Mcore = 4 * B_blk * M1p
    Mtot1 = ((Mcore + pad1 + 7) // 8) * 8
    M3 = B_blk * M1p

    # ---- host-side im2col of layer 1, laid out phase-major per grid block --
    phases = _layer1_phase_patches(x, KH1, KW1, s1, H1n, W1n)  # (N_pad,4,M1p,K1)
    patches = phases.reshape(G, B_blk, 4, M1p, K1)
    patches = jnp.transpose(patches, (0, 2, 1, 3, 4))          # (G,4,B,M1p,K1)
    patches = patches.reshape(G, Mcore, K1)
    patches = jnp.pad(patches, ((0, 0), (0, Mtot1 - Mcore), (0, 0)))

    w1 = params["w1"].reshape(K1, C1).astype(jnp.bfloat16)
    w2 = params["w2"].reshape(KH2 * KW2, C1, C2).astype(jnp.bfloat16)
    w3 = params["w3"].reshape(KH3 * KW3, C2, C3).astype(jnp.bfloat16)
    b1 = params["b1"].reshape(1, C1).astype(jnp.float32)
    b2 = params["b2"].reshape(1, C2).astype(jnp.float32)
    b3 = params["b3"].reshape(1, C3).astype(jnp.float32)

    kernel = _make_fused_kernel(B_blk, M1p, W1n, KH2, KW2, KH3, KW3,
                                C2, C3, pad2)

    flops = 2 * G * (Mtot1 * K1 * C1
                     + KH2 * KW2 * (M3 + pad2) * C1 * C2
                     + KH3 * KW3 * M3 * C2 * C3)
    bytes_accessed = (G * Mtot1 * K1 * 2                        # patches (bf16)
                      + (K1 * C1 + KH2 * KW2 * C1 * C2
                         + KH3 * KW3 * C2 * C3) * 2             # weights
                      + (C1 + C2 + C3) * 4                      # biases
                      + G * M3 * C3 * 4)                        # output

    out = pl.pallas_call(
        kernel,
        out_shape=jax.ShapeDtypeStruct((G, M3, C3), jnp.float32),
        grid=(G,),
        in_specs=[
            pl.BlockSpec((None, Mtot1, K1), lambda g: (g, 0, 0)),       # patches
            pl.BlockSpec((K1, C1), lambda g: (0, 0)),                   # w1
            pl.BlockSpec((1, C1), lambda g: (0, 0)),                    # b1
            pl.BlockSpec((KH2 * KW2, C1, C2), lambda g: (0, 0, 0)),     # w2
            pl.BlockSpec((1, C2), lambda g: (0, 0)),                    # b2
            pl.BlockSpec((KH3 * KW3, C2, C3), lambda g: (0, 0, 0)),     # w3
            pl.BlockSpec((1, C3), lambda g: (0, 0)),                    # b3
        ],
        out_specs=pl.BlockSpec((None, M3, C3), lambda g: (g, 0, 0)),
        compiler_params=pltpu.CompilerParams(
            dimension_semantics=("parallel",),
            vmem_limit_bytes=64 * 1024 * 1024),
        cost_estimate=pl.CostEstimate(flops=int(flops), transcendentals=0,
                                      bytes_accessed=int(bytes_accessed)),
    )(patches, w1, b1, w2, b2, w3, b3)

    # Row t of a block maps to image b = t // M1p and position
    # (oh, ow) = divmod(t % M1p, W1n); valid iff oh < Ho3 and ow < Wo3.
    out = out.reshape(N_pad, H1n, W1n, C3)[:N, :Ho3, :Wo3, :]
    return jnp.transpose(out, (0, 3, 1, 2))                 # NHWC -> NCHW


# ----------------------------------------------------------------------------
# Params / reference
# ----------------------------------------------------------------------------
def init_params(key, in_channels):
    """Deterministic init matching PyTorch Conv2d shapes (stored as HWIO)."""
    def conv_params(k, cin, cout, ksize):
        kw_, kb_ = jax.random.split(k)
        fan_in = cin * ksize * ksize
        bound = 1.0 / np.sqrt(fan_in)
        w = jax.random.uniform(kw_, (ksize, ksize, cin, cout),
                               jnp.float32, -bound, bound)   # HWIO
        b = jax.random.uniform(kb_, (cout,), jnp.float32, -bound, bound)
        return w, b

    k1, k2, k3 = jax.random.split(key, 3)
    w1, b1 = conv_params(k1, in_channels, 32, 8)
    w2, b2 = conv_params(k2, 32, 64, 4)
    w3, b3 = conv_params(k3, 64, 64, 3)
    return {"w1": w1, "b1": b1, "w2": w2, "b2": b2, "w3": w3, "b3": b3}


def _reference_forward(x_nchw, params):
    """Pure-JAX reference (lax.conv_general_dilated) for correctness check."""
    def conv_relu(x, w_hwio, b, stride):
        y = jax.lax.conv_general_dilated(
            x, w_hwio, (stride, stride), "VALID",
            dimension_numbers=("NCHW", "HWIO", "NCHW"))
        return jnp.maximum(y + b.reshape(1, -1, 1, 1), 0.0)

    x = conv_relu(x_nchw, params["w1"], params["b1"], 4)
    x = conv_relu(x, params["w2"], params["b2"], 2)
    x = conv_relu(x, params["w3"], params["b3"], 1)
    return x


if __name__ == "__main__":
    key = jax.random.PRNGKey(0)
    k_x, k_p = jax.random.split(key)

    # 52x52 -> conv1 12x12 -> conv2 5x5 -> conv3 3x3; batch 8 so the batch-
    # blocked grid has 2 "parallel" steps of 4 images each.
    batch, channels, spatial = 8, 4, 52
    x = jax.random.normal(k_x, (batch, channels, spatial, spatial), jnp.float32)
    params = init_params(k_p, channels)

    fwd = jax.jit(conv_front_end)
    out = jax.block_until_ready(fwd(x, params))

    assert out.shape == (batch, 64, 3, 3), out.shape
    ref = jax.block_until_ready(_reference_forward(x, params))
    max_diff = float(jnp.max(jnp.abs(out - ref)))
    # MXU operands are bf16 (accumulation in f32), so allow a small deviation
    # from the f32 reference.
    assert max_diff < 5e-2, f"mismatch vs reference: {max_diff}"

    print("KERNEL_OK")
</pallas_src>

<mosaic_0001>
module attributes {stable_mosaic.version = 11 : i64} {
  func.func @kernel(%arg0: i32, %arg1: memref<1x600x256xbf16, #tpu.memory_space<vmem>>, %arg2: memref<256x32xbf16, #tpu.memory_space<vmem>>, %arg3: memref<1x32xf32, #tpu.memory_space<vmem>>, %arg4: memref<16x32x64xbf16, #tpu.memory_space<vmem>>, %arg5: memref<1x64xf32, #tpu.memory_space<vmem>>, %arg6: memref<9x64x64xbf16, #tpu.memory_space<vmem>>, %arg7: memref<1x64xf32, #tpu.memory_space<vmem>>, %arg8: memref<1x144x64xf32, #tpu.memory_space<vmem>>) attributes {dimension_semantics = [#tpu.dimension_semantics<parallel>], iteration_bounds = array<i64: 2>, scalar_prefetch = 0 : i64, scratch_operands = 0 : i64, tpu.core_type = #tpu.core_type<tc>, window_params = [{transform_indices = @transform_0, window_bounds = array<i64: 1, 600, 256>}, {pipeline_mode = #tpu.pipeline_mode<synchronous>, transform_indices = @transform_1, window_bounds = array<i64: 256, 32>}, {pipeline_mode = #tpu.pipeline_mode<synchronous>, transform_indices = @transform_2, window_bounds = array<i64: 1, 32>}, {pipeline_mode = #tpu.pipeline_mode<synchronous>, transform_indices = @transform_3, window_bounds = array<i64: 16, 32, 64>}, {pipeline_mode = #tpu.pipeline_mode<synchronous>, transform_indices = @transform_4, window_bounds = array<i64: 1, 64>}, {pipeline_mode = #tpu.pipeline_mode<synchronous>, transform_indices = @transform_5, window_bounds = array<i64: 9, 64, 64>}, {pipeline_mode = #tpu.pipeline_mode<synchronous>, transform_indices = @transform_6, window_bounds = array<i64: 1, 64>}, {transform_indices = @transform_7, window_bounds = array<i64: 1, 144, 64>}]} {
    %c0 = arith.constant 0 : index
    %c0_0 = arith.constant 0 : index
    %c0_1 = arith.constant 0 : index
    %0 = vector.load %arg1[%c0, %c0_0, %c0_1] : memref<1x600x256xbf16, #tpu.memory_space<vmem>>, vector<1x600x256xbf16>
    %1 = vector.shape_cast %0 : vector<1x600x256xbf16> to vector<600x256xbf16>
    %c0_2 = arith.constant 0 : index
    %c0_3 = arith.constant 0 : index
    %2 = vector.load %arg2[%c0_2, %c0_3] : memref<256x32xbf16, #tpu.memory_space<vmem>>, vector<256x32xbf16>
    %cst = arith.constant dense<0.000000e+00> : vector<600x32xf32>
    %3 = tpu.matmul %1, %2, %cst {dimension_numbers = #tpu.dot_dimension_numbers<[1], [0], [0], [1], [0, 0, 1, 1], [], []>} : vector<600x256xbf16>, vector<256x32xbf16>, vector<600x32xf32> -> vector<600x32xf32>
    %c0_4 = arith.constant 0 : index
    %c0_5 = arith.constant 0 : index
    %4 = vector.load %arg3[%c0_4, %c0_5] : memref<1x32xf32, #tpu.memory_space<vmem>>, vector<1x32xf32>
    %5 = vector.broadcast %4 : vector<1x32xf32> to vector<600x32xf32>
    %6 = arith.addf %3, %5 : vector<600x32xf32>
    %cst_6 = arith.constant 0.000000e+00 : f32
    %7 = vector.broadcast %cst_6 : f32 to vector<600x32xf32>
    %8 = arith.maximumf %6, %7 : vector<600x32xf32>
    %9 = arith.truncf %8 : vector<600x32xf32> to vector<600x32xbf16>
    %cst_7 = arith.constant 0.000000e+00 : f32
    %10 = vector.broadcast %cst_7 : f32 to vector<158x64xf32>
    %11 = vector.extract_strided_slice %9 {offsets = [0, 0], sizes = [158, 32], strides = [1, 1]} : vector<600x32xbf16> to vector<158x32xbf16>
    %c0_8 = arith.constant 0 : index
    %c0_9 = arith.constant 0 : index
    %c0_10 = arith.constant 0 : index
    %12 = vector.load %arg4[%c0_8, %c0_9, %c0_10] : memref<16x32x64xbf16, #tpu.memory_space<vmem>>, vector<1x32x64xbf16>
    %13 = vector.shape_cast %12 : vector<1x32x64xbf16> to vector<32x64xbf16>
    %cst_11 = arith.constant dense<0.000000e+00> : vector<158x64xf32>
    %14 = tpu.matmul %11, %13, %cst_11 {dimension_numbers = #tpu.dot_dimension_numbers<[1], [0], [0], [1], [0, 0, 1, 1], [], []>} : vector<158x32xbf16>, vector<32x64xbf16>, vector<158x64xf32> -> vector<158x64xf32>
    %15 = arith.addf %10, %14 : vector<158x64xf32>
    %16 = vector.extract_strided_slice %9 {offsets = [144, 0], sizes = [158, 32], strides = [1, 1]} : vector<600x32xbf16> to vector<158x32xbf16>
    %c1 = arith.constant 1 : index
    %c0_12 = arith.constant 0 : index
    %c0_13 = arith.constant 0 : index
    %17 = vector.load %arg4[%c1, %c0_12, %c0_13] : memref<16x32x64xbf16, #tpu.memory_space<vmem>>, vector<1x32x64xbf16>
    %18 = vector.shape_cast %17 : vector<1x32x64xbf16> to vector<32x64xbf16>
    %cst_14 = arith.constant dense<0.000000e+00> : vector<158x64xf32>
    %19 = tpu.matmul %16, %18, %cst_14 {dimension_numbers = #tpu.dot_dimension_numbers<[1], [0], [0], [1], [0, 0, 1, 1], [], []>} : vector<158x32xbf16>, vector<32x64xbf16>, vector<158x64xf32> -> vector<158x64xf32>
    %20 = arith.addf %15, %19 : vector<158x64xf32>
    %21 = vector.extract_strided_slice %9 {offsets = [1, 0], sizes = [158, 32], strides = [1, 1]} : vector<600x32xbf16> to vector<158x32xbf16>
    %c2 = arith.constant 2 : index
    %c0_15 = arith.constant 0 : index
    %c0_16 = arith.constant 0 : index
    %22 = vector.load %arg4[%c2, %c0_15, %c0_16] : memref<16x32x64xbf16, #tpu.memory_space<vmem>>, vector<1x32x64xbf16>
    %23 = vector.shape_cast %22 : vector<1x32x64xbf16> to vector<32x64xbf16>
    %cst_17 = arith.constant dense<0.000000e+00> : vector<158x64xf32>
    %24 = tpu.matmul %21, %23, %cst_17 {dimension_numbers = #tpu.dot_dimension_numbers<[1], [0], [0], [1], [0, 0, 1, 1], [], []>} : vector<158x32xbf16>, vector<32x64xbf16>, vector<158x64xf32> -> vector<158x64xf32>
    %25 = arith.addf %20, %24 : vector<158x64xf32>
    %26 = vector.extract_strided_slice %9 {offsets = [145, 0], sizes = [158, 32], strides = [1, 1]} : vector<600x32xbf16> to vector<158x32xbf16>
    %c3 = arith.constant 3 : index
    %c0_18 = arith.constant 0 : index
    %c0_19 = arith.constant 0 : index
    %27 = vector.load %arg4[%c3, %c0_18, %c0_19] : memref<16x32x64xbf16, #tpu.memory_space<vmem>>, vector<1x32x64xbf16>
    %28 = vector.shape_cast %27 : vector<1x32x64xbf16> to vector<32x64xbf16>
    %cst_20 = arith.constant dense<0.000000e+00> : vector<158x64xf32>
    %29 = tpu.matmul %26, %28, %cst_20 {dimension_numbers = #tpu.dot_dimension_numbers<[1], [0], [0], [1], [0, 0, 1, 1], [], []>} : vector<158x32xbf16>, vector<32x64xbf16>, vector<158x64xf32> -> vector<158x64xf32>
    %30 = arith.addf %25, %29 : vector<158x64xf32>
    %31 = vector.extract_strided_slice %9 {offsets = [288, 0], sizes = [158, 32], strides = [1, 1]} : vector<600x32xbf16> to vector<158x32xbf16>
    %c4 = arith.constant 4 : index
    %c0_21 = arith.constant 0 : index
    %c0_22 = arith.constant 0 : index
    %32 = vector.load %arg4[%c4, %c0_21, %c0_22] : memref<16x32x64xbf16, #tpu.memory_space<vmem>>, vector<1x32x64xbf16>
    %33 = vector.shape_cast %32 : vector<1x32x64xbf16> to vector<32x64xbf16>
    %cst_23 = arith.constant dense<0.000000e+00> : vector<158x64xf32>
    %34 = tpu.matmul %31, %33, %cst_23 {dimension_numbers = #tpu.dot_dimension_numbers<[1], [0], [0], [1], [0, 0, 1, 1], [], []>} : vector<158x32xbf16>, vector<32x64xbf16>, vector<158x64xf32> -> vector<158x64xf32>
    %35 = arith.addf %30, %34 : vector<158x64xf32>
    %36 = vector.extract_strided_slice %9 {offsets = [432, 0], sizes = [158, 32], strides = [1, 1]} : vector<600x32xbf16> to vector<158x32xbf16>
    %c5 = arith.constant 5 : index
    %c0_24 = arith.constant 0 : index
    %c0_25 = arith.constant 0 : index
    %37 = vector.load %arg4[%c5, %c0_24, %c0_25] : memref<16x32x64xbf16, #tpu.memory_space<vmem>>, vector<1x32x64xbf16>
    %38 = vector.shape_cast %37 : vector<1x32x64xbf16> to vector<32x64xbf16>
    %cst_26 = arith.constant dense<0.000000e+00> : vector<158x64xf32>
    %39 = tpu.matmul %36, %38, %cst_26 {dimension_numbers = #tpu.dot_dimension_numbers<[1], [0], [0], [1], [0, 0, 1, 1], [], []>} : vector<158x32xbf16>, vector<32x64xbf16>, vector<158x64xf32> -> vector<158x64xf32>
    %40 = arith.addf %35, %39 : vector<158x64xf32>
    %41 = vector.extract_strided_slice %9 {offsets = [289, 0], sizes = [158, 32], strides = [1, 1]} : vector<600x32xbf16> to vector<158x32xbf16>
    %c6 = arith.constant 6 : index
    %c0_27 = arith.constant 0 : index
    %c0_28 = arith.constant 0 : index
    %42 = vector.load %arg4[%c6, %c0_27, %c0_28] : memref<16x32x64xbf16, #tpu.memory_space<vmem>>, vector<1x32x64xbf16>
    %43 = vector.shape_cast %42 : vector<1x32x64xbf16> to vector<32x64xbf16>
    %cst_29 = arith.constant dense<0.000000e+00> : vector<158x64xf32>
    %44 = tpu.matmul %41, %43, %cst_29 {dimension_numbers = #tpu.dot_dimension_numbers<[1], [0], [0], [1], [0, 0, 1, 1], [], []>} : vector<158x32xbf16>, vector<32x64xbf16>, vector<158x64xf32> -> vector<158x64xf32>
    %45 = arith.addf %40, %44 : vector<158x64xf32>
    %46 = vector.extract_strided_slice %9 {offsets = [433, 0], sizes = [158, 32], strides = [1, 1]} : vector<600x32xbf16> to vector<158x32xbf16>
    %c7 = arith.constant 7 : index
    %c0_30 = arith.constant 0 : index
    %c0_31 = arith.constant 0 : index
    %47 = vector.load %arg4[%c7, %c0_30, %c0_31] : memref<16x32x64xbf16, #tpu.memory_space<vmem>>, vector<1x32x64xbf16>
    %48 = vector.shape_cast %47 : vector<1x32x64xbf16> to vector<32x64xbf16>
    %cst_32 = arith.constant dense<0.000000e+00> : vector<158x64xf32>
    %49 = tpu.matmul %46, %48, %cst_32 {dimension_numbers = #tpu.dot_dimension_numbers<[1], [0], [0], [1], [0, 0, 1, 1], [], []>} : vector<158x32xbf16>, vector<32x64xbf16>, vector<158x64xf32> -> vector<158x64xf32>
    %50 = arith.addf %45, %49 : vector<158x64xf32>
    %51 = vector.extract_strided_slice %9 {offsets = [6, 0], sizes = [158, 32], strides = [1, 1]} : vector<600x32xbf16> to vector<158x32xbf16>
    %c8 = arith.constant 8 : index
    %c0_33 = arith.constant 0 : index
    %c0_34 = arith.constant 0 : index
    %52 = vector.load %arg4[%c8, %c0_33, %c0_34] : memref<16x32x64xbf16, #tpu.memory_space<vmem>>, vector<1x32x64xbf16>
    %53 = vector.shape_cast %52 : vector<1x32x64xbf16> to vector<32x64xbf16>
    %cst_35 = arith.constant dense<0.000000e+00> : vector<158x64xf32>
    %54 = tpu.matmul %51, %53, %cst_35 {dimension_numbers = #tpu.dot_dimension_numbers<[1], [0], [0], [1], [0, 0, 1, 1], [], []>} : vector<158x32xbf16>, vector<32x64xbf16>, vector<158x64xf32> -> vector<158x64xf32>
    %55 = arith.addf %50, %54 : vector<158x64xf32>
    %56 = vector.extract_strided_slice %9 {offsets = [150, 0], sizes = [158, 32], strides = [1, 1]} : vector<600x32xbf16> to vector<158x32xbf16>
    %c9 = arith.constant 9 : index
    %c0_36 = arith.constant 0 : index
    %c0_37 = arith.constant 0 : index
    %57 = vector.load %arg4[%c9, %c0_36, %c0_37] : memref<16x32x64xbf16, #tpu.memory_space<vmem>>, vector<1x32x64xbf16>
    %58 = vector.shape_cast %57 : vector<1x32x64xbf16> to vector<32x64xbf16>
    %cst_38 = arith.constant dense<0.000000e+00> : vector<158x64xf32>
    %59 = tpu.matmul %56, %58, %cst_38 {dimension_numbers = #tpu.dot_dimension_numbers<[1], [0], [0], [1], [0, 0, 1, 1], [], []>} : vector<158x32xbf16>, vector<32x64xbf16>, vector<158x64xf32> -> vector<158x64xf32>
    %60 = arith.addf %55, %59 : vector<158x64xf32>
    %61 = vector.extract_strided_slice %9 {offsets = [7, 0], sizes = [158, 32], strides = [1, 1]} : vector<600x32xbf16> to vector<158x32xbf16>
    %c10 = arith.constant 10 : index
    %c0_39 = arith.constant 0 : index
    %c0_40 = arith.constant 0 : index
    %62 = vector.load %arg4[%c10, %c0_39, %c0_40] : memref<16x32x64xbf16, #tpu.memory_space<vmem>>, vector<1x32x64xbf16>
    %63 = vector.shape_cast %62 : vector<1x32x64xbf16> to vector<32x64xbf16>
    %cst_41 = arith.constant dense<0.000000e+00> : vector<158x64xf32>
    %64 = tpu.matmul %61, %63, %cst_41 {dimension_numbers = #tpu.dot_dimension_numbers<[1], [0], [0], [1], [0, 0, 1, 1], [], []>} : vector<158x32xbf16>, vector<32x64xbf16>, vector<158x64xf32> -> vector<158x64xf32>
    %65 = arith.addf %60, %64 : vector<158x64xf32>
    %66 = vector.extract_strided_slice %9 {offsets = [151, 0], sizes = [158, 32], strides = [1, 1]} : vector<600x32xbf16> to vector<158x32xbf16>
    %c11 = arith.constant 11 : index
    %c0_42 = arith.constant 0 : index
    %c0_43 = arith.constant 0 : index
    %67 = vector.load %arg4[%c11, %c0_42, %c0_43] : memref<16x32x64xbf16, #tpu.memory_space<vmem>>, vector<1x32x64xbf16>
    %68 = vector.shape_cast %67 : vector<1x32x64xbf16> to vector<32x64xbf16>
    %cst_44 = arith.constant dense<0.000000e+00> : vector<158x64xf32>
    %69 = tpu.matmul %66, %68, %cst_44 {dimension_numbers = #tpu.dot_dimension_numbers<[1], [0], [0], [1], [0, 0, 1, 1], [], []>} : vector<158x32xbf16>, vector<32x64xbf16>, vector<158x64xf32> -> vector<158x64xf32>
    %70 = arith.addf %65, %69 : vector<158x64xf32>
    %71 = vector.extract_strided_slice %9 {offsets = [294, 0], sizes = [158, 32], strides = [1, 1]} : vector<600x32xbf16> to vector<158x32xbf16>
    %c12 = arith.constant 12 : index
    %c0_45 = arith.constant 0 : index
    %c0_46 = arith.constant 0 : index
    %72 = vector.load %arg4[%c12, %c0_45, %c0_46] : memref<16x32x64xbf16, #tpu.memory_space<vmem>>, vector<1x32x64xbf16>
    %73 = vector.shape_cast %72 : vector<1x32x64xbf16> to vector<32x64xbf16>
    %cst_47 = arith.constant dense<0.000000e+00> : vector<158x64xf32>
    %74 = tpu.matmul %71, %73, %cst_47 {dimension_numbers = #tpu.dot_dimension_numbers<[1], [0], [0], [1], [0, 0, 1, 1], [], []>} : vector<158x32xbf16>, vector<32x64xbf16>, vector<158x64xf32> -> vector<158x64xf32>
    %75 = arith.addf %70, %74 : vector<158x64xf32>
    %76 = vector.extract_strided_slice %9 {offsets = [438, 0], sizes = [158, 32], strides = [1, 1]} : vector<600x32xbf16> to vector<158x32xbf16>
    %c13 = arith.constant 13 : index
    %c0_48 = arith.constant 0 : index
    %c0_49 = arith.constant 0 : index
    %77 = vector.load %arg4[%c13, %c0_48, %c0_49] : memref<16x32x64xbf16, #tpu.memory_space<vmem>>, vector<1x32x64xbf16>
    %78 = vector.shape_cast %77 : vector<1x32x64xbf16> to vector<32x64xbf16>
    %cst_50 = arith.constant dense<0.000000e+00> : vector<158x64xf32>
    %79 = tpu.matmul %76, %78, %cst_50 {dimension_numbers = #tpu.dot_dimension_numbers<[1], [0], [0], [1], [0, 0, 1, 1], [], []>} : vector<158x32xbf16>, vector<32x64xbf16>, vector<158x64xf32> -> vector<158x64xf32>
    %80 = arith.addf %75, %79 : vector<158x64xf32>
    %81 = vector.extract_strided_slice %9 {offsets = [295, 0], sizes = [158, 32], strides = [1, 1]} : vector<600x32xbf16> to vector<158x32xbf16>
    %c14 = arith.constant 14 : index
    %c0_51 = arith.constant 0 : index
    %c0_52 = arith.constant 0 : index
    %82 = vector.load %arg4[%c14, %c0_51, %c0_52] : memref<16x32x64xbf16, #tpu.memory_space<vmem>>, vector<1x32x64xbf16>
    %83 = vector.shape_cast %82 : vector<1x32x64xbf16> to vector<32x64xbf16>
    %cst_53 = arith.constant dense<0.000000e+00> : vector<158x64xf32>
    %84 = tpu.matmul %81, %83, %cst_53 {dimension_numbers = #tpu.dot_dimension_numbers<[1], [0], [0], [1], [0, 0, 1, 1], [], []>} : vector<158x32xbf16>, vector<32x64xbf16>, vector<158x64xf32> -> vector<158x64xf32>
    %85 = arith.addf %80, %84 : vector<158x64xf32>
    %86 = vector.extract_strided_slice %9 {offsets = [439, 0], sizes = [158, 32], strides = [1, 1]} : vector<600x32xbf16> to vector<158x32xbf16>
    %c15 = arith.constant 15 : index
    %c0_54 = arith.constant 0 : index
    %c0_55 = arith.constant 0 : index
    %87 = vector.load %arg4[%c15, %c0_54, %c0_55] : memref<16x32x64xbf16, #tpu.memory_space<vmem>>, vector<1x32x64xbf16>
    %88 = vector.shape_cast %87 : vector<1x32x64xbf16> to vector<32x64xbf16>
    %cst_56 = arith.constant dense<0.000000e+00> : vector<158x64xf32>
    %89 = tpu.matmul %86, %88, %cst_56 {dimension_numbers = #tpu.dot_dimension_numbers<[1], [0], [0], [1], [0, 0, 1, 1], [], []>} : vector<158x32xbf16>, vector<32x64xbf16>, vector<158x64xf32> -> vector<158x64xf32>
    %90 = arith.addf %85, %89 : vector<158x64xf32>
    %c0_57 = arith.constant 0 : index
    %c0_58 = arith.constant 0 : index
    %91 = vector.load %arg5[%c0_57, %c0_58] : memref<1x64xf32, #tpu.memory_space<vmem>>, vector<1x64xf32>
    %92 = vector.broadcast %91 : vector<1x64xf32> to vector<158x64xf32>
    %93 = arith.addf %90, %92 : vector<158x64xf32>
    %cst_59 = arith.constant 0.000000e+00 : f32
    %94 = vector.broadcast %cst_59 : f32 to vector<158x64xf32>
    %95 = arith.maximumf %93, %94 : vector<158x64xf32>
    %96 = arith.truncf %95 : vector<158x64xf32> to vector<158x64xbf16>
    %cst_60 = arith.constant 0.000000e+00 : f32
    %97 = vector.broadcast %cst_60 : f32 to vector<144x64xf32>
    %98 = vector.extract_strided_slice %96 {offsets = [0, 0], sizes = [144, 64], strides = [1, 1]} : vector<158x64xbf16> to vector<144x64xbf16>
    %c0_61 = arith.constant 0 : index
    %c0_62 = arith.constant 0 : index
    %c0_63 = arith.constant 0 : index
    %99 = vector.load %arg6[%c0_61, %c0_62, %c0_63] : memref<9x64x64xbf16, #tpu.memory_space<vmem>>, vector<1x64x64xbf16>
    %100 = vector.shape_cast %99 : vector<1x64x64xbf16> to vector<64x64xbf16>
    %cst_64 = arith.constant dense<0.000000e+00> : vector<144x64xf32>
    %101 = tpu.matmul %98, %100, %cst_64 {dimension_numbers = #tpu.dot_dimension_numbers<[1], [0], [0], [1], [0, 0, 1, 1], [], []>} : vector<144x64xbf16>, vector<64x64xbf16>, vector<144x64xf32> -> vector<144x64xf32>
    %102 = arith.addf %97, %101 : vector<144x64xf32>
    %103 = vector.extract_strided_slice %96 {offsets = [1, 0], sizes = [144, 64], strides = [1, 1]} : vector<158x64xbf16> to vector<144x64xbf16>
    %c1_65 = arith.constant 1 : index
    %c0_66 = arith.constant 0 : index
    %c0_67 = arith.constant 0 : index
    %104 = vector.load %arg6[%c1_65, %c0_66, %c0_67] : memref<9x64x64xbf16, #tpu.memory_space<vmem>>, vector<1x64x64xbf16>
    %105 = vector.shape_cast %104 : vector<1x64x64xbf16> to vector<64x64xbf16>
    %cst_68 = arith.constant dense<0.000000e+00> : vector<144x64xf32>
    %106 = tpu.matmul %103, %105, %cst_68 {dimension_numbers = #tpu.dot_dimension_numbers<[1], [0], [0], [1], [0, 0, 1, 1], [], []>} : vector<144x64xbf16>, vector<64x64xbf16>, vector<144x64xf32> -> vector<144x64xf32>
    %107 = arith.addf %102, %106 : vector<144x64xf32>
    %108 = vector.extract_strided_slice %96 {offsets = [2, 0], sizes = [144, 64], strides = [1, 1]} : vector<158x64xbf16> to vector<144x64xbf16>
    %c2_69 = arith.constant 2 : index
    %c0_70 = arith.constant 0 : index
    %c0_71 = arith.constant 0 : index
    %109 = vector.load %arg6[%c2_69, %c0_70, %c0_71] : memref<9x64x64xbf16, #tpu.memory_space<vmem>>, vector<1x64x64xbf16>
    %110 = vector.shape_cast %109 : vector<1x64x64xbf16> to vector<64x64xbf16>
    %cst_72 = arith.constant dense<0.000000e+00> : vector<144x64xf32>
    %111 = tpu.matmul %108, %110, %cst_72 {dimension_numbers = #tpu.dot_dimension_numbers<[1], [0], [0], [1], [0, 0, 1, 1], [], []>} : vector<144x64xbf16>, vector<64x64xbf16>, vector<144x64xf32> -> vector<144x64xf32>
    %112 = arith.addf %107, %111 : vector<144x64xf32>
    %113 = vector.extract_strided_slice %96 {offsets = [6, 0], sizes = [144, 64], strides = [1, 1]} : vector<158x64xbf16> to vector<144x64xbf16>
    %c3_73 = arith.constant 3 : index
    %c0_74 = arith.constant 0 : index
    %c0_75 = arith.constant 0 : index
    %114 = vector.load %arg6[%c3_73, %c0_74, %c0_75] : memref<9x64x64xbf16, #tpu.memory_space<vmem>>, vector<1x64x64xbf16>
    %115 = vector.shape_cast %114 : vector<1x64x64xbf16> to vector<64x64xbf16>
    %cst_76 = arith.constant dense<0.000000e+00> : vector<144x64xf32>
    %116 = tpu.matmul %113, %115, %cst_76 {dimension_numbers = #tpu.dot_dimension_numbers<[1], [0], [0], [1], [0, 0, 1, 1], [], []>} : vector<144x64xbf16>, vector<64x64xbf16>, vector<144x64xf32> -> vector<144x64xf32>
    %117 = arith.addf %112, %116 : vector<144x64xf32>
    %118 = vector.extract_strided_slice %96 {offsets = [7, 0], sizes = [144, 64], strides = [1, 1]} : vector<158x64xbf16> to vector<144x64xbf16>
    %c4_77 = arith.constant 4 : index
    %c0_78 = arith.constant 0 : index
    %c0_79 = arith.constant 0 : index
    %119 = vector.load %arg6[%c4_77, %c0_78, %c0_79] : memref<9x64x64xbf16, #tpu.memory_space<vmem>>, vector<1x64x64xbf16>
    %120 = vector.shape_cast %119 : vector<1x64x64xbf16> to vector<64x64xbf16>
    %cst_80 = arith.constant dense<0.000000e+00> : vector<144x64xf32>
    %121 = tpu.matmul %118, %120, %cst_80 {dimension_numbers = #tpu.dot_dimension_numbers<[1], [0], [0], [1], [0, 0, 1, 1], [], []>} : vector<144x64xbf16>, vector<64x64xbf16>, vector<144x64xf32> -> vector<144x64xf32>
    %122 = arith.addf %117, %121 : vector<144x64xf32>
    %123 = vector.extract_strided_slice %96 {offsets = [8, 0], sizes = [144, 64], strides = [1, 1]} : vector<158x64xbf16> to vector<144x64xbf16>
    %c5_81 = arith.constant 5 : index
    %c0_82 = arith.constant 0 : index
    %c0_83 = arith.constant 0 : index
    %124 = vector.load %arg6[%c5_81, %c0_82, %c0_83] : memref<9x64x64xbf16, #tpu.memory_space<vmem>>, vector<1x64x64xbf16>
    %125 = vector.shape_cast %124 : vector<1x64x64xbf16> to vector<64x64xbf16>
    %cst_84 = arith.constant dense<0.000000e+00> : vector<144x64xf32>
    %126 = tpu.matmul %123, %125, %cst_84 {dimension_numbers = #tpu.dot_dimension_numbers<[1], [0], [0], [1], [0, 0, 1, 1], [], []>} : vector<144x64xbf16>, vector<64x64xbf16>, vector<144x64xf32> -> vector<144x64xf32>
    %127 = arith.addf %122, %126 : vector<144x64xf32>
    %128 = vector.extract_strided_slice %96 {offsets = [12, 0], sizes = [144, 64], strides = [1, 1]} : vector<158x64xbf16> to vector<144x64xbf16>
    %c6_85 = arith.constant 6 : index
    %c0_86 = arith.constant 0 : index
    %c0_87 = arith.constant 0 : index
    %129 = vector.load %arg6[%c6_85, %c0_86, %c0_87] : memref<9x64x64xbf16, #tpu.memory_space<vmem>>, vector<1x64x64xbf16>
    %130 = vector.shape_cast %129 : vector<1x64x64xbf16> to vector<64x64xbf16>
    %cst_88 = arith.constant dense<0.000000e+00> : vector<144x64xf32>
    %131 = tpu.matmul %128, %130, %cst_88 {dimension_numbers = #tpu.dot_dimension_numbers<[1], [0], [0], [1], [0, 0, 1, 1], [], []>} : vector<144x64xbf16>, vector<64x64xbf16>, vector<144x64xf32> -> vector<144x64xf32>
    %132 = arith.addf %127, %131 : vector<144x64xf32>
    %133 = vector.extract_strided_slice %96 {offsets = [13, 0], sizes = [144, 64], strides = [1, 1]} : vector<158x64xbf16> to vector<144x64xbf16>
    %c7_89 = arith.constant 7 : index
    %c0_90 = arith.constant 0 : index
    %c0_91 = arith.constant 0 : index
    %134 = vector.load %arg6[%c7_89, %c0_90, %c0_91] : memref<9x64x64xbf16, #tpu.memory_space<vmem>>, vector<1x64x64xbf16>
    %135 = vector.shape_cast %134 : vector<1x64x64xbf16> to vector<64x64xbf16>
    %cst_92 = arith.constant dense<0.000000e+00> : vector<144x64xf32>
    %136 = tpu.matmul %133, %135, %cst_92 {dimension_numbers = #tpu.dot_dimension_numbers<[1], [0], [0], [1], [0, 0, 1, 1], [], []>} : vector<144x64xbf16>, vector<64x64xbf16>, vector<144x64xf32> -> vector<144x64xf32>
    %137 = arith.addf %132, %136 : vector<144x64xf32>
    %138 = vector.extract_strided_slice %96 {offsets = [14, 0], sizes = [144, 64], strides = [1, 1]} : vector<158x64xbf16> to vector<144x64xbf16>
    %c8_93 = arith.constant 8 : index
    %c0_94 = arith.constant 0 : index
    %c0_95 = arith.constant 0 : index
    %139 = vector.load %arg6[%c8_93, %c0_94, %c0_95] : memref<9x64x64xbf16, #tpu.memory_space<vmem>>, vector<1x64x64xbf16>
    %140 = vector.shape_cast %139 : vector<1x64x64xbf16> to vector<64x64xbf16>
    %cst_96 = arith.constant dense<0.000000e+00> : vector<144x64xf32>
    %141 = tpu.matmul %138, %140, %cst_96 {dimension_numbers = #tpu.dot_dimension_numbers<[1], [0], [0], [1], [0, 0, 1, 1], [], []>} : vector<144x64xbf16>, vector<64x64xbf16>, vector<144x64xf32> -> vector<144x64xf32>
    %142 = arith.addf %137, %141 : vector<144x64xf32>
    %c0_97 = arith.constant 0 : index
    %c0_98 = arith.constant 0 : index
    %143 = vector.load %arg7[%c0_97, %c0_98] : memref<1x64xf32, #tpu.memory_space<vmem>>, vector<1x64xf32>
    %144 = vector.broadcast %143 : vector<1x64xf32> to vector<144x64xf32>
    %145 = arith.addf %142, %144 : vector<144x64xf32>
    %cst_99 = arith.constant 0.000000e+00 : f32
    %146 = vector.broadcast %cst_99 : f32 to vector<144x64xf32>
    %147 = arith.maximumf %145, %146 : vector<144x64xf32>
    %c0_100 = arith.constant 0 : index
    %c0_101 = arith.constant 0 : index
    %c0_102 = arith.constant 0 : index
    %148 = vector.load %arg8[%c0_100, %c0_101, %c0_102] : memref<1x144x64xf32, #tpu.memory_space<vmem>>, vector<1x144x64xf32>
    %149 = vector.shape_cast %148 : vector<1x144x64xf32> to vector<144x64xf32>
    %150 = vector.shape_cast %147 : vector<144x64xf32> to vector<1x144x64xf32>
    tpu.vector_store %arg8[%c0_100, %c0_101, %c0_102], %150 {strides = array<i32>} : memref<1x144x64xf32, #tpu.memory_space<vmem>>, vector<1x144x64xf32>,
    return
  }
  func.func @transform_0(%arg0: i32) -> (i32, i32, i32) {
    %c0_i32 = arith.constant 0 : i32
    %c0_i32_0 = arith.constant 0 : i32
    %c0_i32_1 = arith.constant 0 : i32
    return %arg0, %c0_i32, %c0_i32_0 : i32, i32, i32
  }
  func.func @transform_1(%arg0: i32) -> (i32, i32) {
    %c0_i32 = arith.constant 0 : i32
    %c0_i32_0 = arith.constant 0 : i32
    %c0_i32_1 = arith.constant 0 : i32
    return %c0_i32, %c0_i32_0 : i32, i32
  }
  func.func @transform_2(%arg0: i32) -> (i32, i32) {
    %c0_i32 = arith.constant 0 : i32
    %c0_i32_0 = arith.constant 0 : i32
    %c0_i32_1 = arith.constant 0 : i32
    return %c0_i32, %c0_i32_0 : i32, i32
  }
  func.func @transform_3(%arg0: i32) -> (i32, i32, i32) {
    %c0_i32 = arith.constant 0 : i32
    %c0_i32_0 = arith.constant 0 : i32
    %c0_i32_1 = arith.constant 0 : i32
    %c0_i32_2 = arith.constant 0 : i32
    return %c0_i32, %c0_i32_0, %c0_i32_1 : i32, i32, i32
  }
  func.func @transform_4(%arg0: i32) -> (i32, i32) {
    %c0_i32 = arith.constant 0 : i32
    %c0_i32_0 = arith.constant 0 : i32
    %c0_i32_1 = arith.constant 0 : i32
    return %c0_i32, %c0_i32_0 : i32, i32
  }
  func.func @transform_5(%arg0: i32) -> (i32, i32, i32) {
    %c0_i32 = arith.constant 0 : i32
    %c0_i32_0 = arith.constant 0 : i32
    %c0_i32_1 = arith.constant 0 : i32
    %c0_i32_2 = arith.constant 0 : i32
    return %c0_i32, %c0_i32_0, %c0_i32_1 : i32, i32, i32
  }
  func.func @transform_6(%arg0: i32) -> (i32, i32) {
    %c0_i32 = arith.constant 0 : i32
    %c0_i32_0 = arith.constant 0 : i32
    %c0_i32_1 = arith.constant 0 : i32
    return %c0_i32, %c0_i32_0 : i32, i32
  }
  func.func @transform_7(%arg0: i32) -> (i32, i32, i32) {
    %c0_i32 = arith.constant 0 : i32
    %c0_i32_0 = arith.constant 0 : i32
    %c0_i32_1 = arith.constant 0 : i32
    return %arg0, %c0_i32, %c0_i32_0 : i32, i32, i32
  }
}

</mosaic_0001>

<llo_original>
// kernel: conv_front_end.1
$region0: #{conv_front_end.1}
  #allocation0 [shape = 'u32[]', space=smem, size = 0x4, offset = 0x4, fixed_abs, tag = 'smem constant byte address 0x4 - core index']
  #allocation1 [shape = 'u32[72,128]{1,0:T(1,128)}', space=vmem, size = 0x9000, scoped, tag = 'internal scratch']
  %s0 = inlined_call_operand.vmem [shape: bf16[2,600,256], index: 0, kind: input, shape index: {}]
  %s1 = inlined_call_operand.vmem [shape: bf16[256,32], index: 1, kind: input, shape index: {}]
  %s2 = inlined_call_operand.vmem [shape: f32[1,32], index: 2, kind: input, shape index: {}]
  %s3 = inlined_call_operand.vmem [shape: bf16[16,32,64], index: 3, kind: input, shape index: {}]
  %s4 = inlined_call_operand.vmem [shape: f32[1,64], index: 4, kind: input, shape index: {}]
  %s5 = inlined_call_operand.vmem [shape: bf16[9,64,64], index: 5, kind: input, shape index: {}]
  %s6 = inlined_call_operand.vmem [shape: f32[1,64], index: 6, kind: input, shape index: {}]
  %s7 = inlined_call_operand.vmem [shape: f32[2,144,64], index: 7, kind: output, shape index: {}]
  %s8 = sld [smem:[#allocation0]]
  $region61: #{conv_front_end.1} parent=0
    _
  %s10 = ssub.s32 1, %s8
  %s11 = scalar_select 0, %s10, %s8
  loop: start=0, step=1, limit=4
  $region2: #{conv_front_end.1} parent=0 // loop_pre_header
    _
  $region3: #{conv_front_end.1} parent=0 // loop_header
    %s13 = sphi 0, %s17
    %p14 = scmp.ge.s32.totalorder %s13, 4
    %s23 = sphi 0, %s25
    %s26 = sphi 0, %s23
    %s27 = sphi 0, %s26
    %s43 = sphi 0, %s27
    %s47 = sphi 0, %s47
    %s49 = sphi 0, %s47
    %s50 = sphi 0, %s49
    %s64 = sphi 0, %s50
    %s68 = sphi 0, %s68
    %s70 = sphi 0, %s68
    %s71 = sphi 0, %s70
    %s85 = sphi 0, %s71
    %s89 = sphi 0, %s89
    %s91 = sphi 0, %s89
    %s92 = sphi 0, %s91
    %s106 = sphi 0, %s92
    %s110 = sphi 0, %s110
    %s112 = sphi 0, %s110
    %s113 = sphi 0, %s112
    %s127 = sphi 0, %s113
    %s131 = sphi 0, %s131
    %s133 = sphi 0, %s131
    %s134 = sphi 0, %s133
    %s148 = sphi 0, %s134
    %s152 = sphi 0, %s152
    %s154 = sphi 0, %s152
    %s155 = sphi 0, %s154
    %s169 = sphi 0, %s155
    %s175 = sphi 0, %s177
    %s178 = sphi 0, %s175
    %s179 = sphi 0, %s178
    %s195 = sphi 0, %s179
  $region4: #{conv_front_end.1} parent=0 // loop_header_branch
    %16 = sbr.rel (%p14) target = $region8
  $region5: #{conv_front_end.1} parent=0 // loop_body
    %s18 = ssub.s32 %s13, 1
    %s19 = ssub.s32 %s13, 2
    %s20 = sadd.s32 %s13, 1
    %s21 = ssub.s32 %s13, %s20
    %p22 = scmp.eq.s32.totalorder %s21, 0
    %s24 = sadd.s32 %s23, 1
    %s25 = scalar_select %p22, %s23, %s24
    %p28 = pneg %p22
    %p29 = scmp.eq.s32.totalorder %s13, 1
    %p30 = por %p28, %p29
    %p31 = scmp.ne.s32.totalorder %s23, %s26
    %p32 = scmp.eq.s32.totalorder %s13, 0
    %p33 = por %p31, %p32
    %p34 = scmp.ne.s32.totalorder %s23, %s26
    %p35 = scmp.eq.s32.totalorder %s18, 1
    %p36 = por %p34, %p35
    %p37 = scmp.ne.s32.totalorder %s26, %s27
    %p38 = scmp.eq.s32.totalorder %s18, 0
    %p39 = por %p37, %p38
    %p40 = scmp.ne.s32.totalorder %s26, %s27
    %p41 = scmp.eq.s32.totalorder %s19, 1
    %p42 = por %p40, %p41
    %p44 = scmp.ne.s32.totalorder %s27, %s43
    %p45 = scmp.eq.s32.totalorder %s19, 0
    %p46 = por %p44, %p45
    %s48 = sadd.s32 %s47, 1
    %p51 = scmp.eq.s32.totalorder %s13, 1
    %p52 = scmp.ne.s32.totalorder %s47, %s49
    %p53 = scmp.eq.s32.totalorder %s13, 0
    %p54 = por %p52, %p53
    %p55 = scmp.ne.s32.totalorder %s47, %s49
    %p56 = scmp.eq.s32.totalorder %s18, 1
    %p57 = por %p55, %p56
    %p58 = scmp.ne.s32.totalorder %s49, %s50
    %p59 = scmp.eq.s32.totalorder %s18, 0
    %p60 = por %p58, %p59
    %p61 = scmp.ne.s32.totalorder %s49, %s50
    %p62 = scmp.eq.s32.totalorder %s19, 1
    %p63 = por %p61, %p62
    %p65 = scmp.ne.s32.totalorder %s50, %s64
    %p66 = scmp.eq.s32.totalorder %s19, 0
    %p67 = por %p65, %p66
    %s69 = sadd.s32 %s68, 1
    %p72 = scmp.eq.s32.totalorder %s13, 1
    %p73 = scmp.ne.s32.totalorder %s68, %s70
    %p74 = scmp.eq.s32.totalorder %s13, 0
    %p75 = por %p73, %p74
    %p76 = scmp.ne.s32.totalorder %s68, %s70
    %p77 = scmp.eq.s32.totalorder %s18, 1
    %p78 = por %p76, %p77
    %p79 = scmp.ne.s32.totalorder %s70, %s71
    %p80 = scmp.eq.s32.totalorder %s18, 0
    %p81 = por %p79, %p80
    %p82 = scmp.ne.s32.totalorder %s70, %s71
    %p83 = scmp.eq.s32.totalorder %s19, 1
    %p84 = por %p82, %p83
    %p86 = scmp.ne.s32.totalorder %s71, %s85
    %p87 = scmp.eq.s32.totalorder %s19, 0
    %p88 = por %p86, %p87
    %s90 = sadd.s32 %s89, 1
    %p93 = scmp.eq.s32.totalorder %s13, 1
    %p94 = scmp.ne.s32.totalorder %s89, %s91
    %p95 = scmp.eq.s32.totalorder %s13, 0
    %p96 = por %p94, %p95
    %p97 = scmp.ne.s32.totalorder %s89, %s91
    %p98 = scmp.eq.s32.totalorder %s18, 1
    %p99 = por %p97, %p98
    %p100 = scmp.ne.s32.totalorder %s91, %s92
    %p101 = scmp.eq.s32.totalorder %s18, 0
    %p102 = por %p100, %p101
    %p103 = scmp.ne.s32.totalorder %s91, %s92
    %p104 = scmp.eq.s32.totalorder %s19, 1
    %p105 = por %p103, %p104
    %p107 = scmp.ne.s32.totalorder %s92, %s106
    %p108 = scmp.eq.s32.totalorder %s19, 0
    %p109 = por %p107, %p108
    %s111 = sadd.s32 %s110, 1
    %p114 = scmp.eq.s32.totalorder %s13, 1
    %p115 = scmp.ne.s32.totalorder %s110, %s112
    %p116 = scmp.eq.s32.totalorder %s13, 0
    %p117 = por %p115, %p116
    %p118 = scmp.ne.s32.totalorder %s110, %s112
    %p119 = scmp.eq.s32.totalorder %s18, 1
    %p120 = por %p118, %p119
    %p121 = scmp.ne.s32.totalorder %s112, %s113
    %p122 = scmp.eq.s32.totalorder %s18, 0
    %p123 = por %p121, %p122
    %p124 = scmp.ne.s32.totalorder %s112, %s113
    %p125 = scmp.eq.s32.totalorder %s19, 1
    %p126 = por %p124, %p125
    %p128 = scmp.ne.s32.totalorder %s113, %s127
    %p129 = scmp.eq.s32.totalorder %s19, 0
    %p130 = por %p128, %p129
    %s132 = sadd.s32 %s131, 1
    %p135 = scmp.eq.s32.totalorder %s13, 1
    %p136 = scmp.ne.s32.totalorder %s131, %s133
    %p137 = scmp.eq.s32.totalorder %s13, 0
    %p138 = por %p136, %p137
    %p139 = scmp.ne.s32.totalorder %s131, %s133
    %p140 = scmp.eq.s32.totalorder %s18, 1
    %p141 = por %p139, %p140
    %p142 = scmp.ne.s32.totalorder %s133, %s134
    %p143 = scmp.eq.s32.totalorder %s18, 0
    %p144 = por %p142, %p143
    %p145 = scmp.ne.s32.totalorder %s133, %s134
    %p146 = scmp.eq.s32.totalorder %s19, 1
    %p147 = por %p145, %p146
    %p149 = scmp.ne.s32.totalorder %s134, %s148
    %p150 = scmp.eq.s32.totalorder %s19, 0
    %p151 = por %p149, %p150
    %s153 = sadd.s32 %s152, 1
    %p156 = scmp.eq.s32.totalorder %s13, 1
    %p157 = scmp.ne.s32.totalorder %s152, %s154
    %p158 = scmp.eq.s32.totalorder %s13, 0
    %p159 = por %p157, %p158
    %p160 = scmp.ne.s32.totalorder %s152, %s154
    %p161 = scmp.eq.s32.totalorder %s18, 1
    %p162 = por %p160, %p161
    %p163 = scmp.ne.s32.totalorder %s154, %s155
    %p164 = scmp.eq.s32.totalorder %s18, 0
    %p165 = por %p163, %p164
    %p166 = scmp.ne.s32.totalorder %s154, %s155
    %p167 = scmp.eq.s32.totalorder %s19, 1
    %p168 = por %p166, %p167
    %p170 = scmp.ne.s32.totalorder %s155, %s169
    %p171 = scmp.eq.s32.totalorder %s19, 0
    %p172 = por %p170, %p171
    %s173 = ssub.s32 %s13, %s20
    %p174 = scmp.eq.s32.totalorder %s173, 0
    %s176 = sadd.s32 %s175, 1
    %s177 = scalar_select %p174, %s175, %s176
    %p180 = pneg %p174
    %p181 = scmp.eq.s32.totalorder %s13, 1
    %p182 = por %p180, %p181
    %p183 = scmp.ne.s32.totalorder %s175, %s178
    %p184 = scmp.eq.s32.totalorder %s13, 0
    %p185 = por %p183, %p184
    %p186 = scmp.ne.s32.totalorder %s175, %s178
    %p187 = scmp.eq.s32.totalorder %s18, 1
    %p188 = por %p186, %p187
    %p189 = scmp.ne.s32.totalorder %s178, %s179
    %p190 = scmp.eq.s32.totalorder %s18, 0
    %p191 = por %p189, %p190
    %p192 = scmp.ne.s32.totalorder %s178, %s179
    %p193 = scmp.eq.s32.totalorder %s19, 1
    %p194 = por %p192, %p193
    %p196 = scmp.ne.s32.totalorder %s179, %s195
    %p197 = scmp.eq.s32.totalorder %s19, 0
    %p198 = por %p196, %p197
    %p199 = scmp.le.s32.totalorder 1, %s13
    %p200 = scmp.lt.s32.totalorder %s13, 3
    %p201 = pnand %p199, %p200
    %p202 = pneg %p201
    // Predicated region
    $region9: #{conv_front_end.1} parent=5 // pred_check
      _
    $region10: #{conv_front_end.1} parent=5 // pred_check_branch
      %204 = sbr.rel (%p201) target = $region12
    $region11: #{conv_front_end.1} parent=5 // pred_region
      %s205 = ssub.s32 %s13, 1
      // Predicated region
      $region13: #{conv_front_end.1} parent=11 // pred_check
        %p206 = pneg %p60
      $region14: #{conv_front_end.1} parent=11 // pred_check_branch
        %208 = sbr.rel (%p206) target = $region16
      $region15: #{conv_front_end.1} parent=11 // pred_region
        _
      $region16: #{conv_front_end.1} parent=11 // pred_fallthru
        _
      // Predicated region
      $region17: #{conv_front_end.1} parent=11 // pred_check
        %p209 = pneg %p81
      $region18: #{conv_front_end.1} parent=11 // pred_check_branch
        %211 = sbr.rel (%p209) target = $region20
      $region19: #{conv_front_end.1} parent=11 // pred_region
        _
      $region20: #{conv_front_end.1} parent=11 // pred_fallthru
        _
      // Predicated region
      $region21: #{conv_front_end.1} parent=11 // pred_check
        %p212 = pneg %p102
      $region22: #{conv_front_end.1} parent=11 // pred_check_branch
        %214 = sbr.rel (%p212) target = $region24
      $region23: #{conv_front_end.1} parent=11 // pred_region
        _
      $region24: #{conv_front_end.1} parent=11 // pred_fallthru
        _
      // Predicated region
      $region25: #{conv_front_end.1} parent=11 // pred_check
        %p215 = pneg %p123
      $region26: #{conv_front_end.1} parent=11 // pred_check_branch
        %217 = sbr.rel (%p215) target = $region28
      $region27: #{conv_front_end.1} parent=11 // pred_region
        _
      $region28: #{conv_front_end.1} parent=11 // pred_fallthru
        _
      // Predicated region
      $region29: #{conv_front_end.1} parent=11 // pred_check
        %p218 = pneg %p144
      $region30: #{conv_front_end.1} parent=11 // pred_check_branch
        %220 = sbr.rel (%p218) target = $region32
      $region31: #{conv_front_end.1} parent=11 // pred_region
        _
      $region32: #{conv_front_end.1} parent=11 // pred_fallthru
        _
      // Predicated region
      $region33: #{conv_front_end.1} parent=11 // pred_check
        %p221 = pneg %p165
      $region34: #{conv_front_end.1} parent=11 // pred_check_branch
        %223 = sbr.rel (%p221) target = $region36
      $region35: #{conv_front_end.1} parent=11 // pred_region
        _
      $region36: #{conv_front_end.1} parent=11 // pred_fallthru
        _
    $region12: #{conv_front_end.1} parent=5 // pred_fallthru
      _
    %p224 = scmp.lt.s32.totalorder %s13, 2
    // Predicated region
    $region37: #{conv_front_end.1} parent=5 // pred_check
      %p225 = pneg %p224
    $region38: #{conv_front_end.1} parent=5 // pred_check_branch
      %227 = sbr.rel (%p225) target = $region40
    $region39: #{conv_front_end.1} parent=5 // pred_region
      // Predicated region
      $region41: #{conv_front_end.1} parent=39 // pred_check
        %p228 = pneg %p33
      $region42: #{conv_front_end.1} parent=39 // pred_check_branch
        %230 = sbr.rel (%p228) target = $region44
      $region43: #{conv_front_end.1} parent=39 // pred_region
        %p231 = scmp.lt.s32.totalorder %s13, 1
        %s232 = scalar_select %p231, %s13, 1
        %s233 = smul.addr %s232, 150
        %s234 = smul.addr %s233, 4
        %s235 = scalar_lea.vmem %s0, %s234
      $region44: #{conv_front_end.1} parent=39 // pred_fallthru
        _
    $region40: #{conv_front_end.1} parent=5 // pred_fallthru
      _
    %p236 = scmp.le.s32.totalorder 1, %s13
    %p237 = scmp.lt.s32.totalorder %s13, 3
    %p238 = pnand %p236, %p237
    %p239 = pneg %p238
    // Predicated region
    $region45: #{conv_front_end.1} parent=5 // pred_check
      _
    $region46: #{conv_front_end.1} parent=5 // pred_check_branch
      %241 = sbr.rel (%p238) target = $region48
    $region47: #{conv_front_end.1} parent=5 // pred_region
      %s242 = ssub.s32 %s13, 1
      %p243 = scmp.lt.s32.totalorder %s18, 1
      %s244 = scalar_select %p243, %s18, 1
      %s245 = smul.addr %s244, 150
      %s246 = smul.addr %s245, 4
      %s247 = scalar_lea.vmem %s0, %s246
      %p248 = pneg %p39
      %p249 = pneg %p36
      %p250 = pneg %p60
      %p251 = pneg %p57
      %p252 = pneg %p81
      %p253 = pneg %p78
      %p254 = pneg %p102
      %p255 = pneg %p99
      %p256 = pneg %p123
      %p257 = pneg %p120
      %p258 = pneg %p144
      %p259 = pneg %p141
      %p260 = pneg %p165
      %p261 = pneg %p162
      %p262 = pneg %p191
      %p263 = pneg %p188
      %p264 = scmp.lt.s32.totalorder %s18, 1
      %s265 = scalar_select %p264, %s18, 1
      %s266 = smul.addr %s265, 18
      %s267 = smul.addr %s266, 8
      %s268 = scalar_lea.vmem %s7, %s267
      %p269 = scmp.lt.s32.totalorder %s18, 1
      %s270 = scalar_select %p269, %s18, 1
      %s271 = smul.addr %s270, 150
      %s272 = smul.addr %s271, 4
      %s273 = scalar_lea.vmem %s0, %s272
      %p274 = scmp.lt.s32.totalorder %s18, 1
      %s275 = scalar_select %p274, %s18, 1
      %s276 = smul.addr %s275, 18
      %s277 = smul.addr %s276, 8
      %s278 = scalar_lea.vmem %s7, %s277
      %v280 = vld [vmem:[%s273] sm:$0xff]
      %v281 = vld [vmem:[%s273 + $0x8] sm:$0xff]
      %v282 = vld [vmem:[%s273 + $0x10] sm:$0xff]
      %v283 = vld [vmem:[%s273 + $0x18] sm:$0xff]
      %v284 = vld [vmem:[%s273 + $0x20] sm:$0xff]
      %v285 = vld [vmem:[%s273 + $0x28] sm:$0xff]
      %v286 = vld [vmem:[%s273 + $0x30] sm:$0xff]
      %v287 = vld [vmem:[%s273 + $0x38] sm:$0xff]
      %v288 = vld [vmem:[%s273 + $0x40] sm:$0xff]
      %v289 = vld [vmem:[%s273 + $0x48] sm:$0xff]
      %v290 = vld [vmem:[%s273 + $0x50] sm:$0xff]
      %v291 = vld [vmem:[%s273 + $0x58] sm:$0xff]
      %v292 = vld [vmem:[%s273 + $0x60] sm:$0xff]
      %v293 = vld [vmem:[%s273 + $0x68] sm:$0xff]
      %v294 = vld [vmem:[%s273 + $0x70] sm:$0xff]
      %v295 = vld [vmem:[%s273 + $0x78] sm:$0xff]
      %v296 = vld [vmem:[%s273 + $0x80] sm:$0xff]
      %v297 = vld [vmem:[%s273 + $0x88] sm:$0xff]
      %v298 = vld [vmem:[%s273 + $0x90] sm:$0xff]
      %v299 = vld [vmem:[%s273 + $0x98] sm:$0xff]
      %v300 = vld [vmem:[%s273 + $0xa0] sm:$0xff]
      %v301 = vld [vmem:[%s273 + $0xa8] sm:$0xff]
      %v302 = vld [vmem:[%s273 + $0xb0] sm:$0xff]
      %v303 = vld [vmem:[%s273 + $0xb8] sm:$0xff]
      %v304 = vld [vmem:[%s273 + $0xc0] sm:$0xff]
      %v305 = vld [vmem:[%s273 + $0xc8] sm:$0xff]
      %v306 = vld [vmem:[%s273 + $0xd0] sm:$0xff]
      %v307 = vld [vmem:[%s273 + $0xd8] sm:$0xff]
      %v308 = vld [vmem:[%s273 + $0xe0] sm:$0xff]
      %v309 = vld [vmem:[%s273 + $0xe8] sm:$0xff]
      %v310 = vld [vmem:[%s273 + $0xf0] sm:$0xff]
      %v311 = vld [vmem:[%s273 + $0xf8] sm:$0xff]
      %v312 = vld [vmem:[%s273 + $0x100] sm:$0xff]
      %v313 = vld [vmem:[%s273 + $0x108] sm:$0xff]
      %v314 = vld [vmem:[%s273 + $0x110] sm:$0xff]
      %v315 = vld [vmem:[%s273 + $0x118] sm:$0xff]
      %v316 = vld [vmem:[%s273 + $0x120] sm:$0xff]
      %v317 = vld [vmem:[%s273 + $0x128] sm:$0xff]
      %v318 = vld [vmem:[%s273 + $0x130] sm:$0xff]
      %v319 = vld [vmem:[%s273 + $0x138] sm:$0xff]
      %v320 = vld [vmem:[%s273 + $0x140] sm:$0xff]
      %v321 = vld [vmem:[%s273 + $0x148] sm:$0xff]
      %v322 = vld [vmem:[%s273 + $0x150] sm:$0xff]
      %v323 = vld [vmem:[%s273 + $0x158] sm:$0xff]
      %v324 = vld [vmem:[%s273 + $0x160] sm:$0xff]
      %v325 = vld [vmem:[%s273 + $0x168] sm:$0xff]
      %v326 = vld [vmem:[%s273 + $0x170] sm:$0xff]
      %v327 = vld [vmem:[%s273 + $0x178] sm:$0xff]
      %v328 = vld [vmem:[%s273 + $0x180] sm:$0xff]
      %v329 = vld [vmem:[%s273 + $0x188] sm:$0xff]
      %v330 = vld [vmem:[%s273 + $0x190] sm:$0xff]
      %v331 = vld [vmem:[%s273 + $0x198] sm:$0xff]
      %v332 = vld [vmem:[%s273 + $0x1a0] sm:$0xff]
      %v333 = vld [vmem:[%s273 + $0x1a8] sm:$0xff]
      %v334 = vld [vmem:[%s273 + $0x1b0] sm:$0xff]
      %v335 = vld [vmem:[%s273 + $0x1b8] sm:$0xff]
      %v336 = vld [vmem:[%s273 + $0x1c0] sm:$0xff]
      %v337 = vld [vmem:[%s273 + $0x1c8] sm:$0xff]
      %v338 = vld [vmem:[%s273 + $0x1d0] sm:$0xff]
      %v339 = vld [vmem:[%s273 + $0x1d8] sm:$0xff]
      %v340 = vld [vmem:[%s273 + $0x1e0] sm:$0xff]
      %v341 = vld [vmem:[%s273 + $0x1e8] sm:$0xff]
      %v342 = vld [vmem:[%s273 + $0x1f0] sm:$0xff]
      %v343 = vld [vmem:[%s273 + $0x1f8] sm:$0xff]
      %v344 = vld [vmem:[%s273 + $0x200] sm:$0xff]
      %v345 = vld [vmem:[%s273 + $0x208] sm:$0xff]
      %v346 = vld [vmem:[%s273 + $0x210] sm:$0xff]
      %v347 = vld [vmem:[%s273 + $0x218] sm:$0xff]
      %v348 = vld [vmem:[%s273 + $0x220] sm:$0xff]
      %v349 = vld [vmem:[%s273 + $0x228] sm:$0xff]
      %v350 = vld [vmem:[%s273 + $0x230] sm:$0xff]
      %v351 = vld [vmem:[%s273 + $0x238] sm:$0xff]
      %v352 = vld [vmem:[%s273 + $0x240] sm:$0xff]
      %v353 = vld [vmem:[%s273 + $0x248] sm:$0xff]
      %v354 = vld [vmem:[%s273 + $0x250] sm:$0xff]
      %v355 = vld [vmem:[%s1] sm:$0xf]
      %v356 = vld [vmem:[%s1 + $0x4] sm:$0xf]
      %v357 = vld [vmem:[%s1 + $0x8] sm:$0xf]
      %v358 = vld [vmem:[%s1 + $0xc] sm:$0xf]
      %v359 = vld [vmem:[%s1 + $0x10] sm:$0xf]
      %v360 = vld [vmem:[%s1 + $0x14] sm:$0xf]
      %v361 = vld [vmem:[%s1 + $0x18] sm:$0xf]
      %v362 = vld [vmem:[%s1 + $0x1c] sm:$0xf]
      %v363 = vld [vmem:[%s1 + $0x20] sm:$0xf]
      %v364 = vld [vmem:[%s1 + $0x24] sm:$0xf]
      %v365 = vld [vmem:[%s1 + $0x28] sm:$0xf]
      %v366 = vld [vmem:[%s1 + $0x2c] sm:$0xf]
      %v367 = vld [vmem:[%s1 + $0x30] sm:$0xf]
      %v368 = vld [vmem:[%s1 + $0x34] sm:$0xf]
      %v369 = vld [vmem:[%s1 + $0x38] sm:$0xf]
      %v370 = vld [vmem:[%s1 + $0x3c] sm:$0xf]
      %v371 = vld [vmem:[%s1 + $0x40] sm:$0xf]
      %v372 = vld [vmem:[%s1 + $0x44] sm:$0xf]
      %v373 = vld [vmem:[%s1 + $0x48] sm:$0xf]
      %v374 = vld [vmem:[%s1 + $0x4c] sm:$0xf]
      %v375 = vld [vmem:[%s1 + $0x50] sm:$0xf]
      %v376 = vld [vmem:[%s1 + $0x54] sm:$0xf]
      %v377 = vld [vmem:[%s1 + $0x58] sm:$0xf]
      %v378 = vld [vmem:[%s1 + $0x5c] sm:$0xf]
      %v379 = vld [vmem:[%s1 + $0x60] sm:$0xf]
      %v380 = vld [vmem:[%s1 + $0x64] sm:$0xf]
      %v381 = vld [vmem:[%s1 + $0x68] sm:$0xf]
      %v382 = vld [vmem:[%s1 + $0x6c] sm:$0xf]
      %v383 = vld [vmem:[%s1 + $0x70] sm:$0xf]
      %v384 = vld [vmem:[%s1 + $0x74] sm:$0xf]
      %v385 = vld [vmem:[%s1 + $0x78] sm:$0xf]
      %v386 = vld [vmem:[%s1 + $0x7c] sm:$0xf]
      %v387 = vld [vmem:[%s2] sm:$0x1]
      %v389 = vperm.slane %v387, 0
      %v466 = vunpack.c.l.b16 %v280
      %v467 = vunpack.c.h.b16 %v280
      %v468 = vunpack.c.l.b16 %v281
      %v469 = vunpack.c.h.b16 %v281
      %v470 = vunpack.c.l.b16 %v282
      %v471 = vunpack.c.h.b16 %v282
      %v472 = vunpack.c.l.b16 %v283
      %v473 = vunpack.c.h.b16 %v283
      %v474 = vunpack.c.l.b16 %v284
      %v475 = vunpack.c.h.b16 %v284
      %v476 = vunpack.c.l.b16 %v285
      %v477 = vunpack.c.h.b16 %v285
      %v478 = vunpack.c.l.b16 %v286
      %v479 = vunpack.c.h.b16 %v286
      %v480 = vunpack.c.l.b16 %v287
      %v481 = vunpack.c.h.b16 %v287
      %v482 = vunpack.c.l.b16 %v288
      %v483 = vunpack.c.h.b16 %v288
      %v484 = vunpack.c.l.b16 %v289
      %v485 = vunpack.c.h.b16 %v289
      %v486 = vunpack.c.l.b16 %v290
      %v487 = vunpack.c.h.b16 %v290
      %v488 = vunpack.c.l.b16 %v291
      %v489 = vunpack.c.h.b16 %v291
      %v490 = vunpack.c.l.b16 %v292
      %v491 = vunpack.c.h.b16 %v292
      %v492 = vunpack.c.l.b16 %v293
      %v493 = vunpack.c.h.b16 %v293
      %v494 = vunpack.c.l.b16 %v294
      %v495 = vunpack.c.h.b16 %v294
      %v496 = vunpack.c.l.b16 %v295
      %v497 = vunpack.c.h.b16 %v295
      %v498 = vunpack.c.l.b16 %v296
      %v499 = vunpack.c.h.b16 %v296
      %v500 = vunpack.c.l.b16 %v297
      %v501 = vunpack.c.h.b16 %v297
      %v502 = vunpack.c.l.b16 %v298
      %v503 = vunpack.c.h.b16 %v298
      %v504 = vunpack.c.l.b16 %v299
      %v505 = vunpack.c.h.b16 %v299
      %v506 = vunpack.c.l.b16 %v300
      %v507 = vunpack.c.h.b16 %v300
      %v508 = vunpack.c.l.b16 %v301
      %v509 = vunpack.c.h.b16 %v301
      %v510 = vunpack.c.l.b16 %v302
      %v511 = vunpack.c.h.b16 %v302
      %v512 = vunpack.c.l.b16 %v303
      %v513 = vunpack.c.h.b16 %v303
      %v514 = vunpack.c.l.b16 %v304
      %v515 = vunpack.c.h.b16 %v304
      %v516 = vunpack.c.l.b16 %v305
      %v517 = vunpack.c.h.b16 %v305
      %v518 = vunpack.c.l.b16 %v306
      %v519 = vunpack.c.h.b16 %v306
      %v520 = vunpack.c.l.b16 %v307
      %v521 = vunpack.c.h.b16 %v307
      %v522 = vunpack.c.l.b16 %v308
      %v523 = vunpack.c.h.b16 %v308
      %v524 = vunpack.c.l.b16 %v309
      %v525 = vunpack.c.h.b16 %v309
      %v526 = vunpack.c.l.b16 %v310
      %v527 = vunpack.c.h.b16 %v310
      %v528 = vunpack.c.l.b16 %v311
      %v529 = vunpack.c.h.b16 %v311
      %v530 = vunpack.c.l.b16 %v312
      %v531 = vunpack.c.h.b16 %v312
      %v532 = vunpack.c.l.b16 %v313
      %v533 = vunpack.c.h.b16 %v313
      %v534 = vunpack.c.l.b16 %v314
      %v535 = vunpack.c.h.b16 %v314
      %v536 = vunpack.c.l.b16 %v315
      %v537 = vunpack.c.h.b16 %v315
      %v538 = vunpack.c.l.b16 %v316
      %v539 = vunpack.c.h.b16 %v316
      %v540 = vunpack.c.l.b16 %v317
      %v541 = vunpack.c.h.b16 %v317
      %v542 = vunpack.c.l.b16 %v318
      %v543 = vunpack.c.h.b16 %v318
      %v544 = vunpack.c.l.b16 %v319
      %v545 = vunpack.c.h.b16 %v319
      %v546 = vunpack.c.l.b16 %v320
      %v547 = vunpack.c.h.b16 %v320
      %v548 = vunpack.c.l.b16 %v321
      %v549 = vunpack.c.h.b16 %v321
      %v550 = vunpack.c.l.b16 %v322
      %v551 = vunpack.c.h.b16 %v322
      %v552 = vunpack.c.l.b16 %v323
      %v553 = vunpack.c.h.b16 %v323
      %v554 = vunpack.c.l.b16 %v324
      %v555 = vunpack.c.h.b16 %v324
      %v556 = vunpack.c.l.b16 %v325
      %v557 = vunpack.c.h.b16 %v325
      %v558 = vunpack.c.l.b16 %v326
      %v559 = vunpack.c.h.b16 %v326
      %v560 = vunpack.c.l.b16 %v327
      %v561 = vunpack.c.h.b16 %v327
      %v562 = vunpack.c.l.b16 %v328
      %v563 = vunpack.c.h.b16 %v328
      %v564 = vunpack.c.l.b16 %v329
      %v565 = vunpack.c.h.b16 %v329
      %v566 = vunpack.c.l.b16 %v330
      %v567 = vunpack.c.h.b16 %v330
      %v568 = vunpack.c.l.b16 %v331
      %v569 = vunpack.c.h.b16 %v331
      %v570 = vunpack.c.l.b16 %v332
      %v571 = vunpack.c.h.b16 %v332
      %v572 = vunpack.c.l.b16 %v333
      %v573 = vunpack.c.h.b16 %v333
      %v574 = vunpack.c.l.b16 %v334
      %v575 = vunpack.c.h.b16 %v334
      %v576 = vunpack.c.l.b16 %v335
      %v577 = vunpack.c.h.b16 %v335
      %v578 = vunpack.c.l.b16 %v336
      %v579 = vunpack.c.h.b16 %v336
      %v580 = vunpack.c.l.b16 %v337
      %v581 = vunpack.c.h.b16 %v337
      %v582 = vunpack.c.l.b16 %v338
      %v583 = vunpack.c.h.b16 %v338
      %v584 = vunpack.c.l.b16 %v339
      %v585 = vunpack.c.h.b16 %v339
      %v586 = vunpack.c.l.b16 %v340
      %v587 = vunpack.c.h.b16 %v340
      %v588 = vunpack.c.l.b16 %v341
      %v589 = vunpack.c.h.b16 %v341
      %v590 = vunpack.c.l.b16 %v342
      %v591 = vunpack.c.h.b16 %v342
      %v592 = vunpack.c.l.b16 %v343
      %v593 = vunpack.c.h.b16 %v343
      %v594 = vunpack.c.l.b16 %v344
      %v595 = vunpack.c.h.b16 %v344
      %v596 = vunpack.c.l.b16 %v345
      %v597 = vunpack.c.h.b16 %v345
      %v598 = vunpack.c.l.b16 %v346
      %v599 = vunpack.c.h.b16 %v346
      %v600 = vunpack.c.l.b16 %v347
      %v601 = vunpack.c.h.b16 %v347
      %v602 = vunpack.c.l.b16 %v348
      %v603 = vunpack.c.h.b16 %v348
      %v604 = vunpack.c.l.b16 %v349
      %v605 = vunpack.c.h.b16 %v349
      %v606 = vunpack.c.l.b16 %v350
      %v607 = vunpack.c.h.b16 %v350
      %v608 = vunpack.c.l.b16 %v351
      %v609 = vunpack.c.h.b16 %v351
      %v610 = vunpack.c.l.b16 %v352
      %v611 = vunpack.c.h.b16 %v352
      %v612 = vunpack.c.l.b16 %v353
      %v613 = vunpack.c.h.b16 %v353
      %v614 = vunpack.c.l.b16 %v354
      %v615 = vunpack.c.h.b16 %v354
      %v616 = vpack.c.b16 %v468, %v466
      %v617 = vpack.c.b16 %v469, %v467
      %v618 = vpack.c.b16 %v472, %v470
      %v619 = vpack.c.b16 %v473, %v471
      %v620 = vpack.c.b16 %v476, %v474
      %v621 = vpack.c.b16 %v477, %v475
      %v622 = vpack.c.b16 %v480, %v478
      %v623 = vpack.c.b16 %v481, %v479
      %v624 = vpack.c.b16 %v484, %v482
      %v625 = vpack.c.b16 %v485, %v483
      %v626 = vpack.c.b16 %v488, %v486
      %v627 = vpack.c.b16 %v489, %v487
      %v628 = vpack.c.b16 %v492, %v490
      %v629 = vpack.c.b16 %v493, %v491
      %v630 = vpack.c.b16 %v496, %v494
      %v631 = vpack.c.b16 %v497, %v495
      %v632 = vpack.c.b16 %v500, %v498
      %v633 = vpack.c.b16 %v501, %v499
      %v634 = vpack.c.b16 %v504, %v502
      %v635 = vpack.c.b16 %v505, %v503
      %v636 = vpack.c.b16 %v508, %v506
      %v637 = vpack.c.b16 %v509, %v507
      %v638 = vpack.c.b16 %v512, %v510
      %v639 = vpack.c.b16 %v513, %v511
      %v640 = vpack.c.b16 %v516, %v514
      %v641 = vpack.c.b16 %v517, %v515
      %v642 = vpack.c.b16 %v520, %v518
      %v643 = vpack.c.b16 %v521, %v519
      %v644 = vpack.c.b16 %v524, %v522
      %v645 = vpack.c.b16 %v525, %v523
      %v646 = vpack.c.b16 %v528, %v526
      %v647 = vpack.c.b16 %v529, %v527
      %v648 = vpack.c.b16 %v532, %v530
      %v649 = vpack.c.b16 %v533, %v531
      %v650 = vpack.c.b16 %v536, %v534
      %v651 = vpack.c.b16 %v537, %v535
      %v652 = vpack.c.b16 %v540, %v538
      %v653 = vpack.c.b16 %v541, %v539
      %v654 = vpack.c.b16 %v544, %v542
      %v655 = vpack.c.b16 %v545, %v543
      %v656 = vpack.c.b16 %v548, %v546
      %v657 = vpack.c.b16 %v549, %v547
      %v658 = vpack.c.b16 %v552, %v550
      %v659 = vpack.c.b16 %v553, %v551
      %v660 = vpack.c.b16 %v556, %v554
      %v661 = vpack.c.b16 %v557, %v555
      %v662 = vpack.c.b16 %v560, %v558
      %v663 = vpack.c.b16 %v561, %v559
      %v664 = vpack.c.b16 %v564, %v562
      %v665 = vpack.c.b16 %v565, %v563
      %v666 = vpack.c.b16 %v568, %v566
      %v667 = vpack.c.b16 %v569, %v567
      %v668 = vpack.c.b16 %v572, %v570
      %v669 = vpack.c.b16 %v573, %v571
      %v670 = vpack.c.b16 %v576, %v574
      %v671 = vpack.c.b16 %v577, %v575
      %v672 = vpack.c.b16 %v580, %v578
      %v673 = vpack.c.b16 %v581, %v579
      %v674 = vpack.c.b16 %v584, %v582
      %v675 = vpack.c.b16 %v585, %v583
      %v676 = vpack.c.b16 %v588, %v586
      %v677 = vpack.c.b16 %v589, %v587
      %v678 = vpack.c.b16 %v592, %v590
      %v679 = vpack.c.b16 %v593, %v591
      %v680 = vpack.c.b16 %v596, %v594
      %v681 = vpack.c.b16 %v597, %v595
      %v682 = vpack.c.b16 %v600, %v598
      %v683 = vpack.c.b16 %v601, %v599
      %v684 = vpack.c.b16 %v604, %v602
      %v685 = vpack.c.b16 %v605, %v603
      %v686 = vpack.c.b16 %v608, %v606
      %v687 = vpack.c.b16 %v609, %v607
      %v688 = vpack.c.b16 %v612, %v610
      %v689 = vpack.c.b16 %v613, %v611
      %v690 = vpack.c.b16 %v614, %v614
      %v691 = vpack.c.b16 %v615, %v615
      %v800 = vunpack.c.l.b16 %v355
      %v801 = vunpack.c.l.b16 %v356
      %v802 = vunpack.c.l.b16 %v357
      %v803 = vunpack.c.l.b16 %v358
      %v804 = vunpack.c.l.b16 %v359
      %v805 = vunpack.c.l.b16 %v360
      %v806 = vunpack.c.l.b16 %v361
      %v807 = vunpack.c.l.b16 %v362
      %v808 = vunpack.c.l.b16 %v363
      %v809 = vunpack.c.l.b16 %v364
      %v810 = vunpack.c.l.b16 %v365
      %v811 = vunpack.c.l.b16 %v366
      %v812 = vunpack.c.l.b16 %v367
      %v813 = vunpack.c.l.b16 %v368
      %v814 = vunpack.c.l.b16 %v369
      %v815 = vunpack.c.l.b16 %v370
      %v816 = vunpack.c.l.b16 %v371
      %v817 = vunpack.c.l.b16 %v372
      %v818 = vunpack.c.l.b16 %v373
      %v819 = vunpack.c.l.b16 %v374
      %v820 = vunpack.c.l.b16 %v375
      %v821 = vunpack.c.l.b16 %v376
      %v822 = vunpack.c.l.b16 %v377
      %v823 = vunpack.c.l.b16 %v378
      %v824 = vunpack.c.l.b16 %v379
      %v825 = vunpack.c.l.b16 %v380
      %v826 = vunpack.c.l.b16 %v381
      %v827 = vunpack.c.l.b16 %v382
      %v828 = vunpack.c.l.b16 %v383
      %v829 = vunpack.c.l.b16 %v384
      %v830 = vunpack.c.l.b16 %v385
      %v831 = vunpack.c.l.b16 %v386
      %v832 = vpack.c.b16 %v801, %v800
      %v833 = vpack.c.b16 %v803, %v802
      %v834 = vpack.c.b16 %v805, %v804
      %v835 = vpack.c.b16 %v807, %v806
      %v836 = vpack.c.b16 %v809, %v808
      %v837 = vpack.c.b16 %v811, %v810
      %v838 = vpack.c.b16 %v813, %v812
      %v839 = vpack.c.b16 %v815, %v814
      %v840 = vpack.c.b16 %v817, %v816
      %v841 = vpack.c.b16 %v819, %v818
      %v842 = vpack.c.b16 %v821, %v820
      %v843 = vpack.c.b16 %v823, %v822
      %v844 = vpack.c.b16 %v825, %v824
      %v845 = vpack.c.b16 %v827, %v826
      %v846 = vpack.c.b16 %v829, %v828
      %v847 = vpack.c.b16 %v831, %v830
      %864 = vmatpush.bf16.msra.mxu0 %v839
      %865 = vmatpush.bf16.msra.mxu0 %v838
      %866 = vmatpush.bf16.msra.mxu0 %v837
      %867 = vmatpush.bf16.msra.mxu0 %v836
      %868 = vmatpush.bf16.msra.mxu0 %v835
      %869 = vmatpush.bf16.msra.mxu0 %v834
      %870 = vmatpush.bf16.msra.mxu0 %v833
      %871 = vmatpush.bf16.msra.mxu0 %v832
      %872 = vmatmul.bf16.gmra.mxu0 %v616
      %v873 = vpop.f32.mrf.mxu0
      %v874 = vadd.f32 %v389, %v873
      %v875 = vpop.f32.mrf.mxu0
      %v876 = vadd.f32 %v389, %v875
      %877 = vmatmul.bf16.gmra.mxu0 %v618
      %v878 = vpop.f32.mrf.mxu0
      %v879 = vadd.f32 %v389, %v878
      %v880 = vpop.f32.mrf.mxu0
      %v881 = vadd.f32 %v389, %v880
      %882 = vmatmul.bf16.gmra.mxu0 %v620
      %v883 = vpop.f32.mrf.mxu0
      %v884 = vadd.f32 %v389, %v883
      %v885 = vpop.f32.mrf.mxu0
      %v886 = vadd.f32 %v389, %v885
      %887 = vmatmul.bf16.gmra.mxu0 %v622
      %v888 = vpop.f32.mrf.mxu0
      %v889 = vadd.f32 %v389, %v888
      %v890 = vpop.f32.mrf.mxu0
      %v891 = vadd.f32 %v389, %v890
      %892 = vmatmul.bf16.gmra.mxu0 %v624
      %v893 = vpop.f32.mrf.mxu0
      %v894 = vadd.f32 %v389, %v893
      %v895 = vpop.f32.mrf.mxu0
      %v896 = vadd.f32 %v389, %v895
      %897 = vmatmul.bf16.gmra.mxu0 %v626
      %v898 = vpop.f32.mrf.mxu0
      %v899 = vadd.f32 %v389, %v898
      %v900 = vpop.f32.mrf.mxu0
      %v901 = vadd.f32 %v389, %v900
      %902 = vmatmul.bf16.gmra.mxu0 %v628
      %v903 = vpop.f32.mrf.mxu0
      %v904 = vadd.f32 %v389, %v903
      %v905 = vpop.f32.mrf.mxu0
      %v906 = vadd.f32 %v389, %v905
      %907 = vmatmul.bf16.gmra.mxu0 %v630
      %v908 = vpop.f32.mrf.mxu0
      %v909 = vadd.f32 %v389, %v908
      %v910 = vpop.f32.mrf.mxu0
      %v911 = vadd.f32 %v389, %v910
      %912 = vmatmul.bf16.gmra.mxu0 %v632
      %v913 = vpop.f32.mrf.mxu0
      %v914 = vadd.f32 %v389, %v913
      %v915 = vpop.f32.mrf.mxu0
      %v916 = vadd.f32 %v389, %v915
      %917 = vmatmul.bf16.gmra.mxu0 %v634
      %v918 = vpop.f32.mrf.mxu0
      %v919 = vadd.f32 %v389, %v918
      %v920 = vpop.f32.mrf.mxu0
      %v921 = vadd.f32 %v389, %v920
      %922 = vmatmul.bf16.gmra.mxu0 %v636
      %v923 = vpop.f32.mrf.mxu0
      %v924 = vadd.f32 %v389, %v923
      %v925 = vpop.f32.mrf.mxu0
      %v926 = vadd.f32 %v389, %v925
      %927 = vmatmul.bf16.gmra.mxu0 %v638
      %v928 = vpop.f32.mrf.mxu0
      %v929 = vadd.f32 %v389, %v928
      %v930 = vpop.f32.mrf.mxu0
      %v931 = vadd.f32 %v389, %v930
      %932 = vmatmul.bf16.gmra.mxu0 %v640
      %v933 = vpop.f32.mrf.mxu0
      %v934 = vadd.f32 %v389, %v933
      %v935 = vpop.f32.mrf.mxu0
      %v936 = vadd.f32 %v389, %v935
      %937 = vmatmul.bf16.gmra.mxu0 %v642
      %v938 = vpop.f32.mrf.mxu0
      %v939 = vadd.f32 %v389, %v938
      %v940 = vpop.f32.mrf.mxu0
      %v941 = vadd.f32 %v389, %v940
      %942 = vmatmul.bf16.gmra.mxu0 %v644
      %v943 = vpop.f32.mrf.mxu0
      %v944 = vadd.f32 %v389, %v943
      %v945 = vpop.f32.mrf.mxu0
      %v946 = vadd.f32 %v389, %v945
      %947 = vmatmul.bf16.gmra.mxu0 %v646
      %v948 = vpop.f32.mrf.mxu0
      %v949 = vadd.f32 %v389, %v948
      %v950 = vpop.f32.mrf.mxu0
      %v951 = vadd.f32 %v389, %v950
      %952 = vmatmul.bf16.gmra.mxu0 %v648
      %v953 = vpop.f32.mrf.mxu0
      %v954 = vadd.f32 %v389, %v953
      %v955 = vpop.f32.mrf.mxu0
      %v956 = vadd.f32 %v389, %v955
      %957 = vmatmul.bf16.gmra.mxu0 %v650
      %v958 = vpop.f32.mrf.mxu0
      %v959 = vadd.f32 %v389, %v958
      %v960 = vpop.f32.mrf.mxu0
      %v961 = vadd.f32 %v389, %v960
      %962 = vmatmul.bf16.gmra.mxu0 %v652
      %v963 = vpop.f32.mrf.mxu0
      %v964 = vadd.f32 %v389, %v963
      %v965 = vpop.f32.mrf.mxu0
      %v966 = vadd.f32 %v389, %v965
      %967 = vmatmul.bf16.gmra.mxu0 %v654
      %v968 = vpop.f32.mrf.mxu0
      %v969 = vadd.f32 %v389, %v968
      %v970 = vpop.f32.mrf.mxu0
      %v971 = vadd.f32 %v389, %v970
      %972 = vmatmul.bf16.gmra.mxu0 %v656
      %v973 = vpop.f32.mrf.mxu0
      %v974 = vadd.f32 %v389, %v973
      %v975 = vpop.f32.mrf.mxu0
      %v976 = vadd.f32 %v389, %v975
      %977 = vmatmul.bf16.gmra.mxu0 %v658
      %v978 = vpop.f32.mrf.mxu0
      %v979 = vadd.f32 %v389, %v978
      %v980 = vpop.f32.mrf.mxu0
      %v981 = vadd.f32 %v389, %v980
      %982 = vmatmul.bf16.gmra.mxu0 %v660
      %v983 = vpop.f32.mrf.mxu0
      %v984 = vadd.f32 %v389, %v983
      %v985 = vpop.f32.mrf.mxu0
      %v986 = vadd.f32 %v389, %v985
      %987 = vmatmul.bf16.gmra.mxu0 %v662
      %v988 = vpop.f32.mrf.mxu0
      %v989 = vadd.f32 %v389, %v988
      %v990 = vpop.f32.mrf.mxu0
      %v991 = vadd.f32 %v389, %v990
      %992 = vmatmul.bf16.gmra.mxu0 %v664
      %v993 = vpop.f32.mrf.mxu0
      %v994 = vadd.f32 %v389, %v993
      %v995 = vpop.f32.mrf.mxu0
      %v996 = vadd.f32 %v389, %v995
      %997 = vmatmul.bf16.gmra.mxu0 %v666
      %v998 = vpop.f32.mrf.mxu0
      %v999 = vadd.f32 %v389, %v998
      %v1000 = vpop.f32.mrf.mxu0
      %v1001 = vadd.f32 %v389, %v1000
      %1002 = vmatmul.bf16.gmra.mxu0 %v668
      %v1003 = vpop.f32.mrf.mxu0
      %v1004 = vadd.f32 %v389, %v1003
      %v1005 = vpop.f32.mrf.mxu0
      %v1006 = vadd.f32 %v389, %v1005
      %1007 = vmatmul.bf16.gmra.mxu0 %v670
      %v1008 = vpop.f32.mrf.mxu0
      %v1009 = vadd.f32 %v389, %v1008
      %v1010 = vpop.f32.mrf.mxu0
      %v1011 = vadd.f32 %v389, %v1010
      %1012 = vmatmul.bf16.gmra.mxu0 %v672
      %v1013 = vpop.f32.mrf.mxu0
      %v1014 = vadd.f32 %v389, %v1013
      %v1015 = vpop.f32.mrf.mxu0
      %v1016 = vadd.f32 %v389, %v1015
      %1017 = vmatmul.bf16.gmra.mxu0 %v674
      %v1018 = vpop.f32.mrf.mxu0
      %v1019 = vadd.f32 %v389, %v1018
      %v1020 = vpop.f32.mrf.mxu0
      %v1021 = vadd.f32 %v389, %v1020
      %1022 = vmatmul.bf16.gmra.mxu0 %v676
      %v1023 = vpop.f32.mrf.mxu0
      %v1024 = vadd.f32 %v389, %v1023
      %v1025 = vpop.f32.mrf.mxu0
      %v1026 = vadd.f32 %v389, %v1025
      %1027 = vmatmul.bf16.gmra.mxu0 %v678
      %v1028 = vpop.f32.mrf.mxu0
      %v1029 = vadd.f32 %v389, %v1028
      %v1030 = vpop.f32.mrf.mxu0
      %v1031 = vadd.f32 %v389, %v1030
      %1032 = vmatmul.bf16.gmra.mxu0 %v680
      %v1033 = vpop.f32.mrf.mxu0
      %v1034 = vadd.f32 %v389, %v1033
      %v1035 = vpop.f32.mrf.mxu0
      %v1036 = vadd.f32 %v389, %v1035
      %1037 = vmatmul.bf16.gmra.mxu0 %v682
      %v1038 = vpop.f32.mrf.mxu0
      %v1039 = vadd.f32 %v389, %v1038
      %v1040 = vpop.f32.mrf.mxu0
      %v1041 = vadd.f32 %v389, %v1040
      %1042 = vmatmul.bf16.gmra.mxu0 %v684
      %v1043 = vpop.f32.mrf.mxu0
      %v1044 = vadd.f32 %v389, %v1043
      %v1045 = vpop.f32.mrf.mxu0
      %v1046 = vadd.f32 %v389, %v1045
      %1047 = vmatmul.bf16.gmra.mxu0 %v686
      %v1048 = vpop.f32.mrf.mxu0
      %v1049 = vadd.f32 %v389, %v1048
      %v1050 = vpop.f32.mrf.mxu0
      %v1051 = vadd.f32 %v389, %v1050
      %1052 = vmatmul.bf16.gmra.mxu0 %v688
      %v1053 = vpop.f32.mrf.mxu0
      %v1054 = vadd.f32 %v389, %v1053
      %v1055 = vpop.f32.mrf.mxu0
      %v1056 = vadd.f32 %v389, %v1055
      %1057 = vmatmul.bf16.gmra.mxu0 %v690
      %v1058 = vpop.f32.mrf.mxu0
      %v1059 = vadd.f32 %v389, %v1058
      %v1060 = vpop.f32.mrf.mxu0
      %1061 = vdwg.mxu0
      %1062 = vmatpush.bf16.msra.mxu0 %v847
      %1063 = vmatpush.bf16.msra.mxu0 %v846
      %1064 = vmatpush.bf16.msra.mxu0 %v845
      %1065 = vmatpush.bf16.msra.mxu0 %v844
      %1066 = vmatpush.bf16.msra.mxu0 %v843
      %1067 = vmatpush.bf16.msra.mxu0 %v842
      %1068 = vmatpush.bf16.msra.mxu0 %v841
      %1069 = vmatpush.bf16.msra.mxu0 %v840
      %1070 = vmatmul.bf16.gmra.mxu0 %v617
      %v1071 = vpop.f32.mrf.mxu0
      %v1072 = vadd.f32 %v874, %v1071
      %v1073 = vpop.f32.mrf.mxu0
      %v1074 = vadd.f32 %v876, %v1073
      %1075 = vmatmul.bf16.gmra.mxu0 %v619
      %v1076 = vpop.f32.mrf.mxu0
      %v1077 = vadd.f32 %v879, %v1076
      %v1078 = vpop.f32.mrf.mxu0
      %v1079 = vadd.f32 %v881, %v1078
      %1080 = vmatmul.bf16.gmra.mxu0 %v621
      %v1081 = vpop.f32.mrf.mxu0
      %v1082 = vadd.f32 %v884, %v1081
      %v1083 = vpop.f32.mrf.mxu0
      %v1084 = vadd.f32 %v886, %v1083
      %1085 = vmatmul.bf16.gmra.mxu0 %v623
      %v1086 = vpop.f32.mrf.mxu0
      %v1087 = vadd.f32 %v889, %v1086
      %v1088 = vpop.f32.mrf.mxu0
      %v1089 = vadd.f32 %v891, %v1088
      %1090 = vmatmul.bf16.gmra.mxu0 %v625
      %v1091 = vpop.f32.mrf.mxu0
      %v1092 = vadd.f32 %v894, %v1091
      %v1093 = vpop.f32.mrf.mxu0
      %v1094 = vadd.f32 %v896, %v1093
      %1095 = vmatmul.bf16.gmra.mxu0 %v627
      %v1096 = vpop.f32.mrf.mxu0
      %v1097 = vadd.f32 %v899, %v1096
      %v1098 = vpop.f32.mrf.mxu0
      %v1099 = vadd.f32 %v901, %v1098
      %1100 = vmatmul.bf16.gmra.mxu0 %v629
      %v1101 = vpop.f32.mrf.mxu0
      %v1102 = vadd.f32 %v904, %v1101
      %v1103 = vpop.f32.mrf.mxu0
      %v1104 = vadd.f32 %v906, %v1103
      %1105 = vmatmul.bf16.gmra.mxu0 %v631
      %v1106 = vpop.f32.mrf.mxu0
      %v1107 = vadd.f32 %v909, %v1106
      %v1108 = vpop.f32.mrf.mxu0
      %v1109 = vadd.f32 %v911, %v1108
      %1110 = vmatmul.bf16.gmra.mxu0 %v633
      %v1111 = vpop.f32.mrf.mxu0
      %v1112 = vadd.f32 %v914, %v1111
      %v1113 = vpop.f32.mrf.mxu0
      %v1114 = vadd.f32 %v916, %v1113
      %1115 = vmatmul.bf16.gmra.mxu0 %v635
      %v1116 = vpop.f32.mrf.mxu0
      %v1117 = vadd.f32 %v919, %v1116
      %v1118 = vpop.f32.mrf.mxu0
      %v1119 = vadd.f32 %v921, %v1118
      %1120 = vmatmul.bf16.gmra.mxu0 %v637
      %v1121 = vpop.f32.mrf.mxu0
      %v1122 = vadd.f32 %v924, %v1121
      %v1123 = vpop.f32.mrf.mxu0
      %v1124 = vadd.f32 %v926, %v1123
      %1125 = vmatmul.bf16.gmra.mxu0 %v639
      %v1126 = vpop.f32.mrf.mxu0
      %v1127 = vadd.f32 %v929, %v1126
      %v1128 = vpop.f32.mrf.mxu0
      %v1129 = vadd.f32 %v931, %v1128
      %1130 = vmatmul.bf16.gmra.mxu0 %v641
      %v1131 = vpop.f32.mrf.mxu0
      %v1132 = vadd.f32 %v934, %v1131
      %v1133 = vpop.f32.mrf.mxu0
      %v1134 = vadd.f32 %v936, %v1133
      %1135 = vmatmul.bf16.gmra.mxu0 %v643
      %v1136 = vpop.f32.mrf.mxu0
      %v1137 = vadd.f32 %v939, %v1136
      %v1138 = vpop.f32.mrf.mxu0
      %v1139 = vadd.f32 %v941, %v1138
      %1140 = vmatmul.bf16.gmra.mxu0 %v645
      %v1141 = vpop.f32.mrf.mxu0
      %v1142 = vadd.f32 %v944, %v1141
      %v1143 = vpop.f32.mrf.mxu0
      %v1144 = vadd.f32 %v946, %v1143
      %1145 = vmatmul.bf16.gmra.mxu0 %v647
      %v1146 = vpop.f32.mrf.mxu0
      %v1147 = vadd.f32 %v949, %v1146
      %v1148 = vpop.f32.mrf.mxu0
      %v1149 = vadd.f32 %v951, %v1148
      %1150 = vmatmul.bf16.gmra.mxu0 %v649
      %v1151 = vpop.f32.mrf.mxu0
      %v1152 = vadd.f32 %v954, %v1151
      %v1153 = vpop.f32.mrf.mxu0
      %v1154 = vadd.f32 %v956, %v1153
      %1155 = vmatmul.bf16.gmra.mxu0 %v651
      %v1156 = vpop.f32.mrf.mxu0
      %v1157 = vadd.f32 %v959, %v1156
      %v1158 = vpop.f32.mrf.mxu0
      %v1159 = vadd.f32 %v961, %v1158
      %1160 = vmatmul.bf16.gmra.mxu0 %v653
      %v1161 = vpop.f32.mrf.mxu0
      %v1162 = vadd.f32 %v964, %v1161
      %v1163 = vpop.f32.mrf.mxu0
      %v1164 = vadd.f32 %v966, %v1163
      %1165 = vmatmul.bf16.gmra.mxu0 %v655
      %v1166 = vpop.f32.mrf.mxu0
      %v1167 = vadd.f32 %v969, %v1166
      %v1168 = vpop.f32.mrf.mxu0
      %v1169 = vadd.f32 %v971, %v1168
      %1170 = vmatmul.bf16.gmra.mxu0 %v657
      %v1171 = vpop.f32.mrf.mxu0
      %v1172 = vadd.f32 %v974, %v1171
      %v1173 = vpop.f32.mrf.mxu0
      %v1174 = vadd.f32 %v976, %v1173
      %1175 = vmatmul.bf16.gmra.mxu0 %v659
      %v1176 = vpop.f32.mrf.mxu0
      %v1177 = vadd.f32 %v979, %v1176
      %v1178 = vpop.f32.mrf.mxu0
      %v1179 = vadd.f32 %v981, %v1178
      %1180 = vmatmul.bf16.gmra.mxu0 %v661
      %v1181 = vpop.f32.mrf.mxu0
      %v1182 = vadd.f32 %v984, %v1181
      %v1183 = vpop.f32.mrf.mxu0
      %v1184 = vadd.f32 %v986, %v1183
      %1185 = vmatmul.bf16.gmra.mxu0 %v663
      %v1186 = vpop.f32.mrf.mxu0
      %v1187 = vadd.f32 %v989, %v1186
      %v1188 = vpop.f32.mrf.mxu0
      %v1189 = vadd.f32 %v991, %v1188
      %1190 = vmatmul.bf16.gmra.mxu0 %v665
      %v1191 = vpop.f32.mrf.mxu0
      %v1192 = vadd.f32 %v994, %v1191
      %v1193 = vpop.f32.mrf.mxu0
      %v1194 = vadd.f32 %v996, %v1193
      %1195 = vmatmul.bf16.gmra.mxu0 %v667
      %v1196 = vpop.f32.mrf.mxu0
      %v1197 = vadd.f32 %v999, %v1196
      %v1198 = vpop.f32.mrf.mxu0
      %v1199 = vadd.f32 %v1001, %v1198
      %1200 = vmatmul.bf16.gmra.mxu0 %v669
      %v1201 = vpop.f32.mrf.mxu0
      %v1202 = vadd.f32 %v1004, %v1201
      %v1203 = vpop.f32.mrf.mxu0
      %v1204 = vadd.f32 %v1006, %v1203
      %1205 = vmatmul.bf16.gmra.mxu0 %v671
      %v1206 = vpop.f32.mrf.mxu0
      %v1207 = vadd.f32 %v1009, %v1206
      %v1208 = vpop.f32.mrf.mxu0
      %v1209 = vadd.f32 %v1011, %v1208
      %1210 = vmatmul.bf16.gmra.mxu0 %v673
      %v1211 = vpop.f32.mrf.mxu0
      %v1212 = vadd.f32 %v1014, %v1211
      %v1213 = vpop.f32.mrf.mxu0
      %v1214 = vadd.f32 %v1016, %v1213
      %1215 = vmatmul.bf16.gmra.mxu0 %v675
      %v1216 = vpop.f32.mrf.mxu0
      %v1217 = vadd.f32 %v1019, %v1216
      %v1218 = vpop.f32.mrf.mxu0
      %v1219 = vadd.f32 %v1021, %v1218
      %1220 = vmatmul.bf16.gmra.mxu0 %v677
      %v1221 = vpop.f32.mrf.mxu0
      %v1222 = vadd.f32 %v1024, %v1221
      %v1223 = vpop.f32.mrf.mxu0
      %v1224 = vadd.f32 %v1026, %v1223
      %1225 = vmatmul.bf16.gmra.mxu0 %v679
      %v1226 = vpop.f32.mrf.mxu0
      %v1227 = vadd.f32 %v1029, %v1226
      %v1228 = vpop.f32.mrf.mxu0
      %v1229 = vadd.f32 %v1031, %v1228
      %1230 = vmatmul.bf16.gmra.mxu0 %v681
      %v1231 = vpop.f32.mrf.mxu0
      %v1232 = vadd.f32 %v1034, %v1231
      %v1233 = vpop.f32.mrf.mxu0
      %v1234 = vadd.f32 %v1036, %v1233
      %1235 = vmatmul.bf16.gmra.mxu0 %v683
      %v1236 = vpop.f32.mrf.mxu0
      %v1237 = vadd.f32 %v1039, %v1236
      %v1238 = vpop.f32.mrf.mxu0
      %v1239 = vadd.f32 %v1041, %v1238
      %1240 = vmatmul.bf16.gmra.mxu0 %v685
      %v1241 = vpop.f32.mrf.mxu0
      %v1242 = vadd.f32 %v1044, %v1241
      %v1243 = vpop.f32.mrf.mxu0
      %v1244 = vadd.f32 %v1046, %v1243
      %1245 = vmatmul.bf16.gmra.mxu0 %v687
      %v1246 = vpop.f32.mrf.mxu0
      %v1247 = vadd.f32 %v1049, %v1246
      %v1248 = vpop.f32.mrf.mxu0
      %v1249 = vadd.f32 %v1051, %v1248
      %1250 = vmatmul.bf16.gmra.mxu0 %v689
      %v1251 = vpop.f32.mrf.mxu0
      %v1252 = vadd.f32 %v1054, %v1251
      %v1253 = vpop.f32.mrf.mxu0
      %v1254 = vadd.f32 %v1056, %v1253
      %1255 = vmatmul.bf16.gmra.mxu0 %v691
      %v1256 = vpop.f32.mrf.mxu0
      %v1257 = vadd.f32 %v1059, %v1256
      %v1258 = vpop.f32.mrf.mxu0
      %1259 = vdwg.mxu0
      %v1260 = vmax.f32 %v1072, 0.0
      %v1261 = vmax.f32 %v1074, 0.0
      %v1262 = vmax.f32 %v1077, 0.0
      %v1263 = vmax.f32 %v1079, 0.0
      %v1264 = vmax.f32 %v1082, 0.0
      %v1265 = vmax.f32 %v1084, 0.0
      %v1266 = vmax.f32 %v1087, 0.0
      %v1267 = vmax.f32 %v1089, 0.0
      %v1268 = vmax.f32 %v1092, 0.0
      %v1269 = vmax.f32 %v1094, 0.0
      %v1270 = vmax.f32 %v1097, 0.0
      %v1271 = vmax.f32 %v1099, 0.0
      %v1272 = vmax.f32 %v1102, 0.0
      %v1273 = vmax.f32 %v1104, 0.0
      %v1274 = vmax.f32 %v1107, 0.0
      %v1275 = vmax.f32 %v1109, 0.0
      %v1276 = vmax.f32 %v1112, 0.0
      %v1277 = vmax.f32 %v1114, 0.0
      %v1278 = vmax.f32 %v1117, 0.0
      %v1279 = vmax.f32 %v1119, 0.0
      %v1280 = vmax.f32 %v1122, 0.0
      %v1281 = vmax.f32 %v1124, 0.0
      %v1282 = vmax.f32 %v1127, 0.0
      %v1283 = vmax.f32 %v1129, 0.0
      %v1284 = vmax.f32 %v1132, 0.0
      %v1285 = vmax.f32 %v1134, 0.0
      %v1286 = vmax.f32 %v1137, 0.0
      %v1287 = vmax.f32 %v1139, 0.0
      %v1288 = vmax.f32 %v1142, 0.0
      %v1289 = vmax.f32 %v1144, 0.0
      %v1290 = vmax.f32 %v1147, 0.0
      %v1291 = vmax.f32 %v1149, 0.0
      %v1292 = vmax.f32 %v1152, 0.0
      %v1293 = vmax.f32 %v1154, 0.0
      %v1294 = vmax.f32 %v1157, 0.0
      %v1295 = vmax.f32 %v1159, 0.0
      %v1296 = vmax.f32 %v1162, 0.0
      %v1297 = vmax.f32 %v1164, 0.0
      %v1298 = vmax.f32 %v1167, 0.0
      %v1299 = vmax.f32 %v1169, 0.0
      %v1300 = vmax.f32 %v1172, 0.0
      %v1301 = vmax.f32 %v1174, 0.0
      %v1302 = vmax.f32 %v1177, 0.0
      %v1303 = vmax.f32 %v1179, 0.0
      %v1304 = vmax.f32 %v1182, 0.0
      %v1305 = vmax.f32 %v1184, 0.0
      %v1306 = vmax.f32 %v1187, 0.0
      %v1307 = vmax.f32 %v1189, 0.0
      %v1308 = vmax.f32 %v1192, 0.0
      %v1309 = vmax.f32 %v1194, 0.0
      %v1310 = vmax.f32 %v1197, 0.0
      %v1311 = vmax.f32 %v1199, 0.0
      %v1312 = vmax.f32 %v1202, 0.0
      %v1313 = vmax.f32 %v1204, 0.0
      %v1314 = vmax.f32 %v1207, 0.0
      %v1315 = vmax.f32 %v1209, 0.0
      %v1316 = vmax.f32 %v1212, 0.0
      %v1317 = vmax.f32 %v1214, 0.0
      %v1318 = vmax.f32 %v1217, 0.0
      %v1319 = vmax.f32 %v1219, 0.0
      %v1320 = vmax.f32 %v1222, 0.0
      %v1321 = vmax.f32 %v1224, 0.0
      %v1322 = vmax.f32 %v1227, 0.0
      %v1323 = vmax.f32 %v1229, 0.0
      %v1324 = vmax.f32 %v1232, 0.0
      %v1325 = vmax.f32 %v1234, 0.0
      %v1326 = vmax.f32 %v1237, 0.0
      %v1327 = vmax.f32 %v1239, 0.0
      %v1328 = vmax.f32 %v1242, 0.0
      %v1329 = vmax.f32 %v1244, 0.0
      %v1330 = vmax.f32 %v1247, 0.0
      %v1331 = vmax.f32 %v1249, 0.0
      %v1332 = vmax.f32 %v1252, 0.0
      %v1333 = vmax.f32 %v1254, 0.0
      %v1334 = vmax.f32 %v1257, 0.0
      %v1335 = vpack.c.bf16 %v1260, %v1260
      %v1336 = vpack.c.bf16 %v1261, %v1261
      %v1337 = vpack.c.bf16 %v1262, %v1262
      %v1338 = vpack.c.bf16 %v1263, %v1263
      %v1339 = vpack.c.bf16 %v1264, %v1264
      %v1340 = vpack.c.bf16 %v1265, %v1265
      %v1341 = vpack.c.bf16 %v1266, %v1266
      %v1342 = vpack.c.bf16 %v1267, %v1267
      %v1343 = vpack.c.bf16 %v1268, %v1268
      %v1344 = vpack.c.bf16 %v1269, %v1269
      %v1345 = vpack.c.bf16 %v1270, %v1270
      %v1346 = vpack.c.bf16 %v1271, %v1271
      %v1347 = vpack.c.bf16 %v1272, %v1272
      %v1348 = vpack.c.bf16 %v1273, %v1273
      %v1349 = vpack.c.bf16 %v1274, %v1274
      %v1350 = vpack.c.bf16 %v1275, %v1275
      %v1351 = vpack.c.bf16 %v1276, %v1276
      %v1352 = vpack.c.bf16 %v1277, %v1277
      %v1353 = vpack.c.bf16 %v1278, %v1278
      %v1354 = vpack.c.bf16 %v1279, %v1279
      %v1355 = vpack.c.bf16 %v1280, %v1280
      %v1356 = vpack.c.bf16 %v1281, %v1281
      %v1357 = vpack.c.bf16 %v1282, %v1282
      %v1358 = vpack.c.bf16 %v1283, %v1283
      %v1359 = vpack.c.bf16 %v1284, %v1284
      %v1360 = vpack.c.bf16 %v1285, %v1285
      %v1361 = vpack.c.bf16 %v1286, %v1286
      %v1362 = vpack.c.bf16 %v1287, %v1287
      %v1363 = vpack.c.bf16 %v1288, %v1288
      %v1364 = vpack.c.bf16 %v1289, %v1289
      %v1365 = vpack.c.bf16 %v1290, %v1290
      %v1366 = vpack.c.bf16 %v1291, %v1291
      %v1367 = vpack.c.bf16 %v1292, %v1292
      %v1368 = vpack.c.bf16 %v1293, %v1293
      %v1369 = vpack.c.bf16 %v1294, %v1294
      %v1370 = vpack.c.bf16 %v1295, %v1295
      %v1371 = vpack.c.bf16 %v1296, %v1296
      %v1372 = vpack.c.bf16 %v1297, %v1297
      %v1373 = vpack.c.bf16 %v1298, %v1298
      %v1374 = vpack.c.bf16 %v1299, %v1299
      %v1375 = vpack.c.bf16 %v1300, %v1300
      %v1376 = vpack.c.bf16 %v1301, %v1301
      %v1377 = vpack.c.bf16 %v1302, %v1302
      %v1378 = vpack.c.bf16 %v1303, %v1303
      %v1379 = vpack.c.bf16 %v1304, %v1304
      %v1380 = vpack.c.bf16 %v1305, %v1305
      %v1381 = vpack.c.bf16 %v1306, %v1306
      %v1382 = vpack.c.bf16 %v1307, %v1307
      %v1383 = vpack.c.bf16 %v1308, %v1308
      %v1384 = vpack.c.bf16 %v1309, %v1309
      %v1385 = vpack.c.bf16 %v1310, %v1310
      %v1386 = vpack.c.bf16 %v1311, %v1311
      %v1387 = vpack.c.bf16 %v1312, %v1312
      %v1388 = vpack.c.bf16 %v1313, %v1313
      %v1389 = vpack.c.bf16 %v1314, %v1314
      %v1390 = vpack.c.bf16 %v1315, %v1315
      %v1391 = vpack.c.bf16 %v1316, %v1316
      %v1392 = vpack.c.bf16 %v1317, %v1317
      %v1393 = vpack.c.bf16 %v1318, %v1318
      %v1394 = vpack.c.bf16 %v1319, %v1319
      %v1395 = vpack.c.bf16 %v1320, %v1320
      %v1396 = vpack.c.bf16 %v1321, %v1321
      %v1397 = vpack.c.bf16 %v1322, %v1322
      %v1398 = vpack.c.bf16 %v1323, %v1323
      %v1399 = vpack.c.bf16 %v1324, %v1324
      %v1400 = vpack.c.bf16 %v1325, %v1325
      %v1401 = vpack.c.bf16 %v1326, %v1326
      %v1402 = vpack.c.bf16 %v1327, %v1327
      %v1403 = vpack.c.bf16 %v1328, %v1328
      %v1404 = vpack.c.bf16 %v1329, %v1329
      %v1405 = vpack.c.bf16 %v1330, %v1330
      %v1406 = vpack.c.bf16 %v1331, %v1331
      %v1407 = vpack.c.bf16 %v1332, %v1332
      %v1408 = vpack.c.bf16 %v1333, %v1333
      %v1409 = vpack.c.bf16 %v1334, %v1334
      %v1410 = vld [vmem:[%s3] sm:$0xf]
      %v1411 = vld [vmem:[%s3 + $0x4] sm:$0xf]
      %v1412 = vld [vmem:[%s3 + $0x8] sm:$0xf]
      %v1413 = vld [vmem:[%s3 + $0xc] sm:$0xf]
      %s1414 = scalar_lea.vmem %s3, 16
      %v1415 = vld [vmem:[%s1414] sm:$0xf]
      %v1416 = vld [vmem:[%s1414 + $0x4] sm:$0xf]
      %v1417 = vld [vmem:[%s1414 + $0x8] sm:$0xf]
      %v1418 = vld [vmem:[%s1414 + $0xc] sm:$0xf]
      %v1439 = vunpack.c.l.b16 %v1353
      %v1440 = vunpack.c.l.b16 %v1354
      %v1441 = vunpack.c.l.b16 %v1355
      %v1442 = vunpack.c.l.b16 %v1356
      %v1443 = vunpack.c.l.b16 %v1357
      %v1444 = vunpack.c.l.b16 %v1358
      %v1445 = vunpack.c.l.b16 %v1359
      %v1446 = vunpack.c.l.b16 %v1360
      %v1447 = vunpack.c.l.b16 %v1361
      %v1448 = vunpack.c.l.b16 %v1362
      %v1449 = vunpack.c.l.b16 %v1363
      %v1450 = vunpack.c.l.b16 %v1364
      %v1451 = vunpack.c.l.b16 %v1365
      %v1452 = vunpack.c.l.b16 %v1366
      %v1453 = vunpack.c.l.b16 %v1367
      %v1454 = vunpack.c.l.b16 %v1368
      %v1455 = vunpack.c.l.b16 %v1369
      %v1456 = vunpack.c.l.b16 %v1370
      %v1457 = vunpack.c.l.b16 %v1371
      %v1458 = vunpack.c.l.b16 %v1372
      %v1459 = vpack.c.b16 %v1440, %v1439
      %v1460 = vpack.c.b16 %v1442, %v1441
      %v1461 = vpack.c.b16 %v1444, %v1443
      %v1462 = vpack.c.b16 %v1446, %v1445
      %v1463 = vpack.c.b16 %v1448, %v1447
      %v1464 = vpack.c.b16 %v1450, %v1449
      %v1465 = vpack.c.b16 %v1452, %v1451
      %v1466 = vpack.c.b16 %v1454, %v1453
      %v1467 = vpack.c.b16 %v1456, %v1455
      %v1468 = vpack.c.b16 %v1458, %v1457
      %v1473 = vunpack.c.l.b16 %v1415
      %v1474 = vunpack.c.l.b16 %v1416
      %v1475 = vunpack.c.l.b16 %v1417
      %v1476 = vunpack.c.l.b16 %v1418
      %v1477 = vpack.c.b16 %v1474, %v1473
      %v1478 = vpack.c.b16 %v1476, %v1475
      %vm1481 = vcmask 261120
      %v1483 = vsel %vm1481, %v1459, 0
      %v1486 = vsel %vm1481, %v1460, 0
      %v1489 = vsel %vm1481, %v1461, 0
      %v1492 = vsel %vm1481, %v1462, 0
      %v1495 = vsel %vm1481, %v1463, 0
      %v1498 = vsel %vm1481, %v1464, 0
      %v1501 = vsel %vm1481, %v1465, 0
      %v1504 = vsel %vm1481, %v1466, 0
      %v1507 = vsel %vm1481, %v1467, 0
      %v1510 = vsel %vm1481, %v1468, 0
      %1512 = vmatpush.bf16.msra.mxu0 0
      %1513 = vmatpush.bf16.msra.mxu0 0
      %1514 = vmatpush.bf16.msra.mxu0 0
      %1515 = vmatpush.bf16.msra.mxu0 0
      %1516 = vmatpush.bf16.msra.mxu0 0
      %1517 = vmatpush.bf16.msra.mxu0 0
      %1518 = vmatpush.bf16.msra.mxu0 %v1478
      %1519 = vmatpush.bf16.msra.mxu0 %v1477
      %1520 = vmatmul.bf16.gmra.mxu0 %v1483
      %v1521 = vpop.f32.mrf.mxu0
      %v1522 = vadd.f32 0.0, %v1521
      %v1523 = vpop.f32.mrf.mxu0
      %v1524 = vadd.f32 0.0, %v1523
      %1525 = vmatmul.bf16.gmra.mxu0 %v1486
      %v1526 = vpop.f32.mrf.mxu0
      %v1527 = vadd.f32 0.0, %v1526
      %v1528 = vpop.f32.mrf.mxu0
      %v1529 = vadd.f32 0.0, %v1528
      %1530 = vmatmul.bf16.gmra.mxu0 %v1489
      %v1531 = vpop.f32.mrf.mxu0
      %v1532 = vadd.f32 0.0, %v1531
      %v1533 = vpop.f32.mrf.mxu0
      %v1534 = vadd.f32 0.0, %v1533
      %1535 = vmatmul.bf16.gmra.mxu0 %v1492
      %v1536 = vpop.f32.mrf.mxu0
      %v1537 = vadd.f32 0.0, %v1536
      %v1538 = vpop.f32.mrf.mxu0
      %v1539 = vadd.f32 0.0, %v1538
      %1540 = vmatmul.bf16.gmra.mxu0 %v1495
      %v1541 = vpop.f32.mrf.mxu0
      %v1542 = vadd.f32 0.0, %v1541
      %v1543 = vpop.f32.mrf.mxu0
      %v1544 = vadd.f32 0.0, %v1543
      %1545 = vmatmul.bf16.gmra.mxu0 %v1498
      %v1546 = vpop.f32.mrf.mxu0
      %v1547 = vadd.f32 0.0, %v1546
      %v1548 = vpop.f32.mrf.mxu0
      %v1549 = vadd.f32 0.0, %v1548
      %1550 = vmatmul.bf16.gmra.mxu0 %v1501
      %v1551 = vpop.f32.mrf.mxu0
      %v1552 = vadd.f32 0.0, %v1551
      %v1553 = vpop.f32.mrf.mxu0
      %v1554 = vadd.f32 0.0, %v1553
      %1555 = vmatmul.bf16.gmra.mxu0 %v1504
      %v1556 = vpop.f32.mrf.mxu0
      %v1557 = vadd.f32 0.0, %v1556
      %v1558 = vpop.f32.mrf.mxu0
      %v1559 = vadd.f32 0.0, %v1558
      %1560 = vmatmul.bf16.gmra.mxu0 %v1507
      %v1561 = vpop.f32.mrf.mxu0
      %v1562 = vadd.f32 0.0, %v1561
      %v1563 = vpop.f32.mrf.mxu0
      %v1564 = vadd.f32 0.0, %v1563
      %1565 = vmatmul.bf16.gmra.mxu0 %v1510
      %v1566 = vpop.f32.mrf.mxu0
      %v1567 = vadd.f32 0.0, %v1566
      %v1568 = vpop.f32.mrf.mxu0
      %v1569 = vadd.f32 0.0, %v1568
      %1570 = vdwg.mxu0
      %v1589 = vunpack.c.l.b16 %v1335
      %v1590 = vunpack.c.l.b16 %v1336
      %v1591 = vunpack.c.l.b16 %v1337
      %v1592 = vunpack.c.l.b16 %v1338
      %v1593 = vunpack.c.l.b16 %v1339
      %v1594 = vunpack.c.l.b16 %v1340
      %v1595 = vunpack.c.l.b16 %v1341
      %v1596 = vunpack.c.l.b16 %v1342
      %v1597 = vunpack.c.l.b16 %v1343
      %v1598 = vunpack.c.l.b16 %v1344
      %v1599 = vunpack.c.l.b16 %v1345
      %v1600 = vunpack.c.l.b16 %v1346
      %v1601 = vunpack.c.l.b16 %v1347
      %v1602 = vunpack.c.l.b16 %v1348
      %v1603 = vunpack.c.l.b16 %v1349
      %v1604 = vunpack.c.l.b16 %v1350
      %v1605 = vunpack.c.l.b16 %v1351
      %v1606 = vunpack.c.l.b16 %v1352
      %v1607 = vpack.c.b16 %v1590, %v1589
      %v1608 = vpack.c.b16 %v1592, %v1591
      %v1609 = vpack.c.b16 %v1594, %v1593
      %v1610 = vpack.c.b16 %v1596, %v1595
      %v1611 = vpack.c.b16 %v1598, %v1597
      %v1612 = vpack.c.b16 %v1600, %v1599
      %v1613 = vpack.c.b16 %v1602, %v1601
      %v1614 = vpack.c.b16 %v1604, %v1603
      %v1615 = vpack.c.b16 %v1606, %v1605
      %v1620 = vunpack.c.l.b16 %v1410
      %v1621 = vunpack.c.l.b16 %v1411
      %v1622 = vunpack.c.l.b16 %v1412
      %v1623 = vunpack.c.l.b16 %v1413
      %v1624 = vpack.c.b16 %v1621, %v1620
      %v1625 = vpack.c.b16 %v1623, %v1622
      %v1629 = vsel %vm1481, %v1607, 0
      %v1632 = vsel %vm1481, %v1608, 0
      %v1635 = vsel %vm1481, %v1609, 0
      %v1638 = vsel %vm1481, %v1610, 0
      %v1641 = vsel %vm1481, %v1611, 0
      %v1644 = vsel %vm1481, %v1612, 0
      %v1647 = vsel %vm1481, %v1613, 0
      %v1650 = vsel %vm1481, %v1614, 0
      %v1653 = vsel %vm1481, %v1615, 0
      %1655 = vmatpush.bf16.msra.mxu0 0
      %1656 = vmatpush.bf16.msra.mxu0 0
      %1657 = vmatpush.bf16.msra.mxu0 0
      %1658 = vmatpush.bf16.msra.mxu0 0
      %1659 = vmatpush.bf16.msra.mxu0 0
      %1660 = vmatpush.bf16.msra.mxu0 0
      %1661 = vmatpush.bf16.msra.mxu0 %v1625
      %1662 = vmatpush.bf16.msra.mxu0 %v1624
      %1663 = vmatmul.bf16.gmra.mxu0 %v1629
      %v1664 = vpop.f32.mrf.mxu0
      %v1665 = vadd.f32 %v1522, %v1664
      %v1666 = vpop.f32.mrf.mxu0
      %v1667 = vadd.f32 %v1524, %v1666
      %1668 = vmatmul.bf16.gmra.mxu0 %v1632
      %v1669 = vpop.f32.mrf.mxu0
      %v1670 = vadd.f32 %v1527, %v1669
      %v1671 = vpop.f32.mrf.mxu0
      %v1672 = vadd.f32 %v1529, %v1671
      %1673 = vmatmul.bf16.gmra.mxu0 %v1635
      %v1674 = vpop.f32.mrf.mxu0
      %v1675 = vadd.f32 %v1532, %v1674
      %v1676 = vpop.f32.mrf.mxu0
      %v1677 = vadd.f32 %v1534, %v1676
      %1678 = vmatmul.bf16.gmra.mxu0 %v1638
      %v1679 = vpop.f32.mrf.mxu0
      %v1680 = vadd.f32 %v1537, %v1679
      %v1681 = vpop.f32.mrf.mxu0
      %v1682 = vadd.f32 %v1539, %v1681
      %1683 = vmatmul.bf16.gmra.mxu0 %v1641
      %v1684 = vpop.f32.mrf.mxu0
      %v1685 = vadd.f32 %v1542, %v1684
      %v1686 = vpop.f32.mrf.mxu0
      %v1687 = vadd.f32 %v1544, %v1686
      %1688 = vmatmul.bf16.gmra.mxu0 %v1644
      %v1689 = vpop.f32.mrf.mxu0
      %v1690 = vadd.f32 %v1547, %v1689
      %v1691 = vpop.f32.mrf.mxu0
      %v1692 = vadd.f32 %v1549, %v1691
      %1693 = vmatmul.bf16.gmra.mxu0 %v1647
      %v1694 = vpop.f32.mrf.mxu0
      %v1695 = vadd.f32 %v1552, %v1694
      %v1696 = vpop.f32.mrf.mxu0
      %v1697 = vadd.f32 %v1554, %v1696
      %1698 = vmatmul.bf16.gmra.mxu0 %v1650
      %v1699 = vpop.f32.mrf.mxu0
      %v1700 = vadd.f32 %v1557, %v1699
      %v1701 = vpop.f32.mrf.mxu0
      %v1702 = vadd.f32 %v1559, %v1701
      %1703 = vmatmul.bf16.gmra.mxu0 %v1653
      %v1704 = vpop.f32.mrf.mxu0
      %v1705 = vadd.f32 %v1562, %v1704
      %v1706 = vpop.f32.mrf.mxu0
      %v1707 = vadd.f32 %v1564, %v1706
      %1708 = vmatmul.bf16.gmra.mxu0 %v1483
      %v1709 = vpop.f32.mrf.mxu0
      %v1710 = vadd.f32 %v1567, %v1709
      %v1711 = vpop.f32.mrf.mxu0
      %v1712 = vadd.f32 %v1569, %v1711
      %1713 = vdwg.mxu0
      %s1714 = scalar_lea.vmem %s3, 32
      %v1715 = vld [vmem:[%s1714] sm:$0xf]
      %v1716 = vld [vmem:[%s1714 + $0x4] sm:$0xf]
      %v1717 = vld [vmem:[%s1714 + $0x8] sm:$0xf]
      %v1718 = vld [vmem:[%s1714 + $0xc] sm:$0xf]
      %vm1719 = vsmask.f32 7424
      %v1720 = vshrl.u32 %v1607, 16
      %v1722 = vshll.u32 %v1607, 16
      %v1724 = vrot.slane %v1722, 1
      %v1725 = vor.u32 %v1720, %v1724
      %v1726 = vshll.u32 %v1608, 16
      %v1728 = vrot.slane %v1726, 1
      %v1729 = vsel %vm1719, %v1725, %v1728
      %v1730 = vshrl.u32 %v1608, 16
      %v1732 = vor.u32 %v1730, %v1728
      %v1733 = vshll.u32 %v1609, 16
      %v1735 = vrot.slane %v1733, 1
      %v1736 = vsel %vm1719, %v1732, %v1735
      %v1737 = vshrl.u32 %v1609, 16
      %v1739 = vor.u32 %v1737, %v1735
      %v1740 = vshll.u32 %v1610, 16
      %v1742 = vrot.slane %v1740, 1
      %v1743 = vsel %vm1719, %v1739, %v1742
      %v1744 = vshrl.u32 %v1610, 16
      %v1746 = vor.u32 %v1744, %v1742
      %v1747 = vshll.u32 %v1611, 16
      %v1749 = vrot.slane %v1747, 1
      %v1750 = vsel %vm1719, %v1746, %v1749
      %v1751 = vshrl.u32 %v1611, 16
      %v1753 = vor.u32 %v1751, %v1749
      %v1754 = vshll.u32 %v1612, 16
      %v1756 = vrot.slane %v1754, 1
      %v1757 = vsel %vm1719, %v1753, %v1756
      %v1758 = vshrl.u32 %v1612, 16
      %v1760 = vor.u32 %v1758, %v1756
      %v1761 = vshll.u32 %v1613, 16
      %v1763 = vrot.slane %v1761, 1
      %v1764 = vsel %vm1719, %v1760, %v1763
      %v1765 = vshrl.u32 %v1613, 16
      %v1767 = vor.u32 %v1765, %v1763
      %v1768 = vshll.u32 %v1614, 16
      %v1770 = vrot.slane %v1768, 1
      %v1771 = vsel %vm1719, %v1767, %v1770
      %v1772 = vshrl.u32 %v1614, 16
      %v1774 = vor.u32 %v1772, %v1770
      %v1775 = vshll.u32 %v1615, 16
      %v1777 = vrot.slane %v1775, 1
      %v1778 = vsel %vm1719, %v1774, %v1777
      %v1779 = vshrl.u32 %v1615, 16
      %v1781 = vor.u32 %v1779, %v1777
      %v1782 = vshll.u32 %v1459, 16
      %v1784 = vrot.slane %v1782, 1
      %v1785 = vsel %vm1719, %v1781, %v1784
      %v1786 = vshrl.u32 %v1459, 16
      %v1788 = vor.u32 %v1786, %v1784
      %v1793 = vunpack.c.l.b16 %v1715
      %v1794 = vunpack.c.l.b16 %v1716
      %v1795 = vunpack.c.l.b16 %v1717
      %v1796 = vunpack.c.l.b16 %v1718
      %v1797 = vpack.c.b16 %v1794, %v1793
      %v1798 = vpack.c.b16 %v1796, %v1795
      %v1802 = vsel %vm1481, %v1729, 0
      %v1805 = vsel %vm1481, %v1736, 0
      %v1808 = vsel %vm1481, %v1743, 0
      %v1811 = vsel %vm1481, %v1750, 0
      %v1814 = vsel %vm1481, %v1757, 0
      %v1817 = vsel %vm1481, %v1764, 0
      %v1820 = vsel %vm1481, %v1771, 0
      %v1823 = vsel %vm1481, %v1778, 0
      %v1826 = vsel %vm1481, %v1785, 0
      %v1829 = vsel %vm1481, %v1788, 0
      %1831 = vmatpush.bf16.msra.mxu0 0
      %1832 = vmatpush.bf16.msra.mxu0 0
      %1833 = vmatpush.bf16.msra.mxu0 0
      %1834 = vmatpush.bf16.msra.mxu0 0
      %1835 = vmatpush.bf16.msra.mxu0 0
      %1836 = vmatpush.bf16.msra.mxu0 0
      %1837 = vmatpush.bf16.msra.mxu0 %v1798
      %1838 = vmatpush.bf16.msra.mxu0 %v1797
      %1839 = vmatmul.bf16.gmra.mxu0 %v1802
      %v1840 = vpop.f32.mrf.mxu0
      %v1841 = vadd.f32 0.0, %v1840
      %v1842 = vpop.f32.mrf.mxu0
      %v1843 = vadd.f32 0.0, %v1842
      %1844 = vmatmul.bf16.gmra.mxu0 %v1805
      %v1845 = vpop.f32.mrf.mxu0
      %v1846 = vadd.f32 0.0, %v1845
      %v1847 = vpop.f32.mrf.mxu0
      %v1848 = vadd.f32 0.0, %v1847
      %1849 = vmatmul.bf16.gmra.mxu0 %v1808
      %v1850 = vpop.f32.mrf.mxu0
      %v1851 = vadd.f32 0.0, %v1850
      %v1852 = vpop.f32.mrf.mxu0
      %v1853 = vadd.f32 0.0, %v1852
      %1854 = vmatmul.bf16.gmra.mxu0 %v1811
      %v1855 = vpop.f32.mrf.mxu0
      %v1856 = vadd.f32 0.0, %v1855
      %v1857 = vpop.f32.mrf.mxu0
      %v1858 = vadd.f32 0.0, %v1857
      %1859 = vmatmul.bf16.gmra.mxu0 %v1814
      %v1860 = vpop.f32.mrf.mxu0
      %v1861 = vadd.f32 0.0, %v1860
      %v1862 = vpop.f32.mrf.mxu0
      %v1863 = vadd.f32 0.0, %v1862
      %1864 = vmatmul.bf16.gmra.mxu0 %v1817
      %v1865 = vpop.f32.mrf.mxu0
      %v1866 = vadd.f32 0.0, %v1865
      %v1867 = vpop.f32.mrf.mxu0
      %v1868 = vadd.f32 0.0, %v1867
      %1869 = vmatmul.bf16.gmra.mxu0 %v1820
      %v1870 = vpop.f32.mrf.mxu0
      %v1871 = vadd.f32 0.0, %v1870
      %v1872 = vpop.f32.mrf.mxu0
      %v1873 = vadd.f32 0.0, %v1872
      %1874 = vmatmul.bf16.gmra.mxu0 %v1823
      %v1875 = vpop.f32.mrf.mxu0
      %v1876 = vadd.f32 0.0, %v1875
      %v1877 = vpop.f32.mrf.mxu0
      %v1878 = vadd.f32 0.0, %v1877
      %1879 = vmatmul.bf16.gmra.mxu0 %v1826
      %v1880 = vpop.f32.mrf.mxu0
      %v1881 = vadd.f32 0.0, %v1880
      %v1882 = vpop.f32.mrf.mxu0
      %v1883 = vadd.f32 0.0, %v1882
      %1884 = vmatmul.bf16.gmra.mxu0 %v1829
      %v1885 = vpop.f32.mrf.mxu0
      %v1886 = vadd.f32 0.0, %v1885
      %v1887 = vpop.f32.mrf.mxu0
      %v1888 = vadd.f32 0.0, %v1887
      %1889 = vdwg.mxu0
      %v1890 = vadd.f32 %v1665, %v1841
      %v1891 = vadd.f32 %v1667, %v1843
      %v1892 = vadd.f32 %v1670, %v1846
      %v1893 = vadd.f32 %v1672, %v1848
      %v1894 = vadd.f32 %v1675, %v1851
      %v1895 = vadd.f32 %v1677, %v1853
      %v1896 = vadd.f32 %v1680, %v1856
      %v1897 = vadd.f32 %v1682, %v1858
      %v1898 = vadd.f32 %v1685, %v1861
      %v1899 = vadd.f32 %v1687, %v1863
      %v1900 = vadd.f32 %v1690, %v1866
      %v1901 = vadd.f32 %v1692, %v1868
      %v1902 = vadd.f32 %v1695, %v1871
      %v1903 = vadd.f32 %v1697, %v1873
      %v1904 = vadd.f32 %v1700, %v1876
      %v1905 = vadd.f32 %v1702, %v1878
      %v1906 = vadd.f32 %v1705, %v1881
      %v1907 = vadd.f32 %v1707, %v1883
      %v1908 = vadd.f32 %v1710, %v1886
      %v1909 = vadd.f32 %v1712, %v1888
      %s1910 = scalar_lea.vmem %s3, 48
      %v1911 = vld [vmem:[%s1910] sm:$0xf]
      %v1912 = vld [vmem:[%s1910 + $0x4] sm:$0xf]
      %v1913 = vld [vmem:[%s1910 + $0x8] sm:$0xf]
      %v1914 = vld [vmem:[%s1910 + $0xc] sm:$0xf]
      %v1915 = vshll.u32 %v1460, 16
      %v1917 = vrot.slane %v1915, 1
      %v1918 = vsel %vm1719, %v1788, %v1917
      %v1919 = vshrl.u32 %v1460, 16
      %v1921 = vor.u32 %v1919, %v1917
      %v1922 = vshll.u32 %v1461, 16
      %v1924 = vrot.slane %v1922, 1
      %v1925 = vsel %vm1719, %v1921, %v1924
      %v1926 = vshrl.u32 %v1461, 16
      %v1928 = vor.u32 %v1926, %v1924
      %v1929 = vshll.u32 %v1462, 16
      %v1931 = vrot.slane %v1929, 1
      %v1932 = vsel %vm1719, %v1928, %v1931
      %v1933 = vshrl.u32 %v1462, 16
      %v1935 = vor.u32 %v1933, %v1931
      %v1936 = vshll.u32 %v1463, 16
      %v1938 = vrot.slane %v1936, 1
      %v1939 = vsel %vm1719, %v1935, %v1938
      %v1940 = vshrl.u32 %v1463, 16
      %v1942 = vor.u32 %v1940, %v1938
      %v1943 = vshll.u32 %v1464, 16
      %v1945 = vrot.slane %v1943, 1
      %v1946 = vsel %vm1719, %v1942, %v1945
      %v1947 = vshrl.u32 %v1464, 16
      %v1949 = vor.u32 %v1947, %v1945
      %v1950 = vshll.u32 %v1465, 16
      %v1952 = vrot.slane %v1950, 1
      %v1953 = vsel %vm1719, %v1949, %v1952
      %v1954 = vshrl.u32 %v1465, 16
      %v1956 = vor.u32 %v1954, %v1952
      %v1957 = vshll.u32 %v1466, 16
      %v1959 = vrot.slane %v1957, 1
      %v1960 = vsel %vm1719, %v1956, %v1959
      %v1961 = vshrl.u32 %v1466, 16
      %v1963 = vor.u32 %v1961, %v1959
      %v1964 = vshll.u32 %v1467, 16
      %v1966 = vrot.slane %v1964, 1
      %v1967 = vsel %vm1719, %v1963, %v1966
      %v1968 = vshrl.u32 %v1467, 16
      %v1970 = vor.u32 %v1968, %v1966
      %v1971 = vshll.u32 %v1468, 16
      %v1973 = vrot.slane %v1971, 1
      %v1974 = vsel %vm1719, %v1970, %v1973
      %v1975 = vshrl.u32 %v1468, 16
      %v1977 = vor.u32 %v1975, %v1973
      %v1982 = vunpack.c.l.b16 %v1911
      %v1983 = vunpack.c.l.b16 %v1912
      %v1984 = vunpack.c.l.b16 %v1913
      %v1985 = vunpack.c.l.b16 %v1914
      %v1986 = vpack.c.b16 %v1983, %v1982
      %v1987 = vpack.c.b16 %v1985, %v1984
      %v1991 = vsel %vm1481, %v1918, 0
      %v1994 = vsel %vm1481, %v1925, 0
      %v1997 = vsel %vm1481, %v1932, 0
      %v2000 = vsel %vm1481, %v1939, 0
      %v2003 = vsel %vm1481, %v1946, 0
      %v2006 = vsel %vm1481, %v1953, 0
      %v2009 = vsel %vm1481, %v1960, 0
      %v2012 = vsel %vm1481, %v1967, 0
      %v2015 = vsel %vm1481, %v1974, 0
      %v2018 = vsel %vm1481, %v1977, 0
      %2020 = vmatpush.bf16.msra.mxu0 0
      %2021 = vmatpush.bf16.msra.mxu0 0
      %2022 = vmatpush.bf16.msra.mxu0 0
      %2023 = vmatpush.bf16.msra.mxu0 0
      %2024 = vmatpush.bf16.msra.mxu0 0
      %2025 = vmatpush.bf16.msra.mxu0 0
      %2026 = vmatpush.bf16.msra.mxu0 %v1987
      %2027 = vmatpush.bf16.msra.mxu0 %v1986
      %2028 = vmatmul.bf16.gmra.mxu0 %v1991
      %v2029 = vpop.f32.mrf.mxu0
      %v2030 = vadd.f32 0.0, %v2029
      %v2031 = vpop.f32.mrf.mxu0
      %v2032 = vadd.f32 0.0, %v2031
      %2033 = vmatmul.bf16.gmra.mxu0 %v1994
      %v2034 = vpop.f32.mrf.mxu0
      %v2035 = vadd.f32 0.0, %v2034
      %v2036 = vpop.f32.mrf.mxu0
      %v2037 = vadd.f32 0.0, %v2036
      %2038 = vmatmul.bf16.gmra.mxu0 %v1997
      %v2039 = vpop.f32.mrf.mxu0
      %v2040 = vadd.f32 0.0, %v2039
      %v2041 = vpop.f32.mrf.mxu0
      %v2042 = vadd.f32 0.0, %v2041
      %2043 = vmatmul.bf16.gmra.mxu0 %v2000
      %v2044 = vpop.f32.mrf.mxu0
      %v2045 = vadd.f32 0.0, %v2044
      %v2046 = vpop.f32.mrf.mxu0
      %v2047 = vadd.f32 0.0, %v2046
      %2048 = vmatmul.bf16.gmra.mxu0 %v2003
      %v2049 = vpop.f32.mrf.mxu0
      %v2050 = vadd.f32 0.0, %v2049
      %v2051 = vpop.f32.mrf.mxu0
      %v2052 = vadd.f32 0.0, %v2051
      %2053 = vmatmul.bf16.gmra.mxu0 %v2006
      %v2054 = vpop.f32.mrf.mxu0
      %v2055 = vadd.f32 0.0, %v2054
      %v2056 = vpop.f32.mrf.mxu0
      %v2057 = vadd.f32 0.0, %v2056
      %2058 = vmatmul.bf16.gmra.mxu0 %v2009
      %v2059 = vpop.f32.mrf.mxu0
      %v2060 = vadd.f32 0.0, %v2059
      %v2061 = vpop.f32.mrf.mxu0
      %v2062 = vadd.f32 0.0, %v2061
      %2063 = vmatmul.bf16.gmra.mxu0 %v2012
      %v2064 = vpop.f32.mrf.mxu0
      %v2065 = vadd.f32 0.0, %v2064
      %v2066 = vpop.f32.mrf.mxu0
      %v2067 = vadd.f32 0.0, %v2066
      %2068 = vmatmul.bf16.gmra.mxu0 %v2015
      %v2069 = vpop.f32.mrf.mxu0
      %v2070 = vadd.f32 0.0, %v2069
      %v2071 = vpop.f32.mrf.mxu0
      %v2072 = vadd.f32 0.0, %v2071
      %2073 = vmatmul.bf16.gmra.mxu0 %v2018
      %v2074 = vpop.f32.mrf.mxu0
      %v2075 = vadd.f32 0.0, %v2074
      %v2076 = vpop.f32.mrf.mxu0
      %v2077 = vadd.f32 0.0, %v2076
      %2078 = vdwg.mxu0
      %v2079 = vadd.f32 %v1890, %v2030
      %v2080 = vadd.f32 %v1891, %v2032
      %v2081 = vadd.f32 %v1892, %v2035
      %v2082 = vadd.f32 %v1893, %v2037
      %v2083 = vadd.f32 %v1894, %v2040
      %v2084 = vadd.f32 %v1895, %v2042
      %v2085 = vadd.f32 %v1896, %v2045
      %v2086 = vadd.f32 %v1897, %v2047
      %v2087 = vadd.f32 %v1898, %v2050
      %v2088 = vadd.f32 %v1899, %v2052
      %v2089 = vadd.f32 %v1900, %v2055
      %v2090 = vadd.f32 %v1901, %v2057
      %v2091 = vadd.f32 %v1902, %v2060
      %v2092 = vadd.f32 %v1903, %v2062
      %v2093 = vadd.f32 %v1904, %v2065
      %v2094 = vadd.f32 %v1905, %v2067
      %v2095 = vadd.f32 %v1906, %v2070
      %v2096 = vadd.f32 %v1907, %v2072
      %v2097 = vadd.f32 %v1908, %v2075
      %v2098 = vadd.f32 %v1909, %v2077
      %s2099 = scalar_lea.vmem %s3, 64
      %v2100 = vld [vmem:[%s2099] sm:$0xf]
      %v2101 = vld [vmem:[%s2099 + $0x4] sm:$0xf]
      %v2102 = vld [vmem:[%s2099 + $0x8] sm:$0xf]
      %v2103 = vld [vmem:[%s2099 + $0xc] sm:$0xf]
      %v2122 = vunpack.c.l.b16 %v1373
      %v2123 = vunpack.c.l.b16 %v1374
      %v2124 = vunpack.c.l.b16 %v1375
      %v2125 = vunpack.c.l.b16 %v1376
      %v2126 = vunpack.c.l.b16 %v1377
      %v2127 = vunpack.c.l.b16 %v1378
      %v2128 = vunpack.c.l.b16 %v1379
      %v2129 = vunpack.c.l.b16 %v1380
      %v2130 = vunpack.c.l.b16 %v1381
      %v2131 = vunpack.c.l.b16 %v1382
      %v2132 = vunpack.c.l.b16 %v1383
      %v2133 = vunpack.c.l.b16 %v1384
      %v2134 = vunpack.c.l.b16 %v1385
      %v2135 = vunpack.c.l.b16 %v1386
      %v2136 = vunpack.c.l.b16 %v1387
      %v2137 = vunpack.c.l.b16 %v1388
      %v2138 = vunpack.c.l.b16 %v1389
      %v2139 = vunpack.c.l.b16 %v1390
      %v2140 = vpack.c.b16 %v2123, %v2122
      %v2141 = vpack.c.b16 %v2125, %v2124
      %v2142 = vpack.c.b16 %v2127, %v2126
      %v2143 = vpack.c.b16 %v2129, %v2128
      %v2144 = vpack.c.b16 %v2131, %v2130
      %v2145 = vpack.c.b16 %v2133, %v2132
      %v2146 = vpack.c.b16 %v2135, %v2134
      %v2147 = vpack.c.b16 %v2137, %v2136
      %v2148 = vpack.c.b16 %v2139, %v2138
      %v2153 = vunpack.c.l.b16 %v2100
      %v2154 = vunpack.c.l.b16 %v2101
      %v2155 = vunpack.c.l.b16 %v2102
      %v2156 = vunpack.c.l.b16 %v2103
      %v2157 = vpack.c.b16 %v2154, %v2153
      %v2158 = vpack.c.b16 %v2156, %v2155
      %v2162 = vsel %vm1481, %v2140, 0
      %v2165 = vsel %vm1481, %v2141, 0
      %v2168 = vsel %vm1481, %v2142, 0
      %v2171 = vsel %vm1481, %v2143, 0
      %v2174 = vsel %vm1481, %v2144, 0
      %v2177 = vsel %vm1481, %v2145, 0
      %v2180 = vsel %vm1481, %v2146, 0
      %v2183 = vsel %vm1481, %v2147, 0
      %v2186 = vsel %vm1481, %v2148, 0
      %2188 = vmatpush.bf16.msra.mxu0 0
      %2189 = vmatpush.bf16.msra.mxu0 0
      %2190 = vmatpush.bf16.msra.mxu0 0
      %2191 = vmatpush.bf16.msra.mxu0 0
      %2192 = vmatpush.bf16.msra.mxu0 0
      %2193 = vmatpush.bf16.msra.mxu0 0
      %2194 = vmatpush.bf16.msra.mxu0 %v2158
      %2195 = vmatpush.bf16.msra.mxu0 %v2157
      %2196 = vmatmul.bf16.gmra.mxu0 %v1510
      %v2197 = vpop.f32.mrf.mxu0
      %v2198 = vadd.f32 0.0, %v2197
      %v2199 = vpop.f32.mrf.mxu0
      %v2200 = vadd.f32 0.0, %v2199
      %2201 = vmatmul.bf16.gmra.mxu0 %v2162
      %v2202 = vpop.f32.mrf.mxu0
      %v2203 = vadd.f32 0.0, %v2202
      %v2204 = vpop.f32.mrf.mxu0
      %v2205 = vadd.f32 0.0, %v2204
      %2206 = vmatmul.bf16.gmra.mxu0 %v2165
      %v2207 = vpop.f32.mrf.mxu0
      %v2208 = vadd.f32 0.0, %v2207
      %v2209 = vpop.f32.mrf.mxu0
      %v2210 = vadd.f32 0.0, %v2209
      %2211 = vmatmul.bf16.gmra.mxu0 %v2168
      %v2212 = vpop.f32.mrf.mxu0
      %v2213 = vadd.f32 0.0, %v2212
      %v2214 = vpop.f32.mrf.mxu0
      %v2215 = vadd.f32 0.0, %v2214
      %2216 = vmatmul.bf16.gmra.mxu0 %v2171
      %v2217 = vpop.f32.mrf.mxu0
      %v2218 = vadd.f32 0.0, %v2217
      %v2219 = vpop.f32.mrf.mxu0
      %v2220 = vadd.f32 0.0, %v2219
      %2221 = vmatmul.bf16.gmra.mxu0 %v2174
      %v2222 = vpop.f32.mrf.mxu0
      %v2223 = vadd.f32 0.0, %v2222
      %v2224 = vpop.f32.mrf.mxu0
      %v2225 = vadd.f32 0.0, %v2224
      %2226 = vmatmul.bf16.gmra.mxu0 %v2177
      %v2227 = vpop.f32.mrf.mxu0
      %v2228 = vadd.f32 0.0, %v2227
      %v2229 = vpop.f32.mrf.mxu0
      %v2230 = vadd.f32 0.0, %v2229
      %2231 = vmatmul.bf16.gmra.mxu0 %v2180
      %v2232 = vpop.f32.mrf.mxu0
      %v2233 = vadd.f32 0.0, %v2232
      %v2234 = vpop.f32.mrf.mxu0
      %v2235 = vadd.f32 0.0, %v2234
      %2236 = vmatmul.bf16.gmra.mxu0 %v2183
      %v2237 = vpop.f32.mrf.mxu0
      %v2238 = vadd.f32 0.0, %v2237
      %v2239 = vpop.f32.mrf.mxu0
      %v2240 = vadd.f32 0.0, %v2239
      %2241 = vmatmul.bf16.gmra.mxu0 %v2186
      %v2242 = vpop.f32.mrf.mxu0
      %v2243 = vadd.f32 0.0, %v2242
      %v2244 = vpop.f32.mrf.mxu0
      %v2245 = vadd.f32 0.0, %v2244
      %2246 = vdwg.mxu0
      %v2247 = vadd.f32 %v2079, %v2198
      %v2248 = vadd.f32 %v2080, %v2200
      %v2249 = vadd.f32 %v2081, %v2203
      %v2250 = vadd.f32 %v2082, %v2205
      %v2251 = vadd.f32 %v2083, %v2208
      %v2252 = vadd.f32 %v2084, %v2210
      %v2253 = vadd.f32 %v2085, %v2213
      %v2254 = vadd.f32 %v2086, %v2215
      %v2255 = vadd.f32 %v2087, %v2218
      %v2256 = vadd.f32 %v2088, %v2220
      %v2257 = vadd.f32 %v2089, %v2223
      %v2258 = vadd.f32 %v2090, %v2225
      %v2259 = vadd.f32 %v2091, %v2228
      %v2260 = vadd.f32 %v2092, %v2230
      %v2261 = vadd.f32 %v2093, %v2233
      %v2262 = vadd.f32 %v2094, %v2235
      %v2263 = vadd.f32 %v2095, %v2238
      %v2264 = vadd.f32 %v2096, %v2240
      %v2265 = vadd.f32 %v2097, %v2243
      %v2266 = vadd.f32 %v2098, %v2245
      %s2267 = scalar_lea.vmem %s3, 80
      %v2268 = vld [vmem:[%s2267] sm:$0xf]
      %v2269 = vld [vmem:[%s2267 + $0x4] sm:$0xf]
      %v2270 = vld [vmem:[%s2267 + $0x8] sm:$0xf]
      %v2271 = vld [vmem:[%s2267 + $0xc] sm:$0xf]
      %v2290 = vunpack.c.l.b16 %v1391
      %v2291 = vunpack.c.l.b16 %v1392
      %v2292 = vunpack.c.l.b16 %v1393
      %v2293 = vunpack.c.l.b16 %v1394
      %v2294 = vunpack.c.l.b16 %v1395
      %v2295 = vunpack.c.l.b16 %v1396
      %v2296 = vunpack.c.l.b16 %v1397
      %v2297 = vunpack.c.l.b16 %v1398
      %v2298 = vunpack.c.l.b16 %v1399
      %v2299 = vunpack.c.l.b16 %v1400
      %v2300 = vunpack.c.l.b16 %v1401
      %v2301 = vunpack.c.l.b16 %v1402
      %v2302 = vunpack.c.l.b16 %v1403
      %v2303 = vunpack.c.l.b16 %v1404
      %v2304 = vunpack.c.l.b16 %v1405
      %v2305 = vunpack.c.l.b16 %v1406
      %v2306 = vunpack.c.l.b16 %v1407
      %v2307 = vunpack.c.l.b16 %v1408
      %v2308 = vpack.c.b16 %v2291, %v2290
      %v2309 = vpack.c.b16 %v2293, %v2292
      %v2310 = vpack.c.b16 %v2295, %v2294
      %v2311 = vpack.c.b16 %v2297, %v2296
      %v2312 = vpack.c.b16 %v2299, %v2298
      %v2313 = vpack.c.b16 %v2301, %v2300
      %v2314 = vpack.c.b16 %v2303, %v2302
      %v2315 = vpack.c.b16 %v2305, %v2304
      %v2316 = vpack.c.b16 %v2307, %v2306
      %v2321 = vunpack.c.l.b16 %v2268
      %v2322 = vunpack.c.l.b16 %v2269
      %v2323 = vunpack.c.l.b16 %v2270
      %v2324 = vunpack.c.l.b16 %v2271
      %v2325 = vpack.c.b16 %v2322, %v2321
      %v2326 = vpack.c.b16 %v2324, %v2323
      %v2330 = vsel %vm1481, %v2308, 0
      %v2333 = vsel %vm1481, %v2309, 0
      %v2336 = vsel %vm1481, %v2310, 0
      %v2339 = vsel %vm1481, %v2311, 0
      %v2342 = vsel %vm1481, %v2312, 0
      %v2345 = vsel %vm1481, %v2313, 0
      %v2348 = vsel %vm1481, %v2314, 0
      %v2351 = vsel %vm1481, %v2315, 0
      %v2354 = vsel %vm1481, %v2316, 0
      %2356 = vmatpush.bf16.msra.mxu0 0
      %2357 = vmatpush.bf16.msra.mxu0 0
      %2358 = vmatpush.bf16.msra.mxu0 0
      %2359 = vmatpush.bf16.msra.mxu0 0
      %2360 = vmatpush.bf16.msra.mxu0 0
      %2361 = vmatpush.bf16.msra.mxu0 0
      %2362 = vmatpush.bf16.msra.mxu0 %v2326
      %2363 = vmatpush.bf16.msra.mxu0 %v2325
      %2364 = vmatmul.bf16.gmra.mxu0 %v2186
      %v2365 = vpop.f32.mrf.mxu0
      %v2366 = vadd.f32 0.0, %v2365
      %v2367 = vpop.f32.mrf.mxu0
      %v2368 = vadd.f32 0.0, %v2367
      %2369 = vmatmul.bf16.gmra.mxu0 %v2330
      %v2370 = vpop.f32.mrf.mxu0
      %v2371 = vadd.f32 0.0, %v2370
      %v2372 = vpop.f32.mrf.mxu0
      %v2373 = vadd.f32 0.0, %v2372
      %2374 = vmatmul.bf16.gmra.mxu0 %v2333
      %v2375 = vpop.f32.mrf.mxu0
      %v2376 = vadd.f32 0.0, %v2375
      %v2377 = vpop.f32.mrf.mxu0
      %v2378 = vadd.f32 0.0, %v2377
      %2379 = vmatmul.bf16.gmra.mxu0 %v2336
      %v2380 = vpop.f32.mrf.mxu0
      %v2381 = vadd.f32 0.0, %v2380
      %v2382 = vpop.f32.mrf.mxu0
      %v2383 = vadd.f32 0.0, %v2382
      %2384 = vmatmul.bf16.gmra.mxu0 %v2339
      %v2385 = vpop.f32.mrf.mxu0
      %v2386 = vadd.f32 0.0, %v2385
      %v2387 = vpop.f32.mrf.mxu0
      %v2388 = vadd.f32 0.0, %v2387
      %2389 = vmatmul.bf16.gmra.mxu0 %v2342
      %v2390 = vpop.f32.mrf.mxu0
      %v2391 = vadd.f32 0.0, %v2390
      %v2392 = vpop.f32.mrf.mxu0
      %v2393 = vadd.f32 0.0, %v2392
      %2394 = vmatmul.bf16.gmra.mxu0 %v2345
      %v2395 = vpop.f32.mrf.mxu0
      %v2396 = vadd.f32 0.0, %v2395
      %v2397 = vpop.f32.mrf.mxu0
      %v2398 = vadd.f32 0.0, %v2397
      %2399 = vmatmul.bf16.gmra.mxu0 %v2348
      %v2400 = vpop.f32.mrf.mxu0
      %v2401 = vadd.f32 0.0, %v2400
      %v2402 = vpop.f32.mrf.mxu0
      %v2403 = vadd.f32 0.0, %v2402
      %2404 = vmatmul.bf16.gmra.mxu0 %v2351
      %v2405 = vpop.f32.mrf.mxu0
      %v2406 = vadd.f32 0.0, %v2405
      %v2407 = vpop.f32.mrf.mxu0
      %v2408 = vadd.f32 0.0, %v2407
      %2409 = vmatmul.bf16.gmra.mxu0 %v2354
      %v2410 = vpop.f32.mrf.mxu0
      %v2411 = vadd.f32 0.0, %v2410
      %v2412 = vpop.f32.mrf.mxu0
      %v2413 = vadd.f32 0.0, %v2412
      %2414 = vdwg.mxu0
      %v2415 = vadd.f32 %v2247, %v2366
      %v2416 = vadd.f32 %v2248, %v2368
      %v2417 = vadd.f32 %v2249, %v2371
      %v2418 = vadd.f32 %v2250, %v2373
      %v2419 = vadd.f32 %v2251, %v2376
      %v2420 = vadd.f32 %v2252, %v2378
      %v2421 = vadd.f32 %v2253, %v2381
      %v2422 = vadd.f32 %v2254, %v2383
      %v2423 = vadd.f32 %v2255, %v2386
      %v2424 = vadd.f32 %v2256, %v2388
      %v2425 = vadd.f32 %v2257, %v2391
      %v2426 = vadd.f32 %v2258, %v2393
      %v2427 = vadd.f32 %v2259, %v2396
      %v2428 = vadd.f32 %v2260, %v2398
      %v2429 = vadd.f32 %v2261, %v2401
      %v2430 = vadd.f32 %v2262, %v2403
      %v2431 = vadd.f32 %v2263, %v2406
      %v2432 = vadd.f32 %v2264, %v2408
      %v2433 = vadd.f32 %v2265, %v2411
      %v2434 = vadd.f32 %v2266, %v2413
      %s2435 = scalar_lea.vmem %s3, 96
      %v2436 = vld [vmem:[%s2435] sm:$0xf]
      %v2437 = vld [vmem:[%s2435 + $0x4] sm:$0xf]
      %v2438 = vld [vmem:[%s2435 + $0x8] sm:$0xf]
      %v2439 = vld [vmem:[%s2435 + $0xc] sm:$0xf]
      %v2440 = vshll.u32 %v2140, 16
      %v2442 = vrot.slane %v2440, 1
      %v2443 = vsel %vm1719, %v1977, %v2442
      %v2444 = vshrl.u32 %v2140, 16
      %v2446 = vor.u32 %v2444, %v2442
      %v2447 = vshll.u32 %v2141, 16
      %v2449 = vrot.slane %v2447, 1
      %v2450 = vsel %vm1719, %v2446, %v2449
      %v2451 = vshrl.u32 %v2141, 16
      %v2453 = vor.u32 %v2451, %v2449
      %v2454 = vshll.u32 %v2142, 16
      %v2456 = vrot.slane %v2454, 1
      %v2457 = vsel %vm1719, %v2453, %v2456
      %v2458 = vshrl.u32 %v2142, 16
      %v2460 = vor.u32 %v2458, %v2456
      %v2461 = vshll.u32 %v2143, 16
      %v2463 = vrot.slane %v2461, 1
      %v2464 = vsel %vm1719, %v2460, %v2463
      %v2465 = vshrl.u32 %v2143, 16
      %v2467 = vor.u32 %v2465, %v2463
      %v2468 = vshll.u32 %v2144, 16
      %v2470 = vrot.slane %v2468, 1
      %v2471 = vsel %vm1719, %v2467, %v2470
      %v2472 = vshrl.u32 %v2144, 16
      %v2474 = vor.u32 %v2472, %v2470
      %v2475 = vshll.u32 %v2145, 16
      %v2477 = vrot.slane %v2475, 1
      %v2478 = vsel %vm1719, %v2474, %v2477
      %v2479 = vshrl.u32 %v2145, 16
      %v2481 = vor.u32 %v2479, %v2477
      %v2482 = vshll.u32 %v2146, 16
      %v2484 = vrot.slane %v2482, 1
      %v2485 = vsel %vm1719, %v2481, %v2484
      %v2486 = vshrl.u32 %v2146, 16
      %v2488 = vor.u32 %v2486, %v2484
      %v2489 = vshll.u32 %v2147, 16
      %v2491 = vrot.slane %v2489, 1
      %v2492 = vsel %vm1719, %v2488, %v2491
      %v2493 = vshrl.u32 %v2147, 16
      %v2495 = vor.u32 %v2493, %v2491
      %v2496 = vshll.u32 %v2148, 16
      %v2498 = vrot.slane %v2496, 1
      %v2499 = vsel %vm1719, %v2495, %v2498
      %v2500 = vshrl.u32 %v2148, 16
      %v2502 = vor.u32 %v2500, %v2498
      %v2507 = vunpack.c.l.b16 %v2436
      %v2508 = vunpack.c.l.b16 %v2437
      %v2509 = vunpack.c.l.b16 %v2438
      %v2510 = vunpack.c.l.b16 %v2439
      %v2511 = vpack.c.b16 %v2508, %v2507
      %v2512 = vpack.c.b16 %v2510, %v2509
      %v2516 = vsel %vm1481, %v2443, 0
      %v2519 = vsel %vm1481, %v2450, 0
      %v2522 = vsel %vm1481, %v2457, 0
      %v2525 = vsel %vm1481, %v2464, 0
      %v2528 = vsel %vm1481, %v2471, 0
      %v2531 = vsel %vm1481, %v2478, 0
      %v2534 = vsel %vm1481, %v2485, 0
      %v2537 = vsel %vm1481, %v2492, 0
      %v2540 = vsel %vm1481, %v2499, 0
      %v2543 = vsel %vm1481, %v2502, 0
      %2545 = vmatpush.bf16.msra.mxu0 0
      %2546 = vmatpush.bf16.msra.mxu0 0
      %2547 = vmatpush.bf16.msra.mxu0 0
      %2548 = vmatpush.bf16.msra.mxu0 0
      %2549 = vmatpush.bf16.msra.mxu0 0
      %2550 = vmatpush.bf16.msra.mxu0 0
      %2551 = vmatpush.bf16.msra.mxu0 %v2512
      %2552 = vmatpush.bf16.msra.mxu0 %v2511
      %2553 = vmatmul.bf16.gmra.mxu0 %v2516
      %v2554 = vpop.f32.mrf.mxu0
      %v2555 = vadd.f32 0.0, %v2554
      %v2556 = vpop.f32.mrf.mxu0
      %v2557 = vadd.f32 0.0, %v2556
      %2558 = vmatmul.bf16.gmra.mxu0 %v2519
      %v2559 = vpop.f32.mrf.mxu0
      %v2560 = vadd.f32 0.0, %v2559
      %v2561 = vpop.f32.mrf.mxu0
      %v2562 = vadd.f32 0.0, %v2561
      %2563 = vmatmul.bf16.gmra.mxu0 %v2522
      %v2564 = vpop.f32.mrf.mxu0
      %v2565 = vadd.f32 0.0, %v2564
      %v2566 = vpop.f32.mrf.mxu0
      %v2567 = vadd.f32 0.0, %v2566
      %2568 = vmatmul.bf16.gmra.mxu0 %v2525
      %v2569 = vpop.f32.mrf.mxu0
      %v2570 = vadd.f32 0.0, %v2569
      %v2571 = vpop.f32.mrf.mxu0
      %v2572 = vadd.f32 0.0, %v2571
      %2573 = vmatmul.bf16.gmra.mxu0 %v2528
      %v2574 = vpop.f32.mrf.mxu0
      %v2575 = vadd.f32 0.0, %v2574
      %v2576 = vpop.f32.mrf.mxu0
      %v2577 = vadd.f32 0.0, %v2576
      %2578 = vmatmul.bf16.gmra.mxu0 %v2531
      %v2579 = vpop.f32.mrf.mxu0
      %v2580 = vadd.f32 0.0, %v2579
      %v2581 = vpop.f32.mrf.mxu0
      %v2582 = vadd.f32 0.0, %v2581
      %2583 = vmatmul.bf16.gmra.mxu0 %v2534
      %v2584 = vpop.f32.mrf.mxu0
      %v2585 = vadd.f32 0.0, %v2584
      %v2586 = vpop.f32.mrf.mxu0
      %v2587 = vadd.f32 0.0, %v2586
      %2588 = vmatmul.bf16.gmra.mxu0 %v2537
      %v2589 = vpop.f32.mrf.mxu0
      %v2590 = vadd.f32 0.0, %v2589
      %v2591 = vpop.f32.mrf.mxu0
      %v2592 = vadd.f32 0.0, %v2591
      %2593 = vmatmul.bf16.gmra.mxu0 %v2540
      %v2594 = vpop.f32.mrf.mxu0
      %v2595 = vadd.f32 0.0, %v2594
      %v2596 = vpop.f32.mrf.mxu0
      %v2597 = vadd.f32 0.0, %v2596
      %2598 = vmatmul.bf16.gmra.mxu0 %v2543
      %v2599 = vpop.f32.mrf.mxu0
      %v2600 = vadd.f32 0.0, %v2599
      %v2601 = vpop.f32.mrf.mxu0
      %v2602 = vadd.f32 0.0, %v2601
      %2603 = vdwg.mxu0
      %v2604 = vadd.f32 %v2415, %v2555
      %v2605 = vadd.f32 %v2416, %v2557
      %v2606 = vadd.f32 %v2417, %v2560
      %v2607 = vadd.f32 %v2418, %v2562
      %v2608 = vadd.f32 %v2419, %v2565
      %v2609 = vadd.f32 %v2420, %v2567
      %v2610 = vadd.f32 %v2421, %v2570
      %v2611 = vadd.f32 %v2422, %v2572
      %v2612 = vadd.f32 %v2423, %v2575
      %v2613 = vadd.f32 %v2424, %v2577
      %v2614 = vadd.f32 %v2425, %v2580
      %v2615 = vadd.f32 %v2426, %v2582
      %v2616 = vadd.f32 %v2427, %v2585
      %v2617 = vadd.f32 %v2428, %v2587
      %v2618 = vadd.f32 %v2429, %v2590
      %v2619 = vadd.f32 %v2430, %v2592
      %v2620 = vadd.f32 %v2431, %v2595
      %v2621 = vadd.f32 %v2432, %v2597
      %v2622 = vadd.f32 %v2433, %v2600
      %v2623 = vadd.f32 %v2434, %v2602
      %s2624 = scalar_lea.vmem %s3, 112
      %v2625 = vld [vmem:[%s2624] sm:$0xf]
      %v2626 = vld [vmem:[%s2624 + $0x4] sm:$0xf]
      %v2627 = vld [vmem:[%s2624 + $0x8] sm:$0xf]
      %v2628 = vld [vmem:[%s2624 + $0xc] sm:$0xf]
      %v2629 = vshll.u32 %v2308, 16
      %v2631 = vrot.slane %v2629, 1
      %v2632 = vsel %vm1719, %v2502, %v2631
      %v2633 = vshrl.u32 %v2308, 16
      %v2635 = vor.u32 %v2633, %v2631
      %v2636 = vshll.u32 %v2309, 16
      %v2638 = vrot.slane %v2636, 1
      %v2639 = vsel %vm1719, %v2635, %v2638
      %v2640 = vshrl.u32 %v2309, 16
      %v2642 = vor.u32 %v2640, %v2638
      %v2643 = vshll.u32 %v2310, 16
      %v2645 = vrot.slane %v2643, 1
      %v2646 = vsel %vm1719, %v2642, %v2645
      %v2647 = vshrl.u32 %v2310, 16
      %v2649 = vor.u32 %v2647, %v2645
      %v2650 = vshll.u32 %v2311, 16
      %v2652 = vrot.slane %v2650, 1
      %v2653 = vsel %vm1719, %v2649, %v2652
      %v2654 = vshrl.u32 %v2311, 16
      %v2656 = vor.u32 %v2654, %v2652
      %v2657 = vshll.u32 %v2312, 16
      %v2659 = vrot.slane %v2657, 1
      %v2660 = vsel %vm1719, %v2656, %v2659
      %v2661 = vshrl.u32 %v2312, 16
      %v2663 = vor.u32 %v2661, %v2659
      %v2664 = vshll.u32 %v2313, 16
      %v2666 = vrot.slane %v2664, 1
      %v2667 = vsel %vm1719, %v2663, %v2666
      %v2668 = vshrl.u32 %v2313, 16
      %v2670 = vor.u32 %v2668, %v2666
      %v2671 = vshll.u32 %v2314, 16
      %v2673 = vrot.slane %v2671, 1
      %v2674 = vsel %vm1719, %v2670, %v2673
      %v2675 = vshrl.u32 %v2314, 16
      %v2677 = vor.u32 %v2675, %v2673
      %v2678 = vshll.u32 %v2315, 16
      %v2680 = vrot.slane %v2678, 1
      %v2681 = vsel %vm1719, %v2677, %v2680
      %v2682 = vshrl.u32 %v2315, 16
      %v2684 = vor.u32 %v2682, %v2680
      %v2685 = vshll.u32 %v2316, 16
      %v2687 = vrot.slane %v2685, 1
      %v2688 = vsel %vm1719, %v2684, %v2687
      %v2689 = vshrl.u32 %v2316, 16
      %v2691 = vor.u32 %v2689, %v2687
      %v2696 = vunpack.c.l.b16 %v2625
      %v2697 = vunpack.c.l.b16 %v2626
      %v2698 = vunpack.c.l.b16 %v2627
      %v2699 = vunpack.c.l.b16 %v2628
      %v2700 = vpack.c.b16 %v2697, %v2696
      %v2701 = vpack.c.b16 %v2699, %v2698
      %v2705 = vsel %vm1481, %v2632, 0
      %v2708 = vsel %vm1481, %v2639, 0
      %v2711 = vsel %vm1481, %v2646, 0
      %v2714 = vsel %vm1481, %v2653, 0
      %v2717 = vsel %vm1481, %v2660, 0
      %v2720 = vsel %vm1481, %v2667, 0
      %v2723 = vsel %vm1481, %v2674, 0
      %v2726 = vsel %vm1481, %v2681, 0
      %v2729 = vsel %vm1481, %v2688, 0
      %v2732 = vsel %vm1481, %v2691, 0
      %2734 = vmatpush.bf16.msra.mxu0 0
      %2735 = vmatpush.bf16.msra.mxu0 0
      %2736 = vmatpush.bf16.msra.mxu0 0
      %2737 = vmatpush.bf16.msra.mxu0 0
      %2738 = vmatpush.bf16.msra.mxu0 0
      %2739 = vmatpush.bf16.msra.mxu0 0
      %2740 = vmatpush.bf16.msra.mxu0 %v2701
      %2741 = vmatpush.bf16.msra.mxu0 %v2700
      %2742 = vmatmul.bf16.gmra.mxu0 %v2705
      %v2743 = vpop.f32.mrf.mxu0
      %v2744 = vadd.f32 0.0, %v2743
      %v2745 = vpop.f32.mrf.mxu0
      %v2746 = vadd.f32 0.0, %v2745
      %2747 = vmatmul.bf16.gmra.mxu0 %v2708
      %v2748 = vpop.f32.mrf.mxu0
      %v2749 = vadd.f32 0.0, %v2748
      %v2750 = vpop.f32.mrf.mxu0
      %v2751 = vadd.f32 0.0, %v2750
      %2752 = vmatmul.bf16.gmra.mxu0 %v2711
      %v2753 = vpop.f32.mrf.mxu0
      %v2754 = vadd.f32 0.0, %v2753
      %v2755 = vpop.f32.mrf.mxu0
      %v2756 = vadd.f32 0.0, %v2755
      %2757 = vmatmul.bf16.gmra.mxu0 %v2714
      %v2758 = vpop.f32.mrf.mxu0
      %v2759 = vadd.f32 0.0, %v2758
      %v2760 = vpop.f32.mrf.mxu0
      %v2761 = vadd.f32 0.0, %v2760
      %2762 = vmatmul.bf16.gmra.mxu0 %v2717
      %v2763 = vpop.f32.mrf.mxu0
      %v2764 = vadd.f32 0.0, %v2763
      %v2765 = vpop.f32.mrf.mxu0
      %v2766 = vadd.f32 0.0, %v2765
      %2767 = vmatmul.bf16.gmra.mxu0 %v2720
      %v2768 = vpop.f32.mrf.mxu0
      %v2769 = vadd.f32 0.0, %v2768
      %v2770 = vpop.f32.mrf.mxu0
      %v2771 = vadd.f32 0.0, %v2770
      %2772 = vmatmul.bf16.gmra.mxu0 %v2723
      %v2773 = vpop.f32.mrf.mxu0
      %v2774 = vadd.f32 0.0, %v2773
      %v2775 = vpop.f32.mrf.mxu0
      %v2776 = vadd.f32 0.0, %v2775
      %2777 = vmatmul.bf16.gmra.mxu0 %v2726
      %v2778 = vpop.f32.mrf.mxu0
      %v2779 = vadd.f32 0.0, %v2778
      %v2780 = vpop.f32.mrf.mxu0
      %v2781 = vadd.f32 0.0, %v2780
      %2782 = vmatmul.bf16.gmra.mxu0 %v2729
      %v2783 = vpop.f32.mrf.mxu0
      %v2784 = vadd.f32 0.0, %v2783
      %v2785 = vpop.f32.mrf.mxu0
      %v2786 = vadd.f32 0.0, %v2785
      %2787 = vmatmul.bf16.gmra.mxu0 %v2732
      %v2788 = vpop.f32.mrf.mxu0
      %v2789 = vadd.f32 0.0, %v2788
      %v2790 = vpop.f32.mrf.mxu0
      %v2791 = vadd.f32 0.0, %v2790
      %2792 = vdwg.mxu0
      %v2793 = vadd.f32 %v2604, %v2744
      %v2794 = vadd.f32 %v2605, %v2746
      %v2795 = vadd.f32 %v2606, %v2749
      %v2796 = vadd.f32 %v2607, %v2751
      %v2797 = vadd.f32 %v2608, %v2754
      %v2798 = vadd.f32 %v2609, %v2756
      %v2799 = vadd.f32 %v2610, %v2759
      %v2800 = vadd.f32 %v2611, %v2761
      %v2801 = vadd.f32 %v2612, %v2764
      %v2802 = vadd.f32 %v2613, %v2766
      %v2803 = vadd.f32 %v2614, %v2769
      %v2804 = vadd.f32 %v2615, %v2771
      %v2805 = vadd.f32 %v2616, %v2774
      %v2806 = vadd.f32 %v2617, %v2776
      %v2807 = vadd.f32 %v2618, %v2779
      %v2808 = vadd.f32 %v2619, %v2781
      %v2809 = vadd.f32 %v2620, %v2784
      %v2810 = vadd.f32 %v2621, %v2786
      %v2811 = vadd.f32 %v2622, %v2789
      %v2812 = vadd.f32 %v2623, %v2791
      %s2813 = scalar_lea.vmem %s3, 128
      %v2814 = vld [vmem:[%s2813] sm:$0xf]
      %v2815 = vld [vmem:[%s2813 + $0x4] sm:$0xf]
      %v2816 = vld [vmem:[%s2813 + $0x8] sm:$0xf]
      %v2817 = vld [vmem:[%s2813 + $0xc] sm:$0xf]
      %v2818 = vpack.c.b16 %v1441, %v1441
      %vm2819 = vcmask 1044480
      %v2820 = vrot.slane %v1607, 3
      %v2821 = vrot.slane %v1608, 3
      %v2822 = vsel %vm2819, %v2820, %v2821
      %v2823 = vrot.slane %v1609, 3
      %v2824 = vsel %vm2819, %v2821, %v2823
      %v2825 = vrot.slane %v1610, 3
      %v2826 = vsel %vm2819, %v2823, %v2825
      %v2827 = vrot.slane %v1611, 3
      %v2828 = vsel %vm2819, %v2825, %v2827
      %v2829 = vrot.slane %v1612, 3
      %v2830 = vsel %vm2819, %v2827, %v2829
      %v2831 = vrot.slane %v1613, 3
      %v2832 = vsel %vm2819, %v2829, %v2831
      %v2833 = vrot.slane %v1614, 3
      %v2834 = vsel %vm2819, %v2831, %v2833
      %v2835 = vrot.slane %v1615, 3
      %v2836 = vsel %vm2819, %v2833, %v2835
      %v2837 = vrot.slane %v1459, 3
      %v2838 = vsel %vm2819, %v2835, %v2837
      %v2839 = vrot.slane %v2818, 3
      %v2840 = vsel %vm2819, %v2837, %v2839
      %v2845 = vunpack.c.l.b16 %v2814
      %v2846 = vunpack.c.l.b16 %v2815
      %v2847 = vunpack.c.l.b16 %v2816
      %v2848 = vunpack.c.l.b16 %v2817
      %v2849 = vpack.c.b16 %v2846, %v2845
      %v2850 = vpack.c.b16 %v2848, %v2847
      %v2854 = vsel %vm1481, %v2822, 0
      %v2857 = vsel %vm1481, %v2824, 0
      %v2860 = vsel %vm1481, %v2826, 0
      %v2863 = vsel %vm1481, %v2828, 0
      %v2866 = vsel %vm1481, %v2830, 0
      %v2869 = vsel %vm1481, %v2832, 0
      %v2872 = vsel %vm1481, %v2834, 0
      %v2875 = vsel %vm1481, %v2836, 0
      %v2878 = vsel %vm1481, %v2838, 0
      %v2881 = vsel %vm1481, %v2840, 0
      %2883 = vmatpush.bf16.msra.mxu0 0
      %2884 = vmatpush.bf16.msra.mxu0 0
      %2885 = vmatpush.bf16.msra.mxu0 0
      %2886 = vmatpush.bf16.msra.mxu0 0
      %2887 = vmatpush.bf16.msra.mxu0 0
      %2888 = vmatpush.bf16.msra.mxu0 0
      %2889 = vmatpush.bf16.msra.mxu0 %v2850
      %2890 = vmatpush.bf16.msra.mxu0 %v2849
      %2891 = vmatmul.bf16.gmra.mxu0 %v2854
      %v2892 = vpop.f32.mrf.mxu0
      %v2893 = vadd.f32 0.0, %v2892
      %v2894 = vpop.f32.mrf.mxu0
      %v2895 = vadd.f32 0.0, %v2894
      %2896 = vmatmul.bf16.gmra.mxu0 %v2857
      %v2897 = vpop.f32.mrf.mxu0
      %v2898 = vadd.f32 0.0, %v2897
      %v2899 = vpop.f32.mrf.mxu0
      %v2900 = vadd.f32 0.0, %v2899
      %2901 = vmatmul.bf16.gmra.mxu0 %v2860
      %v2902 = vpop.f32.mrf.mxu0
      %v2903 = vadd.f32 0.0, %v2902
      %v2904 = vpop.f32.mrf.mxu0
      %v2905 = vadd.f32 0.0, %v2904
      %2906 = vmatmul.bf16.gmra.mxu0 %v2863
      %v2907 = vpop.f32.mrf.mxu0
      %v2908 = vadd.f32 0.0, %v2907
      %v2909 = vpop.f32.mrf.mxu0
      %v2910 = vadd.f32 0.0, %v2909
      %2911 = vmatmul.bf16.gmra.mxu0 %v2866
      %v2912 = vpop.f32.mrf.mxu0
      %v2913 = vadd.f32 0.0, %v2912
      %v2914 = vpop.f32.mrf.mxu0
      %v2915 = vadd.f32 0.0, %v2914
      %2916 = vmatmul.bf16.gmra.mxu0 %v2869
      %v2917 = vpop.f32.mrf.mxu0
      %v2918 = vadd.f32 0.0, %v2917
      %v2919 = vpop.f32.mrf.mxu0
      %v2920 = vadd.f32 0.0, %v2919
      %2921 = vmatmul.bf16.gmra.mxu0 %v2872
      %v2922 = vpop.f32.mrf.mxu0
      %v2923 = vadd.f32 0.0, %v2922
      %v2924 = vpop.f32.mrf.mxu0
      %v2925 = vadd.f32 0.0, %v2924
      %2926 = vmatmul.bf16.gmra.mxu0 %v2875
      %v2927 = vpop.f32.mrf.mxu0
      %v2928 = vadd.f32 0.0, %v2927
      %v2929 = vpop.f32.mrf.mxu0
      %v2930 = vadd.f32 0.0, %v2929
      %2931 = vmatmul.bf16.gmra.mxu0 %v2878
      %v2932 = vpop.f32.mrf.mxu0
      %v2933 = vadd.f32 0.0, %v2932
      %v2934 = vpop.f32.mrf.mxu0
      %v2935 = vadd.f32 0.0, %v2934
      %2936 = vmatmul.bf16.gmra.mxu0 %v2881
      %v2937 = vpop.f32.mrf.mxu0
      %v2938 = vadd.f32 0.0, %v2937
      %v2939 = vpop.f32.mrf.mxu0
      %v2940 = vadd.f32 0.0, %v2939
      %2941 = vdwg.mxu0
      %v2942 = vadd.f32 %v2793, %v2893
      %v2943 = vadd.f32 %v2794, %v2895
      %v2944 = vadd.f32 %v2795, %v2898
      %v2945 = vadd.f32 %v2796, %v2900
      %v2946 = vadd.f32 %v2797, %v2903
      %v2947 = vadd.f32 %v2798, %v2905
      %v2948 = vadd.f32 %v2799, %v2908
      %v2949 = vadd.f32 %v2800, %v2910
      %v2950 = vadd.f32 %v2801, %v2913
      %v2951 = vadd.f32 %v2802, %v2915
      %v2952 = vadd.f32 %v2803, %v2918
      %v2953 = vadd.f32 %v2804, %v2920
      %v2954 = vadd.f32 %v2805, %v2923
      %v2955 = vadd.f32 %v2806, %v2925
      %v2956 = vadd.f32 %v2807, %v2928
      %v2957 = vadd.f32 %v2808, %v2930
      %v2958 = vadd.f32 %v2809, %v2933
      %v2959 = vadd.f32 %v2810, %v2935
      %v2960 = vadd.f32 %v2811, %v2938
      %v2961 = vadd.f32 %v2812, %v2940
      %s2962 = scalar_lea.vmem %s3, 144
      %v2963 = vld [vmem:[%s2962] sm:$0xf]
      %v2964 = vld [vmem:[%s2962 + $0x4] sm:$0xf]
      %v2965 = vld [vmem:[%s2962 + $0x8] sm:$0xf]
      %v2966 = vld [vmem:[%s2962 + $0xc] sm:$0xf]
      %v2967 = vpack.c.b16 %v2122, %v2122
      %v2968 = vrot.slane %v1460, 3
      %v2969 = vsel %vm2819, %v2837, %v2968
      %v2970 = vrot.slane %v1461, 3
      %v2971 = vsel %vm2819, %v2968, %v2970
      %v2972 = vrot.slane %v1462, 3
      %v2973 = vsel %vm2819, %v2970, %v2972
      %v2974 = vrot.slane %v1463, 3
      %v2975 = vsel %vm2819, %v2972, %v2974
      %v2976 = vrot.slane %v1464, 3
      %v2977 = vsel %vm2819, %v2974, %v2976
      %v2978 = vrot.slane %v1465, 3
      %v2979 = vsel %vm2819, %v2976, %v2978
      %v2980 = vrot.slane %v1466, 3
      %v2981 = vsel %vm2819, %v2978, %v2980
      %v2982 = vrot.slane %v1467, 3
      %v2983 = vsel %vm2819, %v2980, %v2982
      %v2984 = vrot.slane %v1468, 3
      %v2985 = vsel %vm2819, %v2982, %v2984
      %v2986 = vrot.slane %v2967, 3
      %v2987 = vsel %vm2819, %v2984, %v2986
      %v2992 = vunpack.c.l.b16 %v2963
      %v2993 = vunpack.c.l.b16 %v2964
      %v2994 = vunpack.c.l.b16 %v2965
      %v2995 = vunpack.c.l.b16 %v2966
      %v2996 = vpack.c.b16 %v2993, %v2992
      %v2997 = vpack.c.b16 %v2995, %v2994
      %v3001 = vsel %vm1481, %v2969, 0
      %v3004 = vsel %vm1481, %v2971, 0
      %v3007 = vsel %vm1481, %v2973, 0
      %v3010 = vsel %vm1481, %v2975, 0
      %v3013 = vsel %vm1481, %v2977, 0
      %v3016 = vsel %vm1481, %v2979, 0
      %v3019 = vsel %vm1481, %v2981, 0
      %v3022 = vsel %vm1481, %v2983, 0
      %v3025 = vsel %vm1481, %v2985, 0
      %v3028 = vsel %vm1481, %v2987, 0
      %3030 = vmatpush.bf16.msra.mxu0 0
      %3031 = vmatpush.bf16.msra.mxu0 0
      %3032 = vmatpush.bf16.msra.mxu0 0
      %3033 = vmatpush.bf16.msra.mxu0 0
      %3034 = vmatpush.bf16.msra.mxu0 0
      %3035 = vmatpush.bf16.msra.mxu0 0
      %3036 = vmatpush.bf16.msra.mxu0 %v2997
      %3037 = vmatpush.bf16.msra.mxu0 %v2996
      %3038 = vmatmul.bf16.gmra.mxu0 %v3001
      %v3039 = vpop.f32.mrf.mxu0
      %v3040 = vadd.f32 0.0, %v3039
      %v3041 = vpop.f32.mrf.mxu0
      %v3042 = vadd.f32 0.0, %v3041
      %3043 = vmatmul.bf16.gmra.mxu0 %v3004
      %v3044 = vpop.f32.mrf.mxu0
      %v3045 = vadd.f32 0.0, %v3044
      %v3046 = vpop.f32.mrf.mxu0
      %v3047 = vadd.f32 0.0, %v3046
      %3048 = vmatmul.bf16.gmra.mxu0 %v3007
      %v3049 = vpop.f32.mrf.mxu0
      %v3050 = vadd.f32 0.0, %v3049
      %v3051 = vpop.f32.mrf.mxu0
      %v3052 = vadd.f32 0.0, %v3051
      %3053 = vmatmul.bf16.gmra.mxu0 %v3010
      %v3054 = vpop.f32.mrf.mxu0
      %v3055 = vadd.f32 0.0, %v3054
      %v3056 = vpop.f32.mrf.mxu0
      %v3057 = vadd.f32 0.0, %v3056
      %3058 = vmatmul.bf16.gmra.mxu0 %v3013
      %v3059 = vpop.f32.mrf.mxu0
      %v3060 = vadd.f32 0.0, %v3059
      %v3061 = vpop.f32.mrf.mxu0
      %v3062 = vadd.f32 0.0, %v3061
      %3063 = vmatmul.bf16.gmra.mxu0 %v3016
      %v3064 = vpop.f32.mrf.mxu0
      %v3065 = vadd.f32 0.0, %v3064
      %v3066 = vpop.f32.mrf.mxu0
      %v3067 = vadd.f32 0.0, %v3066
      %3068 = vmatmul.bf16.gmra.mxu0 %v3019
      %v3069 = vpop.f32.mrf.mxu0
      %v3070 = vadd.f32 0.0, %v3069
      %v3071 = vpop.f32.mrf.mxu0
      %v3072 = vadd.f32 0.0, %v3071
      %3073 = vmatmul.bf16.gmra.mxu0 %v3022
      %v3074 = vpop.f32.mrf.mxu0
      %v3075 = vadd.f32 0.0, %v3074
      %v3076 = vpop.f32.mrf.mxu0
      %v3077 = vadd.f32 0.0, %v3076
      %3078 = vmatmul.bf16.gmra.mxu0 %v3025
      %v3079 = vpop.f32.mrf.mxu0
      %v3080 = vadd.f32 0.0, %v3079
      %v3081 = vpop.f32.mrf.mxu0
      %v3082 = vadd.f32 0.0, %v3081
      %3083 = vmatmul.bf16.gmra.mxu0 %v3028
      %v3084 = vpop.f32.mrf.mxu0
      %v3085 = vadd.f32 0.0, %v3084
      %v3086 = vpop.f32.mrf.mxu0
      %v3087 = vadd.f32 0.0, %v3086
      %3088 = vdwg.mxu0
      %v3089 = vadd.f32 %v2942, %v3040
      %v3090 = vadd.f32 %v2943, %v3042
      %v3091 = vadd.f32 %v2944, %v3045
      %v3092 = vadd.f32 %v2945, %v3047
      %v3093 = vadd.f32 %v2946, %v3050
      %v3094 = vadd.f32 %v2947, %v3052
      %v3095 = vadd.f32 %v2948, %v3055
      %v3096 = vadd.f32 %v2949, %v3057
      %v3097 = vadd.f32 %v2950, %v3060
      %v3098 = vadd.f32 %v2951, %v3062
      %v3099 = vadd.f32 %v2952, %v3065
      %v3100 = vadd.f32 %v2953, %v3067
      %v3101 = vadd.f32 %v2954, %v3070
      %v3102 = vadd.f32 %v2955, %v3072
      %v3103 = vadd.f32 %v2956, %v3075
      %v3104 = vadd.f32 %v2957, %v3077
      %v3105 = vadd.f32 %v2958, %v3080
      %v3106 = vadd.f32 %v2959, %v3082
      %v3107 = vadd.f32 %v2960, %v3085
      %v3108 = vadd.f32 %v2961, %v3087
      %s3109 = scalar_lea.vmem %s3, 160
      %v3110 = vld [vmem:[%s3109] sm:$0xf]
      %v3111 = vld [vmem:[%s3109 + $0x4] sm:$0xf]
      %v3112 = vld [vmem:[%s3109 + $0x8] sm:$0xf]
      %v3113 = vld [vmem:[%s3109 + $0xc] sm:$0xf]
      %vm3114 = vsmask.f32 4352
      %v3115 = vrot.slane %v1720, 3
      %v3116 = vrot.slane %v1722, 4
      %v3117 = vor.u32 %v3115, %v3116
      %v3118 = vrot.slane %v1730, 3
      %v3119 = vrot.slane %v1726, 4
      %v3120 = vor.u32 %v3118, %v3119
      %v3121 = vsel %vm3114, %v3117, %v3120
      %v3122 = vrot.slane %v1737, 3
      %v3123 = vrot.slane %v1733, 4
      %v3124 = vor.u32 %v3122, %v3123
      %v3125 = vsel %vm3114, %v3120, %v3124
      %v3126 = vrot.slane %v1744, 3
      %v3127 = vrot.slane %v1740, 4
      %v3128 = vor.u32 %v3126, %v3127
      %v3129 = vsel %vm3114, %v3124, %v3128
      %v3130 = vrot.slane %v1751, 3
      %v3131 = vrot.slane %v1747, 4
      %v3132 = vor.u32 %v3130, %v3131
      %v3133 = vsel %vm3114, %v3128, %v3132
      %v3134 = vrot.slane %v1758, 3
      %v3135 = vrot.slane %v1754, 4
      %v3136 = vor.u32 %v3134, %v3135
      %v3137 = vsel %vm3114, %v3132, %v3136
      %v3138 = vrot.slane %v1765, 3
      %v3139 = vrot.slane %v1761, 4
      %v3140 = vor.u32 %v3138, %v3139
      %v3141 = vsel %vm3114, %v3136, %v3140
      %v3142 = vrot.slane %v1772, 3
      %v3143 = vrot.slane %v1768, 4
      %v3144 = vor.u32 %v3142, %v3143
      %v3145 = vsel %vm3114, %v3140, %v3144
      %v3146 = vrot.slane %v1779, 3
      %v3147 = vrot.slane %v1775, 4
      %v3148 = vor.u32 %v3146, %v3147
      %v3149 = vsel %vm3114, %v3144, %v3148
      %v3150 = vrot.slane %v1786, 3
      %v3151 = vrot.slane %v1782, 4
      %v3152 = vor.u32 %v3150, %v3151
      %v3153 = vsel %vm3114, %v3148, %v3152
      %v3155 = vshrl.u32 %v2818, 16
      %v3157 = vrot.slane %v3155, 3
      %v3158 = vshll.u32 %v2818, 16
      %v3160 = vrot.slane %v3158, 4
      %v3161 = vor.u32 %v3157, %v3160
      %v3162 = vsel %vm3114, %v3152, %v3161
      %v3167 = vunpack.c.l.b16 %v3110
      %v3168 = vunpack.c.l.b16 %v3111
      %v3169 = vunpack.c.l.b16 %v3112
      %v3170 = vunpack.c.l.b16 %v3113
      %v3171 = vpack.c.b16 %v3168, %v3167
      %v3172 = vpack.c.b16 %v3170, %v3169
      %v3176 = vsel %vm1481, %v3121, 0
      %v3179 = vsel %vm1481, %v3125, 0
      %v3182 = vsel %vm1481, %v3129, 0
      %v3185 = vsel %vm1481, %v3133, 0
      %v3188 = vsel %vm1481, %v3137, 0
      %v3191 = vsel %vm1481, %v3141, 0
      %v3194 = vsel %vm1481, %v3145, 0
      %v3197 = vsel %vm1481, %v3149, 0
      %v3200 = vsel %vm1481, %v3153, 0
      %v3203 = vsel %vm1481, %v3162, 0
      %3205 = vmatpush.bf16.msra.mxu0 0
      %3206 = vmatpush.bf16.msra.mxu0 0
      %3207 = vmatpush.bf16.msra.mxu0 0
      %3208 = vmatpush.bf16.msra.mxu0 0
      %3209 = vmatpush.bf16.msra.mxu0 0
      %3210 = vmatpush.bf16.msra.mxu0 0
      %3211 = vmatpush.bf16.msra.mxu0 %v3172
      %3212 = vmatpush.bf16.msra.mxu0 %v3171
      %3213 = vmatmul.bf16.gmra.mxu0 %v3176
      %v3214 = vpop.f32.mrf.mxu0
      %v3215 = vadd.f32 0.0, %v3214
      %v3216 = vpop.f32.mrf.mxu0
      %v3217 = vadd.f32 0.0, %v3216
      %3218 = vmatmul.bf16.gmra.mxu0 %v3179
      %v3219 = vpop.f32.mrf.mxu0
      %v3220 = vadd.f32 0.0, %v3219
      %v3221 = vpop.f32.mrf.mxu0
      %v3222 = vadd.f32 0.0, %v3221
      %3223 = vmatmul.bf16.gmra.mxu0 %v3182
      %v3224 = vpop.f32.mrf.mxu0
      %v3225 = vadd.f32 0.0, %v3224
      %v3226 = vpop.f32.mrf.mxu0
      %v3227 = vadd.f32 0.0, %v3226
      %3228 = vmatmul.bf16.gmra.mxu0 %v3185
      %v3229 = vpop.f32.mrf.mxu0
      %v3230 = vadd.f32 0.0, %v3229
      %v3231 = vpop.f32.mrf.mxu0
      %v3232 = vadd.f32 0.0, %v3231
      %3233 = vmatmul.bf16.gmra.mxu0 %v3188
      %v3234 = vpop.f32.mrf.mxu0
      %v3235 = vadd.f32 0.0, %v3234
      %v3236 = vpop.f32.mrf.mxu0
      %v3237 = vadd.f32 0.0, %v3236
      %3238 = vmatmul.bf16.gmra.mxu0 %v3191
      %v3239 = vpop.f32.mrf.mxu0
      %v3240 = vadd.f32 0.0, %v3239
      %v3241 = vpop.f32.mrf.mxu0
      %v3242 = vadd.f32 0.0, %v3241
      %3243 = vmatmul.bf16.gmra.mxu0 %v3194
      %v3244 = vpop.f32.mrf.mxu0
      %v3245 = vadd.f32 0.0, %v3244
      %v3246 = vpop.f32.mrf.mxu0
      %v3247 = vadd.f32 0.0, %v3246
      %3248 = vmatmul.bf16.gmra.mxu0 %v3197
      %v3249 = vpop.f32.mrf.mxu0
      %v3250 = vadd.f32 0.0, %v3249
      %v3251 = vpop.f32.mrf.mxu0
      %v3252 = vadd.f32 0.0, %v3251
      %3253 = vmatmul.bf16.gmra.mxu0 %v3200
      %v3254 = vpop.f32.mrf.mxu0
      %v3255 = vadd.f32 0.0, %v3254
      %v3256 = vpop.f32.mrf.mxu0
      %v3257 = vadd.f32 0.0, %v3256
      %3258 = vmatmul.bf16.gmra.mxu0 %v3203
      %v3259 = vpop.f32.mrf.mxu0
      %v3260 = vadd.f32 0.0, %v3259
      %v3261 = vpop.f32.mrf.mxu0
      %v3262 = vadd.f32 0.0, %v3261
      %3263 = vdwg.mxu0
      %v3264 = vadd.f32 %v3089, %v3215
      %v3265 = vadd.f32 %v3090, %v3217
      %v3266 = vadd.f32 %v3091, %v3220
      %v3267 = vadd.f32 %v3092, %v3222
      %v3268 = vadd.f32 %v3093, %v3225
      %v3269 = vadd.f32 %v3094, %v3227
      %v3270 = vadd.f32 %v3095, %v3230
      %v3271 = vadd.f32 %v3096, %v3232
      %v3272 = vadd.f32 %v3097, %v3235
      %v3273 = vadd.f32 %v3098, %v3237
      %v3274 = vadd.f32 %v3099, %v3240
      %v3275 = vadd.f32 %v3100, %v3242
      %v3276 = vadd.f32 %v3101, %v3245
      %v3277 = vadd.f32 %v3102, %v3247
      %v3278 = vadd.f32 %v3103, %v3250
      %v3279 = vadd.f32 %v3104, %v3252
      %v3280 = vadd.f32 %v3105, %v3255
      %v3281 = vadd.f32 %v3106, %v3257
      %v3282 = vadd.f32 %v3107, %v3260
      %v3283 = vadd.f32 %v3108, %v3262
      %s3284 = scalar_lea.vmem %s3, 176
      %v3285 = vld [vmem:[%s3284] sm:$0xf]
      %v3286 = vld [vmem:[%s3284 + $0x4] sm:$0xf]
      %v3287 = vld [vmem:[%s3284 + $0x8] sm:$0xf]
      %v3288 = vld [vmem:[%s3284 + $0xc] sm:$0xf]
      %v3289 = vrot.slane %v1919, 3
      %v3290 = vrot.slane %v1915, 4
      %v3291 = vor.u32 %v3289, %v3290
      %v3292 = vsel %vm3114, %v3152, %v3291
      %v3293 = vrot.slane %v1926, 3
      %v3294 = vrot.slane %v1922, 4
      %v3295 = vor.u32 %v3293, %v3294
      %v3296 = vsel %vm3114, %v3291, %v3295
      %v3297 = vrot.slane %v1933, 3
      %v3298 = vrot.slane %v1929, 4
      %v3299 = vor.u32 %v3297, %v3298
      %v3300 = vsel %vm3114, %v3295, %v3299
      %v3301 = vrot.slane %v1940, 3
      %v3302 = vrot.slane %v1936, 4
      %v3303 = vor.u32 %v3301, %v3302
      %v3304 = vsel %vm3114, %v3299, %v3303
      %v3305 = vrot.slane %v1947, 3
      %v3306 = vrot.slane %v1943, 4
      %v3307 = vor.u32 %v3305, %v3306
      %v3308 = vsel %vm3114, %v3303, %v3307
      %v3309 = vrot.slane %v1954, 3
      %v3310 = vrot.slane %v1950, 4
      %v3311 = vor.u32 %v3309, %v3310
      %v3312 = vsel %vm3114, %v3307, %v3311
      %v3313 = vrot.slane %v1961, 3
      %v3314 = vrot.slane %v1957, 4
      %v3315 = vor.u32 %v3313, %v3314
      %v3316 = vsel %vm3114, %v3311, %v3315
      %v3317 = vrot.slane %v1968, 3
      %v3318 = vrot.slane %v1964, 4
      %v3319 = vor.u32 %v3317, %v3318
      %v3320 = vsel %vm3114, %v3315, %v3319
      %v3321 = vrot.slane %v1975, 3
      %v3322 = vrot.slane %v1971, 4
      %v3323 = vor.u32 %v3321, %v3322
      %v3324 = vsel %vm3114, %v3319, %v3323
      %v3326 = vshrl.u32 %v2967, 16
      %v3328 = vrot.slane %v3326, 3
      %v3329 = vshll.u32 %v2967, 16
      %v3331 = vrot.slane %v3329, 4
      %v3332 = vor.u32 %v3328, %v3331
      %v3333 = vsel %vm3114, %v3323, %v3332
      %v3338 = vunpack.c.l.b16 %v3285
      %v3339 = vunpack.c.l.b16 %v3286
      %v3340 = vunpack.c.l.b16 %v3287
      %v3341 = vunpack.c.l.b16 %v3288
      %v3342 = vpack.c.b16 %v3339, %v3338
      %v3343 = vpack.c.b16 %v3341, %v3340
      %v3347 = vsel %vm1481, %v3292, 0
      %v3350 = vsel %vm1481, %v3296, 0
      %v3353 = vsel %vm1481, %v3300, 0
      %v3356 = vsel %vm1481, %v3304, 0
      %v3359 = vsel %vm1481, %v3308, 0
      %v3362 = vsel %vm1481, %v3312, 0
      %v3365 = vsel %vm1481, %v3316, 0
      %v3368 = vsel %vm1481, %v3320, 0
      %v3371 = vsel %vm1481, %v3324, 0
      %v3374 = vsel %vm1481, %v3333, 0
      %3376 = vmatpush.bf16.msra.mxu0 0
      %3377 = vmatpush.bf16.msra.mxu0 0
      %3378 = vmatpush.bf16.msra.mxu0 0
      %3379 = vmatpush.bf16.msra.mxu0 0
      %3380 = vmatpush.bf16.msra.mxu0 0
      %3381 = vmatpush.bf16.msra.mxu0 0
      %3382 = vmatpush.bf16.msra.mxu0 %v3343
      %3383 = vmatpush.bf16.msra.mxu0 %v3342
      %3384 = vmatmul.bf16.gmra.mxu0 %v3347
      %v3385 = vpop.f32.mrf.mxu0
      %v3386 = vadd.f32 0.0, %v3385
      %v3387 = vpop.f32.mrf.mxu0
      %v3388 = vadd.f32 0.0, %v3387
      %3389 = vmatmul.bf16.gmra.mxu0 %v3350
      %v3390 = vpop.f32.mrf.mxu0
      %v3391 = vadd.f32 0.0, %v3390
      %v3392 = vpop.f32.mrf.mxu0
      %v3393 = vadd.f32 0.0, %v3392
      %3394 = vmatmul.bf16.gmra.mxu0 %v3353
      %v3395 = vpop.f32.mrf.mxu0
      %v3396 = vadd.f32 0.0, %v3395
      %v3397 = vpop.f32.mrf.mxu0
      %v3398 = vadd.f32 0.0, %v3397
      %3399 = vmatmul.bf16.gmra.mxu0 %v3356
      %v3400 = vpop.f32.mrf.mxu0
      %v3401 = vadd.f32 0.0, %v3400
      %v3402 = vpop.f32.mrf.mxu0
      %v3403 = vadd.f32 0.0, %v3402
      %3404 = vmatmul.bf16.gmra.mxu0 %v3359
      %v3405 = vpop.f32.mrf.mxu0
      %v3406 = vadd.f32 0.0, %v3405
      %v3407 = vpop.f32.mrf.mxu0
      %v3408 = vadd.f32 0.0, %v3407
      %3409 = vmatmul.bf16.gmra.mxu0 %v3362
      %v3410 = vpop.f32.mrf.mxu0
      %v3411 = vadd.f32 0.0, %v3410
      %v3412 = vpop.f32.mrf.mxu0
      %v3413 = vadd.f32 0.0, %v3412
      %3414 = vmatmul.bf16.gmra.mxu0 %v3365
      %v3415 = vpop.f32.mrf.mxu0
      %v3416 = vadd.f32 0.0, %v3415
      %v3417 = vpop.f32.mrf.mxu0
      %v3418 = vadd.f32 0.0, %v3417
      %3419 = vmatmul.bf16.gmra.mxu0 %v3368
      %v3420 = vpop.f32.mrf.mxu0
      %v3421 = vadd.f32 0.0, %v3420
      %v3422 = vpop.f32.mrf.mxu0
      %v3423 = vadd.f32 0.0, %v3422
      %3424 = vmatmul.bf16.gmra.mxu0 %v3371
      %v3425 = vpop.f32.mrf.mxu0
      %v3426 = vadd.f32 0.0, %v3425
      %v3427 = vpop.f32.mrf.mxu0
      %v3428 = vadd.f32 0.0, %v3427
      %3429 = vmatmul.bf16.gmra.mxu0 %v3374
      %v3430 = vpop.f32.mrf.mxu0
      %v3431 = vadd.f32 0.0, %v3430
      %v3432 = vpop.f32.mrf.mxu0
      %v3433 = vadd.f32 0.0, %v3432
      %3434 = vdwg.mxu0
      %v3435 = vadd.f32 %v3264, %v3386
      %v3436 = vadd.f32 %v3265, %v3388
      %v3437 = vadd.f32 %v3266, %v3391
      %v3438 = vadd.f32 %v3267, %v3393
      %v3439 = vadd.f32 %v3268, %v3396
      %v3440 = vadd.f32 %v3269, %v3398
      %v3441 = vadd.f32 %v3270, %v3401
      %v3442 = vadd.f32 %v3271, %v3403
      %v3443 = vadd.f32 %v3272, %v3406
      %v3444 = vadd.f32 %v3273, %v3408
      %v3445 = vadd.f32 %v3274, %v3411
      %v3446 = vadd.f32 %v3275, %v3413
      %v3447 = vadd.f32 %v3276, %v3416
      %v3448 = vadd.f32 %v3277, %v3418
      %v3449 = vadd.f32 %v3278, %v3421
      %v3450 = vadd.f32 %v3279, %v3423
      %v3451 = vadd.f32 %v3280, %v3426
      %v3452 = vadd.f32 %v3281, %v3428
      %v3453 = vadd.f32 %v3282, %v3431
      %v3454 = vadd.f32 %v3283, %v3433
      %s3455 = scalar_lea.vmem %s3, 192
      %v3456 = vld [vmem:[%s3455] sm:$0xf]
      %v3457 = vld [vmem:[%s3455 + $0x4] sm:$0xf]
      %v3458 = vld [vmem:[%s3455 + $0x8] sm:$0xf]
      %v3459 = vld [vmem:[%s3455 + $0xc] sm:$0xf]
      %v3460 = vpack.c.b16 %v2290, %v2290
      %v3461 = vrot.slane %v2140, 3
      %v3462 = vsel %vm2819, %v2984, %v3461
      %v3463 = vrot.slane %v2141, 3
      %v3464 = vsel %vm2819, %v3461, %v3463
      %v3465 = vrot.slane %v2142, 3
      %v3466 = vsel %vm2819, %v3463, %v3465
      %v3467 = vrot.slane %v2143, 3
      %v3468 = vsel %vm2819, %v3465, %v3467
      %v3469 = vrot.slane %v2144, 3
      %v3470 = vsel %vm2819, %v3467, %v3469
      %v3471 = vrot.slane %v2145, 3
      %v3472 = vsel %vm2819, %v3469, %v3471
      %v3473 = vrot.slane %v2146, 3
      %v3474 = vsel %vm2819, %v3471, %v3473
      %v3475 = vrot.slane %v2147, 3
      %v3476 = vsel %vm2819, %v3473, %v3475
      %v3477 = vrot.slane %v2148, 3
      %v3478 = vsel %vm2819, %v3475, %v3477
      %v3479 = vrot.slane %v3460, 3
      %v3480 = vsel %vm2819, %v3477, %v3479
      %v3485 = vunpack.c.l.b16 %v3456
      %v3486 = vunpack.c.l.b16 %v3457
      %v3487 = vunpack.c.l.b16 %v3458
      %v3488 = vunpack.c.l.b16 %v3459
      %v3489 = vpack.c.b16 %v3486, %v3485
      %v3490 = vpack.c.b16 %v3488, %v3487
      %v3494 = vsel %vm1481, %v3462, 0
      %v3497 = vsel %vm1481, %v3464, 0
      %v3500 = vsel %vm1481, %v3466, 0
      %v3503 = vsel %vm1481, %v3468, 0
      %v3506 = vsel %vm1481, %v3470, 0
      %v3509 = vsel %vm1481, %v3472, 0
      %v3512 = vsel %vm1481, %v3474, 0
      %v3515 = vsel %vm1481, %v3476, 0
      %v3518 = vsel %vm1481, %v3478, 0
      %v3521 = vsel %vm1481, %v3480, 0
      %3523 = vmatpush.bf16.msra.mxu0 0
      %3524 = vmatpush.bf16.msra.mxu0 0
      %3525 = vmatpush.bf16.msra.mxu0 0
      %3526 = vmatpush.bf16.msra.mxu0 0
      %3527 = vmatpush.bf16.msra.mxu0 0
      %3528 = vmatpush.bf16.msra.mxu0 0
      %3529 = vmatpush.bf16.msra.mxu0 %v3490
      %3530 = vmatpush.bf16.msra.mxu0 %v3489
      %3531 = vmatmul.bf16.gmra.mxu0 %v3494
      %v3532 = vpop.f32.mrf.mxu0
      %v3533 = vadd.f32 0.0, %v3532
      %v3534 = vpop.f32.mrf.mxu0
      %v3535 = vadd.f32 0.0, %v3534
      %3536 = vmatmul.bf16.gmra.mxu0 %v3497
      %v3537 = vpop.f32.mrf.mxu0
      %v3538 = vadd.f32 0.0, %v3537
      %v3539 = vpop.f32.mrf.mxu0
      %v3540 = vadd.f32 0.0, %v3539
      %3541 = vmatmul.bf16.gmra.mxu0 %v3500
      %v3542 = vpop.f32.mrf.mxu0
      %v3543 = vadd.f32 0.0, %v3542
      %v3544 = vpop.f32.mrf.mxu0
      %v3545 = vadd.f32 0.0, %v3544
      %3546 = vmatmul.bf16.gmra.mxu0 %v3503
      %v3547 = vpop.f32.mrf.mxu0
      %v3548 = vadd.f32 0.0, %v3547
      %v3549 = vpop.f32.mrf.mxu0
      %v3550 = vadd.f32 0.0, %v3549
      %3551 = vmatmul.bf16.gmra.mxu0 %v3506
      %v3552 = vpop.f32.mrf.mxu0
      %v3553 = vadd.f32 0.0, %v3552
      %v3554 = vpop.f32.mrf.mxu0
      %v3555 = vadd.f32 0.0, %v3554
      %3556 = vmatmul.bf16.gmra.mxu0 %v3509
      %v3557 = vpop.f32.mrf.mxu0
      %v3558 = vadd.f32 0.0, %v3557
      %v3559 = vpop.f32.mrf.mxu0
      %v3560 = vadd.f32 0.0, %v3559
      %3561 = vmatmul.bf16.gmra.mxu0 %v3512
      %v3562 = vpop.f32.mrf.mxu0
      %v3563 = vadd.f32 0.0, %v3562
      %v3564 = vpop.f32.mrf.mxu0
      %v3565 = vadd.f32 0.0, %v3564
      %3566 = vmatmul.bf16.gmra.mxu0 %v3515
      %v3567 = vpop.f32.mrf.mxu0
      %v3568 = vadd.f32 0.0, %v3567
      %v3569 = vpop.f32.mrf.mxu0
      %v3570 = vadd.f32 0.0, %v3569
      %3571 = vmatmul.bf16.gmra.mxu0 %v3518
      %v3572 = vpop.f32.mrf.mxu0
      %v3573 = vadd.f32 0.0, %v3572
      %v3574 = vpop.f32.mrf.mxu0
      %v3575 = vadd.f32 0.0, %v3574
      %3576 = vmatmul.bf16.gmra.mxu0 %v3521
      %v3577 = vpop.f32.mrf.mxu0
      %v3578 = vadd.f32 0.0, %v3577
      %v3579 = vpop.f32.mrf.mxu0
      %v3580 = vadd.f32 0.0, %v3579
      %3581 = vdwg.mxu0
      %v3582 = vadd.f32 %v3435, %v3533
      %v3583 = vadd.f32 %v3436, %v3535
      %v3584 = vadd.f32 %v3437, %v3538
      %v3585 = vadd.f32 %v3438, %v3540
      %v3586 = vadd.f32 %v3439, %v3543
      %v3587 = vadd.f32 %v3440, %v3545
      %v3588 = vadd.f32 %v3441, %v3548
      %v3589 = vadd.f32 %v3442, %v3550
      %v3590 = vadd.f32 %v3443, %v3553
      %v3591 = vadd.f32 %v3444, %v3555
      %v3592 = vadd.f32 %v3445, %v3558
      %v3593 = vadd.f32 %v3446, %v3560
      %v3594 = vadd.f32 %v3447, %v3563
      %v3595 = vadd.f32 %v3448, %v3565
      %v3596 = vadd.f32 %v3449, %v3568
      %v3597 = vadd.f32 %v3450, %v3570
      %v3598 = vadd.f32 %v3451, %v3573
      %v3599 = vadd.f32 %v3452, %v3575
      %v3600 = vadd.f32 %v3453, %v3578
      %v3601 = vadd.f32 %v3454, %v3580
      %s3602 = scalar_lea.vmem %s3, 208
      %v3603 = vld [vmem:[%s3602] sm:$0xf]
      %v3604 = vld [vmem:[%s3602 + $0x4] sm:$0xf]
      %v3605 = vld [vmem:[%s3602 + $0x8] sm:$0xf]
      %v3606 = vld [vmem:[%s3602 + $0xc] sm:$0xf]
      %v3608 = vunpack.c.l.b16 %v1409
      %v3609 = vpack.c.b16 %v3608, %v3608
      %v3610 = vrot.slane %v2308, 3
      %v3611 = vsel %vm2819, %v3477, %v3610
      %v3612 = vrot.slane %v2309, 3
      %v3613 = vsel %vm2819, %v3610, %v3612
      %v3614 = vrot.slane %v2310, 3
      %v3615 = vsel %vm2819, %v3612, %v3614
      %v3616 = vrot.slane %v2311, 3
      %v3617 = vsel %vm2819, %v3614, %v3616
      %v3618 = vrot.slane %v2312, 3
      %v3619 = vsel %vm2819, %v3616, %v3618
      %v3620 = vrot.slane %v2313, 3
      %v3621 = vsel %vm2819, %v3618, %v3620
      %v3622 = vrot.slane %v2314, 3
      %v3623 = vsel %vm2819, %v3620, %v3622
      %v3624 = vrot.slane %v2315, 3
      %v3625 = vsel %vm2819, %v3622, %v3624
      %v3626 = vrot.slane %v2316, 3
      %v3627 = vsel %vm2819, %v3624, %v3626
      %v3628 = vrot.slane %v3609, 3
      %v3629 = vsel %vm2819, %v3626, %v3628
      %v3634 = vunpack.c.l.b16 %v3603
      %v3635 = vunpack.c.l.b16 %v3604
      %v3636 = vunpack.c.l.b16 %v3605
      %v3637 = vunpack.c.l.b16 %v3606
      %v3638 = vpack.c.b16 %v3635, %v3634
      %v3639 = vpack.c.b16 %v3637, %v3636
      %v3643 = vsel %vm1481, %v3611, 0
      %v3646 = vsel %vm1481, %v3613, 0
      %v3649 = vsel %vm1481, %v3615, 0
      %v3652 = vsel %vm1481, %v3617, 0
      %v3655 = vsel %vm1481, %v3619, 0
      %v3658 = vsel %vm1481, %v3621, 0
      %v3661 = vsel %vm1481, %v3623, 0
      %v3664 = vsel %vm1481, %v3625, 0
      %v3667 = vsel %vm1481, %v3627, 0
      %v3670 = vsel %vm1481, %v3629, 0
      %3672 = vmatpush.bf16.msra.mxu0 0
      %3673 = vmatpush.bf16.msra.mxu0 0
      %3674 = vmatpush.bf16.msra.mxu0 0
      %3675 = vmatpush.bf16.msra.mxu0 0
      %3676 = vmatpush.bf16.msra.mxu0 0
      %3677 = vmatpush.bf16.msra.mxu0 0
      %3678 = vmatpush.bf16.msra.mxu0 %v3639
      %3679 = vmatpush.bf16.msra.mxu0 %v3638
      %3680 = vmatmul.bf16.gmra.mxu0 %v3643
      %v3681 = vpop.f32.mrf.mxu0
      %v3682 = vadd.f32 0.0, %v3681
      %v3683 = vpop.f32.mrf.mxu0
      %v3684 = vadd.f32 0.0, %v3683
      %3685 = vmatmul.bf16.gmra.mxu0 %v3646
      %v3686 = vpop.f32.mrf.mxu0
      %v3687 = vadd.f32 0.0, %v3686
      %v3688 = vpop.f32.mrf.mxu0
      %v3689 = vadd.f32 0.0, %v3688
      %3690 = vmatmul.bf16.gmra.mxu0 %v3649
      %v3691 = vpop.f32.mrf.mxu0
      %v3692 = vadd.f32 0.0, %v3691
      %v3693 = vpop.f32.mrf.mxu0
      %v3694 = vadd.f32 0.0, %v3693
      %3695 = vmatmul.bf16.gmra.mxu0 %v3652
      %v3696 = vpop.f32.mrf.mxu0
      %v3697 = vadd.f32 0.0, %v3696
      %v3698 = vpop.f32.mrf.mxu0
      %v3699 = vadd.f32 0.0, %v3698
      %3700 = vmatmul.bf16.gmra.mxu0 %v3655
      %v3701 = vpop.f32.mrf.mxu0
      %v3702 = vadd.f32 0.0, %v3701
      %v3703 = vpop.f32.mrf.mxu0
      %v3704 = vadd.f32 0.0, %v3703
      %3705 = vmatmul.bf16.gmra.mxu0 %v3658
      %v3706 = vpop.f32.mrf.mxu0
      %v3707 = vadd.f32 0.0, %v3706
      %v3708 = vpop.f32.mrf.mxu0
      %v3709 = vadd.f32 0.0, %v3708
      %3710 = vmatmul.bf16.gmra.mxu0 %v3661
      %v3711 = vpop.f32.mrf.mxu0
      %v3712 = vadd.f32 0.0, %v3711
      %v3713 = vpop.f32.mrf.mxu0
      %v3714 = vadd.f32 0.0, %v3713
      %3715 = vmatmul.bf16.gmra.mxu0 %v3664
      %v3716 = vpop.f32.mrf.mxu0
      %v3717 = vadd.f32 0.0, %v3716
      %v3718 = vpop.f32.mrf.mxu0
      %v3719 = vadd.f32 0.0, %v3718
      %3720 = vmatmul.bf16.gmra.mxu0 %v3667
      %v3721 = vpop.f32.mrf.mxu0
      %v3722 = vadd.f32 0.0, %v3721
      %v3723 = vpop.f32.mrf.mxu0
      %v3724 = vadd.f32 0.0, %v3723
      %3725 = vmatmul.bf16.gmra.mxu0 %v3670
      %v3726 = vpop.f32.mrf.mxu0
      %v3727 = vadd.f32 0.0, %v3726
      %v3728 = vpop.f32.mrf.mxu0
      %v3729 = vadd.f32 0.0, %v3728
      %3730 = vdwg.mxu0
      %v3731 = vadd.f32 %v3582, %v3682
      %v3732 = vadd.f32 %v3583, %v3684
      %v3733 = vadd.f32 %v3584, %v3687
      %v3734 = vadd.f32 %v3585, %v3689
      %v3735 = vadd.f32 %v3586, %v3692
      %v3736 = vadd.f32 %v3587, %v3694
      %v3737 = vadd.f32 %v3588, %v3697
      %v3738 = vadd.f32 %v3589, %v3699
      %v3739 = vadd.f32 %v3590, %v3702
      %v3740 = vadd.f32 %v3591, %v3704
      %v3741 = vadd.f32 %v3592, %v3707
      %v3742 = vadd.f32 %v3593, %v3709
      %v3743 = vadd.f32 %v3594, %v3712
      %v3744 = vadd.f32 %v3595, %v3714
      %v3745 = vadd.f32 %v3596, %v3717
      %v3746 = vadd.f32 %v3597, %v3719
      %v3747 = vadd.f32 %v3598, %v3722
      %v3748 = vadd.f32 %v3599, %v3724
      %v3749 = vadd.f32 %v3600, %v3727
      %v3750 = vadd.f32 %v3601, %v3729
      %s3751 = scalar_lea.vmem %s3, 224
      %v3752 = vld [vmem:[%s3751] sm:$0xf]
      %v3753 = vld [vmem:[%s3751 + $0x4] sm:$0xf]
      %v3754 = vld [vmem:[%s3751 + $0x8] sm:$0xf]
      %v3755 = vld [vmem:[%s3751 + $0xc] sm:$0xf]
      %v3756 = vrot.slane %v2444, 3
      %v3757 = vrot.slane %v2440, 4
      %v3758 = vor.u32 %v3756, %v3757
      %v3759 = vsel %vm3114, %v3323, %v3758
      %v3760 = vrot.slane %v2451, 3
      %v3761 = vrot.slane %v2447, 4
      %v3762 = vor.u32 %v3760, %v3761
      %v3763 = vsel %vm3114, %v3758, %v3762
      %v3764 = vrot.slane %v2458, 3
      %v3765 = vrot.slane %v2454, 4
      %v3766 = vor.u32 %v3764, %v3765
      %v3767 = vsel %vm3114, %v3762, %v3766
      %v3768 = vrot.slane %v2465, 3
      %v3769 = vrot.slane %v2461, 4
      %v3770 = vor.u32 %v3768, %v3769
      %v3771 = vsel %vm3114, %v3766, %v3770
      %v3772 = vrot.slane %v2472, 3
      %v3773 = vrot.slane %v2468, 4
      %v3774 = vor.u32 %v3772, %v3773
      %v3775 = vsel %vm3114, %v3770, %v3774
      %v3776 = vrot.slane %v2479, 3
      %v3777 = vrot.slane %v2475, 4
      %v3778 = vor.u32 %v3776, %v3777
      %v3779 = vsel %vm3114, %v3774, %v3778
      %v3780 = vrot.slane %v2486, 3
      %v3781 = vrot.slane %v2482, 4
      %v3782 = vor.u32 %v3780, %v3781
      %v3783 = vsel %vm3114, %v3778, %v3782
      %v3784 = vrot.slane %v2493, 3
      %v3785 = vrot.slane %v2489, 4
      %v3786 = vor.u32 %v3784, %v3785
      %v3787 = vsel %vm3114, %v3782, %v3786
      %v3788 = vrot.slane %v2500, 3
      %v3789 = vrot.slane %v2496, 4
      %v3790 = vor.u32 %v3788, %v3789
      %v3791 = vsel %vm3114, %v3786, %v3790
      %v3793 = vshrl.u32 %v3460, 16
      %v3795 = vrot.slane %v3793, 3
      %v3796 = vshll.u32 %v3460, 16
      %v3798 = vrot.slane %v3796, 4
      %v3799 = vor.u32 %v3795, %v3798
      %v3800 = vsel %vm3114, %v3790, %v3799
      %v3805 = vunpack.c.l.b16 %v3752
      %v3806 = vunpack.c.l.b16 %v3753
      %v3807 = vunpack.c.l.b16 %v3754
      %v3808 = vunpack.c.l.b16 %v3755
      %v3809 = vpack.c.b16 %v3806, %v3805
      %v3810 = vpack.c.b16 %v3808, %v3807
      %v3814 = vsel %vm1481, %v3759, 0
      %v3817 = vsel %vm1481, %v3763, 0
      %v3820 = vsel %vm1481, %v3767, 0
      %v3823 = vsel %vm1481, %v3771, 0
      %v3826 = vsel %vm1481, %v3775, 0
      %v3829 = vsel %vm1481, %v3779, 0
      %v3832 = vsel %vm1481, %v3783, 0
      %v3835 = vsel %vm1481, %v3787, 0
      %v3838 = vsel %vm1481, %v3791, 0
      %v3841 = vsel %vm1481, %v3800, 0
      %3843 = vmatpush.bf16.msra.mxu0 0
      %3844 = vmatpush.bf16.msra.mxu0 0
      %3845 = vmatpush.bf16.msra.mxu0 0
      %3846 = vmatpush.bf16.msra.mxu0 0
      %3847 = vmatpush.bf16.msra.mxu0 0
      %3848 = vmatpush.bf16.msra.mxu0 0
      %3849 = vmatpush.bf16.msra.mxu0 %v3810
      %3850 = vmatpush.bf16.msra.mxu0 %v3809
      %3851 = vmatmul.bf16.gmra.mxu0 %v3814
      %v3852 = vpop.f32.mrf.mxu0
      %v3853 = vadd.f32 0.0, %v3852
      %v3854 = vpop.f32.mrf.mxu0
      %v3855 = vadd.f32 0.0, %v3854
      %3856 = vmatmul.bf16.gmra.mxu0 %v3817
      %v3857 = vpop.f32.mrf.mxu0
      %v3858 = vadd.f32 0.0, %v3857
      %v3859 = vpop.f32.mrf.mxu0
      %v3860 = vadd.f32 0.0, %v3859
      %3861 = vmatmul.bf16.gmra.mxu0 %v3820
      %v3862 = vpop.f32.mrf.mxu0
      %v3863 = vadd.f32 0.0, %v3862
      %v3864 = vpop.f32.mrf.mxu0
      %v3865 = vadd.f32 0.0, %v3864
      %3866 = vmatmul.bf16.gmra.mxu0 %v3823
      %v3867 = vpop.f32.mrf.mxu0
      %v3868 = vadd.f32 0.0, %v3867
      %v3869 = vpop.f32.mrf.mxu0
      %v3870 = vadd.f32 0.0, %v3869
      %3871 = vmatmul.bf16.gmra.mxu0 %v3826
      %v3872 = vpop.f32.mrf.mxu0
      %v3873 = vadd.f32 0.0, %v3872
      %v3874 = vpop.f32.mrf.mxu0
      %v3875 = vadd.f32 0.0, %v3874
      %3876 = vmatmul.bf16.gmra.mxu0 %v3829
      %v3877 = vpop.f32.mrf.mxu0
      %v3878 = vadd.f32 0.0, %v3877
      %v3879 = vpop.f32.mrf.mxu0
      %v3880 = vadd.f32 0.0, %v3879
      %3881 = vmatmul.bf16.gmra.mxu0 %v3832
      %v3882 = vpop.f32.mrf.mxu0
      %v3883 = vadd.f32 0.0, %v3882
      %v3884 = vpop.f32.mrf.mxu0
      %v3885 = vadd.f32 0.0, %v3884
      %3886 = vmatmul.bf16.gmra.mxu0 %v3835
      %v3887 = vpop.f32.mrf.mxu0
      %v3888 = vadd.f32 0.0, %v3887
      %v3889 = vpop.f32.mrf.mxu0
      %v3890 = vadd.f32 0.0, %v3889
      %3891 = vmatmul.bf16.gmra.mxu0 %v3838
      %v3892 = vpop.f32.mrf.mxu0
      %v3893 = vadd.f32 0.0, %v3892
      %v3894 = vpop.f32.mrf.mxu0
      %v3895 = vadd.f32 0.0, %v3894
      %3896 = vmatmul.bf16.gmra.mxu0 %v3841
      %v3897 = vpop.f32.mrf.mxu0
      %v3898 = vadd.f32 0.0, %v3897
      %v3899 = vpop.f32.mrf.mxu0
      %v3900 = vadd.f32 0.0, %v3899
      %3901 = vdwg.mxu0
      %v3902 = vadd.f32 %v3731, %v3853
      %v3903 = vadd.f32 %v3732, %v3855
      %v3904 = vadd.f32 %v3733, %v3858
      %v3905 = vadd.f32 %v3734, %v3860
      %v3906 = vadd.f32 %v3735, %v3863
      %v3907 = vadd.f32 %v3736, %v3865
      %v3908 = vadd.f32 %v3737, %v3868
      %v3909 = vadd.f32 %v3738, %v3870
      %v3910 = vadd.f32 %v3739, %v3873
      %v3911 = vadd.f32 %v3740, %v3875
      %v3912 = vadd.f32 %v3741, %v3878
      %v3913 = vadd.f32 %v3742, %v3880
      %v3914 = vadd.f32 %v3743, %v3883
      %v3915 = vadd.f32 %v3744, %v3885
      %v3916 = vadd.f32 %v3745, %v3888
      %v3917 = vadd.f32 %v3746, %v3890
      %v3918 = vadd.f32 %v3747, %v3893
      %v3919 = vadd.f32 %v3748, %v3895
      %v3920 = vadd.f32 %v3749, %v3898
      %v3921 = vadd.f32 %v3750, %v3900
      %s3922 = scalar_lea.vmem %s3, 240
      %v3923 = vld [vmem:[%s3922] sm:$0xf]
      %v3924 = vld [vmem:[%s3922 + $0x4] sm:$0xf]
      %v3925 = vld [vmem:[%s3922 + $0x8] sm:$0xf]
      %v3926 = vld [vmem:[%s3922 + $0xc] sm:$0xf]
      %v3927 = vrot.slane %v2633, 3
      %v3928 = vrot.slane %v2629, 4
      %v3929 = vor.u32 %v3927, %v3928
      %v3930 = vsel %vm3114, %v3790, %v3929
      %v3931 = vrot.slane %v2640, 3
      %v3932 = vrot.slane %v2636, 4
      %v3933 = vor.u32 %v3931, %v3932
      %v3934 = vsel %vm3114, %v3929, %v3933
      %v3935 = vrot.slane %v2647, 3
      %v3936 = vrot.slane %v2643, 4
      %v3937 = vor.u32 %v3935, %v3936
      %v3938 = vsel %vm3114, %v3933, %v3937
      %v3939 = vrot.slane %v2654, 3
      %v3940 = vrot.slane %v2650, 4
      %v3941 = vor.u32 %v3939, %v3940
      %v3942 = vsel %vm3114, %v3937, %v3941
      %v3943 = vrot.slane %v2661, 3
      %v3944 = vrot.slane %v2657, 4
      %v3945 = vor.u32 %v3943, %v3944
      %v3946 = vsel %vm3114, %v3941, %v3945
      %v3947 = vrot.slane %v2668, 3
      %v3948 = vrot.slane %v2664, 4
      %v3949 = vor.u32 %v3947, %v3948
      %v3950 = vsel %vm3114, %v3945, %v3949
      %v3951 = vrot.slane %v2675, 3
      %v3952 = vrot.slane %v2671, 4
      %v3953 = vor.u32 %v3951, %v3952
      %v3954 = vsel %vm3114, %v3949, %v3953
      %v3955 = vrot.slane %v2682, 3
      %v3956 = vrot.slane %v2678, 4
      %v3957 = vor.u32 %v3955, %v3956
      %v3958 = vsel %vm3114, %v3953, %v3957
      %v3959 = vrot.slane %v2689, 3
      %v3960 = vrot.slane %v2685, 4
      %v3961 = vor.u32 %v3959, %v3960
      %v3962 = vsel %vm3114, %v3957, %v3961
      %v3964 = vshrl.u32 %v3609, 16
      %v3966 = vrot.slane %v3964, 3
      %v3967 = vshll.u32 %v3609, 16
      %v3969 = vrot.slane %v3967, 4
      %v3970 = vor.u32 %v3966, %v3969
      %v3971 = vsel %vm3114, %v3961, %v3970
      %v3976 = vunpack.c.l.b16 %v3923
      %v3977 = vunpack.c.l.b16 %v3924
      %v3978 = vunpack.c.l.b16 %v3925
      %v3979 = vunpack.c.l.b16 %v3926
      %v3980 = vpack.c.b16 %v3977, %v3976
      %v3981 = vpack.c.b16 %v3979, %v3978
      %v3985 = vsel %vm1481, %v3930, 0
      %v3988 = vsel %vm1481, %v3934, 0
      %v3991 = vsel %vm1481, %v3938, 0
      %v3994 = vsel %vm1481, %v3942, 0
      %v3997 = vsel %vm1481, %v3946, 0
      %v4000 = vsel %vm1481, %v3950, 0
      %v4003 = vsel %vm1481, %v3954, 0
      %v4006 = vsel %vm1481, %v3958, 0
      %v4009 = vsel %vm1481, %v3962, 0
      %v4012 = vsel %vm1481, %v3971, 0
      %4014 = vmatpush.bf16.msra.mxu0 0
      %4015 = vmatpush.bf16.msra.mxu0 0
      %4016 = vmatpush.bf16.msra.mxu0 0
      %4017 = vmatpush.bf16.msra.mxu0 0
      %4018 = vmatpush.bf16.msra.mxu0 0
      %4019 = vmatpush.bf16.msra.mxu0 0
      %4020 = vmatpush.bf16.msra.mxu0 %v3981
      %4021 = vmatpush.bf16.msra.mxu0 %v3980
      %4022 = vmatmul.bf16.gmra.mxu0 %v3985
      %v4023 = vpop.f32.mrf.mxu0
      %v4024 = vadd.f32 0.0, %v4023
      %v4025 = vpop.f32.mrf.mxu0
      %v4026 = vadd.f32 0.0, %v4025
      %4027 = vmatmul.bf16.gmra.mxu0 %v3988
      %v4028 = vpop.f32.mrf.mxu0
      %v4029 = vadd.f32 0.0, %v4028
      %v4030 = vpop.f32.mrf.mxu0
      %v4031 = vadd.f32 0.0, %v4030
      %4032 = vmatmul.bf16.gmra.mxu0 %v3991
      %v4033 = vpop.f32.mrf.mxu0
      %v4034 = vadd.f32 0.0, %v4033
      %v4035 = vpop.f32.mrf.mxu0
      %v4036 = vadd.f32 0.0, %v4035
      %4037 = vmatmul.bf16.gmra.mxu0 %v3994
      %v4038 = vpop.f32.mrf.mxu0
      %v4039 = vadd.f32 0.0, %v4038
      %v4040 = vpop.f32.mrf.mxu0
      %v4041 = vadd.f32 0.0, %v4040
      %4042 = vmatmul.bf16.gmra.mxu0 %v3997
      %v4043 = vpop.f32.mrf.mxu0
      %v4044 = vadd.f32 0.0, %v4043
      %v4045 = vpop.f32.mrf.mxu0
      %v4046 = vadd.f32 0.0, %v4045
      %4047 = vmatmul.bf16.gmra.mxu0 %v4000
      %v4048 = vpop.f32.mrf.mxu0
      %v4049 = vadd.f32 0.0, %v4048
      %v4050 = vpop.f32.mrf.mxu0
      %v4051 = vadd.f32 0.0, %v4050
      %4052 = vmatmul.bf16.gmra.mxu0 %v4003
      %v4053 = vpop.f32.mrf.mxu0
      %v4054 = vadd.f32 0.0, %v4053
      %v4055 = vpop.f32.mrf.mxu0
      %v4056 = vadd.f32 0.0, %v4055
      %4057 = vmatmul.bf16.gmra.mxu0 %v4006
      %v4058 = vpop.f32.mrf.mxu0
      %v4059 = vadd.f32 0.0, %v4058
      %v4060 = vpop.f32.mrf.mxu0
      %v4061 = vadd.f32 0.0, %v4060
      %4062 = vmatmul.bf16.gmra.mxu0 %v4009
      %v4063 = vpop.f32.mrf.mxu0
      %v4064 = vadd.f32 0.0, %v4063
      %v4065 = vpop.f32.mrf.mxu0
      %v4066 = vadd.f32 0.0, %v4065
      %4067 = vmatmul.bf16.gmra.mxu0 %v4012
      %v4068 = vpop.f32.mrf.mxu0
      %v4069 = vadd.f32 0.0, %v4068
      %v4070 = vpop.f32.mrf.mxu0
      %v4071 = vadd.f32 0.0, %v4070
      %4072 = vdwg.mxu0
      %v4073 = vadd.f32 %v3902, %v4024
      %v4074 = vadd.f32 %v3903, %v4026
      %v4075 = vadd.f32 %v3904, %v4029
      %v4076 = vadd.f32 %v3905, %v4031
      %v4077 = vadd.f32 %v3906, %v4034
      %v4078 = vadd.f32 %v3907, %v4036
      %v4079 = vadd.f32 %v3908, %v4039
      %v4080 = vadd.f32 %v3909, %v4041
      %v4081 = vadd.f32 %v3910, %v4044
      %v4082 = vadd.f32 %v3911, %v4046
      %v4083 = vadd.f32 %v3912, %v4049
      %v4084 = vadd.f32 %v3913, %v4051
      %v4085 = vadd.f32 %v3914, %v4054
      %v4086 = vadd.f32 %v3915, %v4056
      %v4087 = vadd.f32 %v3916, %v4059
      %v4088 = vadd.f32 %v3917, %v4061
      %v4089 = vadd.f32 %v3918, %v4064
      %v4090 = vadd.f32 %v3919, %v4066
      %v4091 = vadd.f32 %v3920, %v4069
      %v4092 = vadd.f32 %v3921, %v4071
      %v4093 = vld [vmem:[%s4] sm:$0x1]
      %v4095 = vperm.slane %v4093, 0
      %v4097 = vadd.f32 %v4073, %v4095
      %v4098 = vadd.f32 %v4074, %v4095
      %v4099 = vadd.f32 %v4075, %v4095
      %v4100 = vadd.f32 %v4076, %v4095
      %v4101 = vadd.f32 %v4077, %v4095
      %v4102 = vadd.f32 %v4078, %v4095
      %v4103 = vadd.f32 %v4079, %v4095
      %v4104 = vadd.f32 %v4080, %v4095
      %v4105 = vadd.f32 %v4081, %v4095
      %v4106 = vadd.f32 %v4082, %v4095
      %v4107 = vadd.f32 %v4083, %v4095
      %v4108 = vadd.f32 %v4084, %v4095
      %v4109 = vadd.f32 %v4085, %v4095
      %v4110 = vadd.f32 %v4086, %v4095
      %v4111 = vadd.f32 %v4087, %v4095
      %v4112 = vadd.f32 %v4088, %v4095
      %v4113 = vadd.f32 %v4089, %v4095
      %v4114 = vadd.f32 %v4090, %v4095
      %v4115 = vadd.f32 %v4091, %v4095
      %v4116 = vadd.f32 %v4092, %v4095
      %v4117 = vmax.f32 %v4097, 0.0
      %v4118 = vmax.f32 %v4098, 0.0
      %v4119 = vmax.f32 %v4099, 0.0
      %v4120 = vmax.f32 %v4100, 0.0
      %v4121 = vmax.f32 %v4101, 0.0
      %v4122 = vmax.f32 %v4102, 0.0
      %v4123 = vmax.f32 %v4103, 0.0
      %v4124 = vmax.f32 %v4104, 0.0
      %v4125 = vmax.f32 %v4105, 0.0
      %v4126 = vmax.f32 %v4106, 0.0
      %v4127 = vmax.f32 %v4107, 0.0
      %v4128 = vmax.f32 %v4108, 0.0
      %v4129 = vmax.f32 %v4109, 0.0
      %v4130 = vmax.f32 %v4110, 0.0
      %v4131 = vmax.f32 %v4111, 0.0
      %v4132 = vmax.f32 %v4112, 0.0
      %v4133 = vmax.f32 %v4113, 0.0
      %v4134 = vmax.f32 %v4114, 0.0
      %v4135 = vmax.f32 %v4115, 0.0
      %v4136 = vmax.f32 %v4116, 0.0
      %v4137 = vpack.c.bf16 %v4117, %v4117
      %v4138 = vpack.c.bf16 %v4118, %v4118
      %v4139 = vpack.c.bf16 %v4119, %v4119
      %v4140 = vpack.c.bf16 %v4120, %v4120
      %v4141 = vpack.c.bf16 %v4121, %v4121
      %v4142 = vpack.c.bf16 %v4122, %v4122
      %v4143 = vpack.c.bf16 %v4123, %v4123
      %v4144 = vpack.c.bf16 %v4124, %v4124
      %v4145 = vpack.c.bf16 %v4125, %v4125
      %v4146 = vpack.c.bf16 %v4126, %v4126
      %v4147 = vpack.c.bf16 %v4127, %v4127
      %v4148 = vpack.c.bf16 %v4128, %v4128
      %v4149 = vpack.c.bf16 %v4129, %v4129
      %v4150 = vpack.c.bf16 %v4130, %v4130
      %v4151 = vpack.c.bf16 %v4131, %v4131
      %v4152 = vpack.c.bf16 %v4132, %v4132
      %v4153 = vpack.c.bf16 %v4133, %v4133
      %v4154 = vpack.c.bf16 %v4134, %v4134
      %v4155 = vpack.c.bf16 %v4135, %v4135
      %v4156 = vpack.c.bf16 %v4136, %v4136
      %v4157 = vld [vmem:[%s5] sm:$0xf]
      %v4158 = vld [vmem:[%s5 + $0x4] sm:$0xf]
      %v4159 = vld [vmem:[%s5 + $0x8] sm:$0xf]
      %v4160 = vld [vmem:[%s5 + $0xc] sm:$0xf]
      %v4161 = vld [vmem:[%s5 + $0x10] sm:$0xf]
      %v4162 = vld [vmem:[%s5 + $0x14] sm:$0xf]
      %v4163 = vld [vmem:[%s5 + $0x18] sm:$0xf]
      %v4164 = vld [vmem:[%s5 + $0x1c] sm:$0xf]
      %s4165 = scalar_lea.vmem %s5, 32
      %v4166 = vld [vmem:[%s4165] sm:$0xf]
      %v4167 = vld [vmem:[%s4165 + $0x4] sm:$0xf]
      %v4168 = vld [vmem:[%s4165 + $0x8] sm:$0xf]
      %v4169 = vld [vmem:[%s4165 + $0xc] sm:$0xf]
      %v4170 = vld [vmem:[%s4165 + $0x10] sm:$0xf]
      %v4171 = vld [vmem:[%s4165 + $0x14] sm:$0xf]
      %v4172 = vld [vmem:[%s4165 + $0x18] sm:$0xf]
      %v4173 = vld [vmem:[%s4165 + $0x1c] sm:$0xf]
      %v4193 = vunpack.c.l.b16 %v4137
      %v4194 = vunpack.c.l.b16 %v4138
      %v4195 = vunpack.c.l.b16 %v4139
      %v4196 = vunpack.c.l.b16 %v4140
      %v4197 = vunpack.c.l.b16 %v4141
      %v4198 = vunpack.c.l.b16 %v4142
      %v4199 = vunpack.c.l.b16 %v4143
      %v4200 = vunpack.c.l.b16 %v4144
      %v4201 = vunpack.c.l.b16 %v4145
      %v4202 = vunpack.c.l.b16 %v4146
      %v4203 = vunpack.c.l.b16 %v4147
      %v4204 = vunpack.c.l.b16 %v4148
      %v4205 = vunpack.c.l.b16 %v4149
      %v4206 = vunpack.c.l.b16 %v4150
      %v4207 = vunpack.c.l.b16 %v4151
      %v4208 = vunpack.c.l.b16 %v4152
      %v4209 = vunpack.c.l.b16 %v4153
      %v4210 = vunpack.c.l.b16 %v4154
      %v4211 = vunpack.c.l.b16 %v4155
      %v4212 = vpack.c.b16 %v4194, %v4193
      %v4213 = vpack.c.b16 %v4196, %v4195
      %v4214 = vpack.c.b16 %v4198, %v4197
      %v4215 = vpack.c.b16 %v4200, %v4199
      %v4216 = vpack.c.b16 %v4202, %v4201
      %v4217 = vpack.c.b16 %v4204, %v4203
      %v4218 = vpack.c.b16 %v4206, %v4205
      %v4219 = vpack.c.b16 %v4208, %v4207
      %v4220 = vpack.c.b16 %v4210, %v4209
      %v4221 = vpack.c.b16 %v4211, %v4211
      %v4223 = vshrl.u32 %v4212, 16
      %v4225 = vshll.u32 %v4212, 16
      %v4227 = vrot.slane %v4225, 1
      %v4228 = vor.u32 %v4223, %v4227
      %v4230 = vshll.u32 %v4213, 16
      %v4232 = vrot.slane %v4230, 1
      %v4233 = vsel %vm1719, %v4228, %v4232
      %v4234 = vshrl.u32 %v4213, 16
      %v4236 = vor.u32 %v4234, %v4232
      %v4238 = vshll.u32 %v4214, 16
      %v4240 = vrot.slane %v4238, 1
      %v4241 = vsel %vm1719, %v4236, %v4240
      %v4242 = vshrl.u32 %v4214, 16
      %v4244 = vor.u32 %v4242, %v4240
      %v4246 = vshll.u32 %v4215, 16
      %v4248 = vrot.slane %v4246, 1
      %v4249 = vsel %vm1719, %v4244, %v4248
      %v4250 = vshrl.u32 %v4215, 16
      %v4252 = vor.u32 %v4250, %v4248
      %v4254 = vshll.u32 %v4216, 16
      %v4256 = vrot.slane %v4254, 1
      %v4257 = vsel %vm1719, %v4252, %v4256
      %v4258 = vshrl.u32 %v4216, 16
      %v4260 = vor.u32 %v4258, %v4256
      %v4262 = vshll.u32 %v4217, 16
      %v4264 = vrot.slane %v4262, 1
      %v4265 = vsel %vm1719, %v4260, %v4264
      %v4266 = vshrl.u32 %v4217, 16
      %v4268 = vor.u32 %v4266, %v4264
      %v4270 = vshll.u32 %v4218, 16
      %v4272 = vrot.slane %v4270, 1
      %v4273 = vsel %vm1719, %v4268, %v4272
      %v4274 = vshrl.u32 %v4218, 16
      %v4276 = vor.u32 %v4274, %v4272
      %v4278 = vshll.u32 %v4219, 16
      %v4280 = vrot.slane %v4278, 1
      %v4281 = vsel %vm1719, %v4276, %v4280
      %v4282 = vshrl.u32 %v4219, 16
      %v4284 = vor.u32 %v4282, %v4280
      %v4286 = vshll.u32 %v4220, 16
      %v4288 = vrot.slane %v4286, 1
      %v4289 = vsel %vm1719, %v4284, %v4288
      %v4290 = vshrl.u32 %v4220, 16
      %v4292 = vor.u32 %v4290, %v4288
      %v4294 = vshll.u32 %v4221, 16
      %v4296 = vrot.slane %v4294, 1
      %v4297 = vsel %vm1719, %v4292, %v4296
      %v4306 = vunpack.c.l.b16 %v4166
      %v4307 = vunpack.c.l.b16 %v4167
      %v4308 = vunpack.c.l.b16 %v4168
      %v4309 = vunpack.c.l.b16 %v4169
      %v4310 = vunpack.c.l.b16 %v4170
      %v4311 = vunpack.c.l.b16 %v4171
      %v4312 = vunpack.c.l.b16 %v4172
      %v4313 = vunpack.c.l.b16 %v4173
      %v4314 = vpack.c.b16 %v4307, %v4306
      %v4315 = vpack.c.b16 %v4309, %v4308
      %v4316 = vpack.c.b16 %v4311, %v4310
      %v4317 = vpack.c.b16 %v4313, %v4312
      %vm4322 = vcmask 523264
      %v4324 = vsel %vm4322, %v4233, 0
      %v4327 = vsel %vm4322, %v4241, 0
      %v4330 = vsel %vm4322, %v4249, 0
      %v4333 = vsel %vm4322, %v4257, 0
      %v4336 = vsel %vm4322, %v4265, 0
      %v4339 = vsel %vm4322, %v4273, 0
      %v4342 = vsel %vm4322, %v4281, 0
      %v4345 = vsel %vm4322, %v4289, 0
      %v4348 = vsel %vm4322, %v4297, 0
      %4350 = vmatpush.bf16.msra.mxu0 0
      %4351 = vmatpush.bf16.msra.mxu0 0
      %4352 = vmatpush.bf16.msra.mxu0 0
      %4353 = vmatpush.bf16.msra.mxu0 0
      %4354 = vmatpush.bf16.msra.mxu0 %v4317
      %4355 = vmatpush.bf16.msra.mxu0 %v4316
      %4356 = vmatpush.bf16.msra.mxu0 %v4315
      %4357 = vmatpush.bf16.msra.mxu0 %v4314
      %4358 = vmatmul.bf16.gmra.mxu0 %v4324
      %v4359 = vpop.f32.mrf.mxu0
      %v4360 = vadd.f32 0.0, %v4359
      %v4361 = vpop.f32.mrf.mxu0
      %v4362 = vadd.f32 0.0, %v4361
      %4363 = vmatmul.bf16.gmra.mxu0 %v4327
      %v4364 = vpop.f32.mrf.mxu0
      %v4365 = vadd.f32 0.0, %v4364
      %v4366 = vpop.f32.mrf.mxu0
      %v4367 = vadd.f32 0.0, %v4366
      %4368 = vmatmul.bf16.gmra.mxu0 %v4330
      %v4369 = vpop.f32.mrf.mxu0
      %v4370 = vadd.f32 0.0, %v4369
      %v4371 = vpop.f32.mrf.mxu0
      %v4372 = vadd.f32 0.0, %v4371
      %4373 = vmatmul.bf16.gmra.mxu0 %v4333
      %v4374 = vpop.f32.mrf.mxu0
      %v4375 = vadd.f32 0.0, %v4374
      %v4376 = vpop.f32.mrf.mxu0
      %v4377 = vadd.f32 0.0, %v4376
      %4378 = vmatmul.bf16.gmra.mxu0 %v4336
      %v4379 = vpop.f32.mrf.mxu0
      %v4380 = vadd.f32 0.0, %v4379
      %v4381 = vpop.f32.mrf.mxu0
      %v4382 = vadd.f32 0.0, %v4381
      %4383 = vmatmul.bf16.gmra.mxu0 %v4339
      %v4384 = vpop.f32.mrf.mxu0
      %v4385 = vadd.f32 0.0, %v4384
      %v4386 = vpop.f32.mrf.mxu0
      %v4387 = vadd.f32 0.0, %v4386
      %4388 = vmatmul.bf16.gmra.mxu0 %v4342
      %v4389 = vpop.f32.mrf.mxu0
      %v4390 = vadd.f32 0.0, %v4389
      %v4391 = vpop.f32.mrf.mxu0
      %v4392 = vadd.f32 0.0, %v4391
      %4393 = vmatmul.bf16.gmra.mxu0 %v4345
      %v4394 = vpop.f32.mrf.mxu0
      %v4395 = vadd.f32 0.0, %v4394
      %v4396 = vpop.f32.mrf.mxu0
      %v4397 = vadd.f32 0.0, %v4396
      %4398 = vmatmul.bf16.gmra.mxu0 %v4348
      %v4399 = vpop.f32.mrf.mxu0
      %v4400 = vadd.f32 0.0, %v4399
      %v4401 = vpop.f32.mrf.mxu0
      %v4402 = vadd.f32 0.0, %v4401
      %4403 = vdwg.mxu0
      %v4412 = vunpack.c.l.b16 %v4157
      %v4413 = vunpack.c.l.b16 %v4158
      %v4414 = vunpack.c.l.b16 %v4159
      %v4415 = vunpack.c.l.b16 %v4160
      %v4416 = vunpack.c.l.b16 %v4161
      %v4417 = vunpack.c.l.b16 %v4162
      %v4418 = vunpack.c.l.b16 %v4163
      %v4419 = vunpack.c.l.b16 %v4164
      %v4420 = vpack.c.b16 %v4413, %v4412
      %v4421 = vpack.c.b16 %v4415, %v4414
      %v4422 = vpack.c.b16 %v4417, %v4416
      %v4423 = vpack.c.b16 %v4419, %v4418
      %v4428 = vsel %vm4322, %v4212, 0
      %v4430 = vsel %vm4322, %v4213, 0
      %v4432 = vsel %vm4322, %v4214, 0
      %v4434 = vsel %vm4322, %v4215, 0
      %v4436 = vsel %vm4322, %v4216, 0
      %v4438 = vsel %vm4322, %v4217, 0
      %v4440 = vsel %vm4322, %v4218, 0
      %v4442 = vsel %vm4322, %v4219, 0
      %v4444 = vsel %vm4322, %v4220, 0
      %4446 = vmatpush.bf16.msra.mxu0 0
      %4447 = vmatpush.bf16.msra.mxu0 0
      %4448 = vmatpush.bf16.msra.mxu0 0
      %4449 = vmatpush.bf16.msra.mxu0 0
      %4450 = vmatpush.bf16.msra.mxu0 %v4423
      %4451 = vmatpush.bf16.msra.mxu0 %v4422
      %4452 = vmatpush.bf16.msra.mxu0 %v4421
      %4453 = vmatpush.bf16.msra.mxu0 %v4420
      %4454 = vmatmul.bf16.gmra.mxu0 %v4428
      %v4455 = vpop.f32.mrf.mxu0
      %v4456 = vadd.f32 %v4360, %v4455
      %v4457 = vpop.f32.mrf.mxu0
      %v4458 = vadd.f32 %v4362, %v4457
      %4459 = vmatmul.bf16.gmra.mxu0 %v4430
      %v4460 = vpop.f32.mrf.mxu0
      %v4461 = vadd.f32 %v4365, %v4460
      %v4462 = vpop.f32.mrf.mxu0
      %v4463 = vadd.f32 %v4367, %v4462
      %4464 = vmatmul.bf16.gmra.mxu0 %v4432
      %v4465 = vpop.f32.mrf.mxu0
      %v4466 = vadd.f32 %v4370, %v4465
      %v4467 = vpop.f32.mrf.mxu0
      %v4468 = vadd.f32 %v4372, %v4467
      %4469 = vmatmul.bf16.gmra.mxu0 %v4434
      %v4470 = vpop.f32.mrf.mxu0
      %v4471 = vadd.f32 %v4375, %v4470
      %v4472 = vpop.f32.mrf.mxu0
      %v4473 = vadd.f32 %v4377, %v4472
      %4474 = vmatmul.bf16.gmra.mxu0 %v4436
      %v4475 = vpop.f32.mrf.mxu0
      %v4476 = vadd.f32 %v4380, %v4475
      %v4477 = vpop.f32.mrf.mxu0
      %v4478 = vadd.f32 %v4382, %v4477
      %4479 = vmatmul.bf16.gmra.mxu0 %v4438
      %v4480 = vpop.f32.mrf.mxu0
      %v4481 = vadd.f32 %v4385, %v4480
      %v4482 = vpop.f32.mrf.mxu0
      %v4483 = vadd.f32 %v4387, %v4482
      %4484 = vmatmul.bf16.gmra.mxu0 %v4440
      %v4485 = vpop.f32.mrf.mxu0
      %v4486 = vadd.f32 %v4390, %v4485
      %v4487 = vpop.f32.mrf.mxu0
      %v4488 = vadd.f32 %v4392, %v4487
      %4489 = vmatmul.bf16.gmra.mxu0 %v4442
      %v4490 = vpop.f32.mrf.mxu0
      %v4491 = vadd.f32 %v4395, %v4490
      %v4492 = vpop.f32.mrf.mxu0
      %v4493 = vadd.f32 %v4397, %v4492
      %4494 = vmatmul.bf16.gmra.mxu0 %v4444
      %v4495 = vpop.f32.mrf.mxu0
      %v4496 = vadd.f32 %v4400, %v4495
      %v4497 = vpop.f32.mrf.mxu0
      %v4498 = vadd.f32 %v4402, %v4497
      %4499 = vdwg.mxu0
      %s4500 = scalar_lea.vmem %s5, 64
      %v4501 = vld [vmem:[%s4500] sm:$0xf]
      %v4502 = vld [vmem:[%s4500 + $0x4] sm:$0xf]
      %v4503 = vld [vmem:[%s4500 + $0x8] sm:$0xf]
      %v4504 = vld [vmem:[%s4500 + $0xc] sm:$0xf]
      %v4505 = vld [vmem:[%s4500 + $0x10] sm:$0xf]
      %v4506 = vld [vmem:[%s4500 + $0x14] sm:$0xf]
      %v4507 = vld [vmem:[%s4500 + $0x18] sm:$0xf]
      %v4508 = vld [vmem:[%s4500 + $0x1c] sm:$0xf]
      %vm4509 = vcmask 1046528
      %v4510 = vrot.slane %v4212, 1
      %v4511 = vrot.slane %v4213, 1
      %v4512 = vsel %vm4509, %v4510, %v4511
      %v4513 = vrot.slane %v4214, 1
      %v4514 = vsel %vm4509, %v4511, %v4513
      %v4515 = vrot.slane %v4215, 1
      %v4516 = vsel %vm4509, %v4513, %v4515
      %v4517 = vrot.slane %v4216, 1
      %v4518 = vsel %vm4509, %v4515, %v4517
      %v4519 = vrot.slane %v4217, 1
      %v4520 = vsel %vm4509, %v4517, %v4519
      %v4521 = vrot.slane %v4218, 1
      %v4522 = vsel %vm4509, %v4519, %v4521
      %v4523 = vrot.slane %v4219, 1
      %v4524 = vsel %vm4509, %v4521, %v4523
      %v4525 = vrot.slane %v4220, 1
      %v4526 = vsel %vm4509, %v4523, %v4525
      %v4527 = vrot.slane %v4221, 1
      %v4528 = vsel %vm4509, %v4525, %v4527
      %v4537 = vunpack.c.l.b16 %v4501
      %v4538 = vunpack.c.l.b16 %v4502
      %v4539 = vunpack.c.l.b16 %v4503
      %v4540 = vunpack.c.l.b16 %v4504
      %v4541 = vunpack.c.l.b16 %v4505
      %v4542 = vunpack.c.l.b16 %v4506
      %v4543 = vunpack.c.l.b16 %v4507
      %v4544 = vunpack.c.l.b16 %v4508
      %v4545 = vpack.c.b16 %v4538, %v4537
      %v4546 = vpack.c.b16 %v4540, %v4539
      %v4547 = vpack.c.b16 %v4542, %v4541
      %v4548 = vpack.c.b16 %v4544, %v4543
      %v4554 = vsel %vm4322, %v4512, 0
      %v4557 = vsel %vm4322, %v4514, 0
      %v4560 = vsel %vm4322, %v4516, 0
      %v4563 = vsel %vm4322, %v4518, 0
      %v4566 = vsel %vm4322, %v4520, 0
      %v4569 = vsel %vm4322, %v4522, 0
      %v4572 = vsel %vm4322, %v4524, 0
      %v4575 = vsel %vm4322, %v4526, 0
      %v4578 = vsel %vm4322, %v4528, 0
      %4580 = vmatpush.bf16.msra.mxu0 0
      %4581 = vmatpush.bf16.msra.mxu0 0
      %4582 = vmatpush.bf16.msra.mxu0 0
      %4583 = vmatpush.bf16.msra.mxu0 0
      %4584 = vmatpush.bf16.msra.mxu0 %v4548
      %4585 = vmatpush.bf16.msra.mxu0 %v4547
      %4586 = vmatpush.bf16.msra.mxu0 %v4546
      %4587 = vmatpush.bf16.msra.mxu0 %v4545
      %4588 = vmatmul.bf16.gmra.mxu0 %v4554
      %v4589 = vpop.f32.mrf.mxu0
      %v4590 = vadd.f32 0.0, %v4589
      %v4591 = vpop.f32.mrf.mxu0
      %v4592 = vadd.f32 0.0, %v4591
      %4593 = vmatmul.bf16.gmra.mxu0 %v4557
      %v4594 = vpop.f32.mrf.mxu0
      %v4595 = vadd.f32 0.0, %v4594
      %v4596 = vpop.f32.mrf.mxu0
      %v4597 = vadd.f32 0.0, %v4596
      %4598 = vmatmul.bf16.gmra.mxu0 %v4560
      %v4599 = vpop.f32.mrf.mxu0
      %v4600 = vadd.f32 0.0, %v4599
      %v4601 = vpop.f32.mrf.mxu0
      %v4602 = vadd.f32 0.0, %v4601
      %4603 = vmatmul.bf16.gmra.mxu0 %v4563
      %v4604 = vpop.f32.mrf.mxu0
      %v4605 = vadd.f32 0.0, %v4604
      %v4606 = vpop.f32.mrf.mxu0
      %v4607 = vadd.f32 0.0, %v4606
      %4608 = vmatmul.bf16.gmra.mxu0 %v4566
      %v4609 = vpop.f32.mrf.mxu0
      %v4610 = vadd.f32 0.0, %v4609
      %v4611 = vpop.f32.mrf.mxu0
      %v4612 = vadd.f32 0.0, %v4611
      %4613 = vmatmul.bf16.gmra.mxu0 %v4569
      %v4614 = vpop.f32.mrf.mxu0
      %v4615 = vadd.f32 0.0, %v4614
      %v4616 = vpop.f32.mrf.mxu0
      %v4617 = vadd.f32 0.0, %v4616
      %4618 = vmatmul.bf16.gmra.mxu0 %v4572
      %v4619 = vpop.f32.mrf.mxu0
      %v4620 = vadd.f32 0.0, %v4619
      %v4621 = vpop.f32.mrf.mxu0
      %v4622 = vadd.f32 0.0, %v4621
      %4623 = vmatmul.bf16.gmra.mxu0 %v4575
      %v4624 = vpop.f32.mrf.mxu0
      %v4625 = vadd.f32 0.0, %v4624
      %v4626 = vpop.f32.mrf.mxu0
      %v4627 = vadd.f32 0.0, %v4626
      %4628 = vmatmul.bf16.gmra.mxu0 %v4578
      %v4629 = vpop.f32.mrf.mxu0
      %v4630 = vadd.f32 0.0, %v4629
      %v4631 = vpop.f32.mrf.mxu0
      %v4632 = vadd.f32 0.0, %v4631
      %4633 = vdwg.mxu0
      %v4634 = vadd.f32 %v4456, %v4590
      %v4635 = vadd.f32 %v4458, %v4592
      %v4636 = vadd.f32 %v4461, %v4595
      %v4637 = vadd.f32 %v4463, %v4597
      %v4638 = vadd.f32 %v4466, %v4600
      %v4639 = vadd.f32 %v4468, %v4602
      %v4640 = vadd.f32 %v4471, %v4605
      %v4641 = vadd.f32 %v4473, %v4607
      %v4642 = vadd.f32 %v4476, %v4610
      %v4643 = vadd.f32 %v4478, %v4612
      %v4644 = vadd.f32 %v4481, %v4615
      %v4645 = vadd.f32 %v4483, %v4617
      %v4646 = vadd.f32 %v4486, %v4620
      %v4647 = vadd.f32 %v4488, %v4622
      %v4648 = vadd.f32 %v4491, %v4625
      %v4649 = vadd.f32 %v4493, %v4627
      %v4650 = vadd.f32 %v4496, %v4630
      %v4651 = vadd.f32 %v4498, %v4632
      %s4652 = scalar_lea.vmem %s5, 96
      %v4653 = vld [vmem:[%s4652] sm:$0xf]
      %v4654 = vld [vmem:[%s4652 + $0x4] sm:$0xf]
      %v4655 = vld [vmem:[%s4652 + $0x8] sm:$0xf]
      %v4656 = vld [vmem:[%s4652 + $0xc] sm:$0xf]
      %v4657 = vld [vmem:[%s4652 + $0x10] sm:$0xf]
      %v4658 = vld [vmem:[%s4652 + $0x14] sm:$0xf]
      %v4659 = vld [vmem:[%s4652 + $0x18] sm:$0xf]
      %v4660 = vld [vmem:[%s4652 + $0x1c] sm:$0xf]
      %v4661 = vrot.slane %v4212, 3
      %v4662 = vrot.slane %v4213, 3
      %v4663 = vsel %vm2819, %v4661, %v4662
      %v4664 = vrot.slane %v4214, 3
      %v4665 = vsel %vm2819, %v4662, %v4664
      %v4666 = vrot.slane %v4215, 3
      %v4667 = vsel %vm2819, %v4664, %v4666
      %v4668 = vrot.slane %v4216, 3
      %v4669 = vsel %vm2819, %v4666, %v4668
      %v4670 = vrot.slane %v4217, 3
      %v4671 = vsel %vm2819, %v4668, %v4670
      %v4672 = vrot.slane %v4218, 3
      %v4673 = vsel %vm2819, %v4670, %v4672
      %v4674 = vrot.slane %v4219, 3
      %v4675 = vsel %vm2819, %v4672, %v4674
      %v4676 = vrot.slane %v4220, 3
      %v4677 = vsel %vm2819, %v4674, %v4676
      %v4678 = vrot.slane %v4221, 3
      %v4679 = vsel %vm2819, %v4676, %v4678
      %v4688 = vunpack.c.l.b16 %v4653
      %v4689 = vunpack.c.l.b16 %v4654
      %v4690 = vunpack.c.l.b16 %v4655
      %v4691 = vunpack.c.l.b16 %v4656
      %v4692 = vunpack.c.l.b16 %v4657
      %v4693 = vunpack.c.l.b16 %v4658
      %v4694 = vunpack.c.l.b16 %v4659
      %v4695 = vunpack.c.l.b16 %v4660
      %v4696 = vpack.c.b16 %v4689, %v4688
      %v4697 = vpack.c.b16 %v4691, %v4690
      %v4698 = vpack.c.b16 %v4693, %v4692
      %v4699 = vpack.c.b16 %v4695, %v4694
      %v4705 = vsel %vm4322, %v4663, 0
      %v4708 = vsel %vm4322, %v4665, 0
      %v4711 = vsel %vm4322, %v4667, 0
      %v4714 = vsel %vm4322, %v4669, 0
      %v4717 = vsel %vm4322, %v4671, 0
      %v4720 = vsel %vm4322, %v4673, 0
      %v4723 = vsel %vm4322, %v4675, 0
      %v4726 = vsel %vm4322, %v4677, 0
      %v4729 = vsel %vm4322, %v4679, 0
      %4731 = vmatpush.bf16.msra.mxu0 0
      %4732 = vmatpush.bf16.msra.mxu0 0
      %4733 = vmatpush.bf16.msra.mxu0 0
      %4734 = vmatpush.bf16.msra.mxu0 0
      %4735 = vmatpush.bf16.msra.mxu0 %v4699
      %4736 = vmatpush.bf16.msra.mxu0 %v4698
      %4737 = vmatpush.bf16.msra.mxu0 %v4697
      %4738 = vmatpush.bf16.msra.mxu0 %v4696
      %4739 = vmatmul.bf16.gmra.mxu0 %v4705
      %v4740 = vpop.f32.mrf.mxu0
      %v4741 = vadd.f32 0.0, %v4740
      %v4742 = vpop.f32.mrf.mxu0
      %v4743 = vadd.f32 0.0, %v4742
      %4744 = vmatmul.bf16.gmra.mxu0 %v4708
      %v4745 = vpop.f32.mrf.mxu0
      %v4746 = vadd.f32 0.0, %v4745
      %v4747 = vpop.f32.mrf.mxu0
      %v4748 = vadd.f32 0.0, %v4747
      %4749 = vmatmul.bf16.gmra.mxu0 %v4711
      %v4750 = vpop.f32.mrf.mxu0
      %v4751 = vadd.f32 0.0, %v4750
      %v4752 = vpop.f32.mrf.mxu0
      %v4753 = vadd.f32 0.0, %v4752
      %4754 = vmatmul.bf16.gmra.mxu0 %v4714
      %v4755 = vpop.f32.mrf.mxu0
      %v4756 = vadd.f32 0.0, %v4755
      %v4757 = vpop.f32.mrf.mxu0
      %v4758 = vadd.f32 0.0, %v4757
      %4759 = vmatmul.bf16.gmra.mxu0 %v4717
      %v4760 = vpop.f32.mrf.mxu0
      %v4761 = vadd.f32 0.0, %v4760
      %v4762 = vpop.f32.mrf.mxu0
      %v4763 = vadd.f32 0.0, %v4762
      %4764 = vmatmul.bf16.gmra.mxu0 %v4720
      %v4765 = vpop.f32.mrf.mxu0
      %v4766 = vadd.f32 0.0, %v4765
      %v4767 = vpop.f32.mrf.mxu0
      %v4768 = vadd.f32 0.0, %v4767
      %4769 = vmatmul.bf16.gmra.mxu0 %v4723
      %v4770 = vpop.f32.mrf.mxu0
      %v4771 = vadd.f32 0.0, %v4770
      %v4772 = vpop.f32.mrf.mxu0
      %v4773 = vadd.f32 0.0, %v4772
      %4774 = vmatmul.bf16.gmra.mxu0 %v4726
      %v4775 = vpop.f32.mrf.mxu0
      %v4776 = vadd.f32 0.0, %v4775
      %v4777 = vpop.f32.mrf.mxu0
      %v4778 = vadd.f32 0.0, %v4777
      %4779 = vmatmul.bf16.gmra.mxu0 %v4729
      %v4780 = vpop.f32.mrf.mxu0
      %v4781 = vadd.f32 0.0, %v4780
      %v4782 = vpop.f32.mrf.mxu0
      %v4783 = vadd.f32 0.0, %v4782
      %4784 = vdwg.mxu0
      %v4785 = vadd.f32 %v4634, %v4741
      %v4786 = vadd.f32 %v4635, %v4743
      %v4787 = vadd.f32 %v4636, %v4746
      %v4788 = vadd.f32 %v4637, %v4748
      %v4789 = vadd.f32 %v4638, %v4751
      %v4790 = vadd.f32 %v4639, %v4753
      %v4791 = vadd.f32 %v4640, %v4756
      %v4792 = vadd.f32 %v4641, %v4758
      %v4793 = vadd.f32 %v4642, %v4761
      %v4794 = vadd.f32 %v4643, %v4763
      %v4795 = vadd.f32 %v4644, %v4766
      %v4796 = vadd.f32 %v4645, %v4768
      %v4797 = vadd.f32 %v4646, %v4771
      %v4798 = vadd.f32 %v4647, %v4773
      %v4799 = vadd.f32 %v4648, %v4776
      %v4800 = vadd.f32 %v4649, %v4778
      %v4801 = vadd.f32 %v4650, %v4781
      %v4802 = vadd.f32 %v4651, %v4783
      %s4803 = scalar_lea.vmem %s5, 128
      %v4804 = vld [vmem:[%s4803] sm:$0xf]
      %v4805 = vld [vmem:[%s4803 + $0x4] sm:$0xf]
      %v4806 = vld [vmem:[%s4803 + $0x8] sm:$0xf]
      %v4807 = vld [vmem:[%s4803 + $0xc] sm:$0xf]
      %v4808 = vld [vmem:[%s4803 + $0x10] sm:$0xf]
      %v4809 = vld [vmem:[%s4803 + $0x14] sm:$0xf]
      %v4810 = vld [vmem:[%s4803 + $0x18] sm:$0xf]
      %v4811 = vld [vmem:[%s4803 + $0x1c] sm:$0xf]
      %v4812 = vrot.slane %v4223, 3
      %v4813 = vrot.slane %v4225, 4
      %v4814 = vor.u32 %v4812, %v4813
      %v4815 = vrot.slane %v4234, 3
      %v4816 = vrot.slane %v4230, 4
      %v4817 = vor.u32 %v4815, %v4816
      %v4818 = vsel %vm3114, %v4814, %v4817
      %v4819 = vrot.slane %v4242, 3
      %v4820 = vrot.slane %v4238, 4
      %v4821 = vor.u32 %v4819, %v4820
      %v4822 = vsel %vm3114, %v4817, %v4821
      %v4823 = vrot.slane %v4250, 3
      %v4824 = vrot.slane %v4246, 4
      %v4825 = vor.u32 %v4823, %v4824
      %v4826 = vsel %vm3114, %v4821, %v4825
      %v4827 = vrot.slane %v4258, 3
      %v4828 = vrot.slane %v4254, 4
      %v4829 = vor.u32 %v4827, %v4828
      %v4830 = vsel %vm3114, %v4825, %v4829
      %v4831 = vrot.slane %v4266, 3
      %v4832 = vrot.slane %v4262, 4
      %v4833 = vor.u32 %v4831, %v4832
      %v4834 = vsel %vm3114, %v4829, %v4833
      %v4835 = vrot.slane %v4274, 3
      %v4836 = vrot.slane %v4270, 4
      %v4837 = vor.u32 %v4835, %v4836
      %v4838 = vsel %vm3114, %v4833, %v4837
      %v4839 = vrot.slane %v4282, 3
      %v4840 = vrot.slane %v4278, 4
      %v4841 = vor.u32 %v4839, %v4840
      %v4842 = vsel %vm3114, %v4837, %v4841
      %v4843 = vrot.slane %v4290, 3
      %v4844 = vrot.slane %v4286, 4
      %v4845 = vor.u32 %v4843, %v4844
      %v4846 = vsel %vm3114, %v4841, %v4845
      %v4847 = vshrl.u32 %v4221, 16
      %v4849 = vrot.slane %v4847, 3
      %v4850 = vrot.slane %v4294, 4
      %v4851 = vor.u32 %v4849, %v4850
      %v4852 = vsel %vm3114, %v4845, %v4851
      %v4861 = vunpack.c.l.b16 %v4804
      %v4862 = vunpack.c.l.b16 %v4805
      %v4863 = vunpack.c.l.b16 %v4806
      %v4864 = vunpack.c.l.b16 %v4807
      %v4865 = vunpack.c.l.b16 %v4808
      %v4866 = vunpack.c.l.b16 %v4809
      %v4867 = vunpack.c.l.b16 %v4810
      %v4868 = vunpack.c.l.b16 %v4811
      %v4869 = vpack.c.b16 %v4862, %v4861
      %v4870 = vpack.c.b16 %v4864, %v4863
      %v4871 = vpack.c.b16 %v4866, %v4865
      %v4872 = vpack.c.b16 %v4868, %v4867
      %v4878 = vsel %vm4322, %v4818, 0
      %v4881 = vsel %vm4322, %v4822, 0
      %v4884 = vsel %vm4322, %v4826, 0
      %v4887 = vsel %vm4322, %v4830, 0
      %v4890 = vsel %vm4322, %v4834, 0
      %v4893 = vsel %vm4322, %v4838, 0
      %v4896 = vsel %vm4322, %v4842, 0
      %v4899 = vsel %vm4322, %v4846, 0
      %v4902 = vsel %vm4322, %v4852, 0
      %4904 = vmatpush.bf16.msra.mxu0 0
      %4905 = vmatpush.bf16.msra.mxu0 0
      %4906 = vmatpush.bf16.msra.mxu0 0
      %4907 = vmatpush.bf16.msra.mxu0 0
      %4908 = vmatpush.bf16.msra.mxu0 %v4872
      %4909 = vmatpush.bf16.msra.mxu0 %v4871
      %4910 = vmatpush.bf16.msra.mxu0 %v4870
      %4911 = vmatpush.bf16.msra.mxu0 %v4869
      %4912 = vmatmul.bf16.gmra.mxu0 %v4878
      %v4913 = vpop.f32.mrf.mxu0
      %v4914 = vadd.f32 0.0, %v4913
      %v4915 = vpop.f32.mrf.mxu0
      %v4916 = vadd.f32 0.0, %v4915
      %4917 = vmatmul.bf16.gmra.mxu0 %v4881
      %v4918 = vpop.f32.mrf.mxu0
      %v4919 = vadd.f32 0.0, %v4918
      %v4920 = vpop.f32.mrf.mxu0
      %v4921 = vadd.f32 0.0, %v4920
      %4922 = vmatmul.bf16.gmra.mxu0 %v4884
      %v4923 = vpop.f32.mrf.mxu0
      %v4924 = vadd.f32 0.0, %v4923
      %v4925 = vpop.f32.mrf.mxu0
      %v4926 = vadd.f32 0.0, %v4925
      %4927 = vmatmul.bf16.gmra.mxu0 %v4887
      %v4928 = vpop.f32.mrf.mxu0
      %v4929 = vadd.f32 0.0, %v4928
      %v4930 = vpop.f32.mrf.mxu0
      %v4931 = vadd.f32 0.0, %v4930
      %4932 = vmatmul.bf16.gmra.mxu0 %v4890
      %v4933 = vpop.f32.mrf.mxu0
      %v4934 = vadd.f32 0.0, %v4933
      %v4935 = vpop.f32.mrf.mxu0
      %v4936 = vadd.f32 0.0, %v4935
      %4937 = vmatmul.bf16.gmra.mxu0 %v4893
      %v4938 = vpop.f32.mrf.mxu0
      %v4939 = vadd.f32 0.0, %v4938
      %v4940 = vpop.f32.mrf.mxu0
      %v4941 = vadd.f32 0.0, %v4940
      %4942 = vmatmul.bf16.gmra.mxu0 %v4896
      %v4943 = vpop.f32.mrf.mxu0
      %v4944 = vadd.f32 0.0, %v4943
      %v4945 = vpop.f32.mrf.mxu0
      %v4946 = vadd.f32 0.0, %v4945
      %4947 = vmatmul.bf16.gmra.mxu0 %v4899
      %v4948 = vpop.f32.mrf.mxu0
      %v4949 = vadd.f32 0.0, %v4948
      %v4950 = vpop.f32.mrf.mxu0
      %v4951 = vadd.f32 0.0, %v4950
      %4952 = vmatmul.bf16.gmra.mxu0 %v4902
      %v4953 = vpop.f32.mrf.mxu0
      %v4954 = vadd.f32 0.0, %v4953
      %v4955 = vpop.f32.mrf.mxu0
      %v4956 = vadd.f32 0.0, %v4955
      %4957 = vdwg.mxu0
      %v4958 = vadd.f32 %v4785, %v4914
      %v4959 = vadd.f32 %v4786, %v4916
      %v4960 = vadd.f32 %v4787, %v4919
      %v4961 = vadd.f32 %v4788, %v4921
      %v4962 = vadd.f32 %v4789, %v4924
      %v4963 = vadd.f32 %v4790, %v4926
      %v4964 = vadd.f32 %v4791, %v4929
      %v4965 = vadd.f32 %v4792, %v4931
      %v4966 = vadd.f32 %v4793, %v4934
      %v4967 = vadd.f32 %v4794, %v4936
      %v4968 = vadd.f32 %v4795, %v4939
      %v4969 = vadd.f32 %v4796, %v4941
      %v4970 = vadd.f32 %v4797, %v4944
      %v4971 = vadd.f32 %v4798, %v4946
      %v4972 = vadd.f32 %v4799, %v4949
      %v4973 = vadd.f32 %v4800, %v4951
      %v4974 = vadd.f32 %v4801, %v4954
      %v4975 = vadd.f32 %v4802, %v4956
      %s4976 = scalar_lea.vmem %s5, 160
      %v4977 = vld [vmem:[%s4976] sm:$0xf]
      %v4978 = vld [vmem:[%s4976 + $0x4] sm:$0xf]
      %v4979 = vld [vmem:[%s4976 + $0x8] sm:$0xf]
      %v4980 = vld [vmem:[%s4976 + $0xc] sm:$0xf]
      %v4981 = vld [vmem:[%s4976 + $0x10] sm:$0xf]
      %v4982 = vld [vmem:[%s4976 + $0x14] sm:$0xf]
      %v4983 = vld [vmem:[%s4976 + $0x18] sm:$0xf]
      %v4984 = vld [vmem:[%s4976 + $0x1c] sm:$0xf]
      %v4985 = vpack.c.b16 %v4195, %v4194
      %v4986 = vpack.c.b16 %v4197, %v4196
      %v4987 = vpack.c.b16 %v4199, %v4198
      %v4988 = vpack.c.b16 %v4201, %v4200
      %v4989 = vpack.c.b16 %v4203, %v4202
      %v4990 = vpack.c.b16 %v4205, %v4204
      %v4991 = vpack.c.b16 %v4207, %v4206
      %v4992 = vpack.c.b16 %v4209, %v4208
      %v4993 = vpack.c.b16 %v4211, %v4210
      %v5002 = vunpack.c.l.b16 %v4977
      %v5003 = vunpack.c.l.b16 %v4978
      %v5004 = vunpack.c.l.b16 %v4979
      %v5005 = vunpack.c.l.b16 %v4980
      %v5006 = vunpack.c.l.b16 %v4981
      %v5007 = vunpack.c.l.b16 %v4982
      %v5008 = vunpack.c.l.b16 %v4983
      %v5009 = vunpack.c.l.b16 %v4984
      %v5010 = vpack.c.b16 %v5003, %v5002
      %v5011 = vpack.c.b16 %v5005, %v5004
      %v5012 = vpack.c.b16 %v5007, %v5006
      %v5013 = vpack.c.b16 %v5009, %v5008
      %v5019 = vsel %vm4322, %v4985, 0
      %v5022 = vsel %vm4322, %v4986, 0
      %v5025 = vsel %vm4322, %v4987, 0
      %v5028 = vsel %vm4322, %v4988, 0
      %v5031 = vsel %vm4322, %v4989, 0
      %v5034 = vsel %vm4322, %v4990, 0
      %v5037 = vsel %vm4322, %v4991, 0
      %v5040 = vsel %vm4322, %v4992, 0
      %v5043 = vsel %vm4322, %v4993, 0
      %5045 = vmatpush.bf16.msra.mxu0 0
      %5046 = vmatpush.bf16.msra.mxu0 0
      %5047 = vmatpush.bf16.msra.mxu0 0
      %5048 = vmatpush.bf16.msra.mxu0 0
      %5049 = vmatpush.bf16.msra.mxu0 %v5013
      %5050 = vmatpush.bf16.msra.mxu0 %v5012
      %5051 = vmatpush.bf16.msra.mxu0 %v5011
      %5052 = vmatpush.bf16.msra.mxu0 %v5010
      %5053 = vmatmul.bf16.gmra.mxu0 %v5019
      %v5054 = vpop.f32.mrf.mxu0
      %v5055 = vadd.f32 0.0, %v5054
      %v5056 = vpop.f32.mrf.mxu0
      %v5057 = vadd.f32 0.0, %v5056
      %5058 = vmatmul.bf16.gmra.mxu0 %v5022
      %v5059 = vpop.f32.mrf.mxu0
      %v5060 = vadd.f32 0.0, %v5059
      %v5061 = vpop.f32.mrf.mxu0
      %v5062 = vadd.f32 0.0, %v5061
      %5063 = vmatmul.bf16.gmra.mxu0 %v5025
      %v5064 = vpop.f32.mrf.mxu0
      %v5065 = vadd.f32 0.0, %v5064
      %v5066 = vpop.f32.mrf.mxu0
      %v5067 = vadd.f32 0.0, %v5066
      %5068 = vmatmul.bf16.gmra.mxu0 %v5028
      %v5069 = vpop.f32.mrf.mxu0
      %v5070 = vadd.f32 0.0, %v5069
      %v5071 = vpop.f32.mrf.mxu0
      %v5072 = vadd.f32 0.0, %v5071
      %5073 = vmatmul.bf16.gmra.mxu0 %v5031
      %v5074 = vpop.f32.mrf.mxu0
      %v5075 = vadd.f32 0.0, %v5074
      %v5076 = vpop.f32.mrf.mxu0
      %v5077 = vadd.f32 0.0, %v5076
      %5078 = vmatmul.bf16.gmra.mxu0 %v5034
      %v5079 = vpop.f32.mrf.mxu0
      %v5080 = vadd.f32 0.0, %v5079
      %v5081 = vpop.f32.mrf.mxu0
      %v5082 = vadd.f32 0.0, %v5081
      %5083 = vmatmul.bf16.gmra.mxu0 %v5037
      %v5084 = vpop.f32.mrf.mxu0
      %v5085 = vadd.f32 0.0, %v5084
      %v5086 = vpop.f32.mrf.mxu0
      %v5087 = vadd.f32 0.0, %v5086
      %5088 = vmatmul.bf16.gmra.mxu0 %v5040
      %v5089 = vpop.f32.mrf.mxu0
      %v5090 = vadd.f32 0.0, %v5089
      %v5091 = vpop.f32.mrf.mxu0
      %v5092 = vadd.f32 0.0, %v5091
      %5093 = vmatmul.bf16.gmra.mxu0 %v5043
      %v5094 = vpop.f32.mrf.mxu0
      %v5095 = vadd.f32 0.0, %v5094
      %v5096 = vpop.f32.mrf.mxu0
      %v5097 = vadd.f32 0.0, %v5096
      %5098 = vdwg.mxu0
      %v5099 = vadd.f32 %v4958, %v5055
      %v5100 = vadd.f32 %v4959, %v5057
      %v5101 = vadd.f32 %v4960, %v5060
      %v5102 = vadd.f32 %v4961, %v5062
      %v5103 = vadd.f32 %v4962, %v5065
      %v5104 = vadd.f32 %v4963, %v5067
      %v5105 = vadd.f32 %v4964, %v5070
      %v5106 = vadd.f32 %v4965, %v5072
      %v5107 = vadd.f32 %v4966, %v5075
      %v5108 = vadd.f32 %v4967, %v5077
      %v5109 = vadd.f32 %v4968, %v5080
      %v5110 = vadd.f32 %v4969, %v5082
      %v5111 = vadd.f32 %v4970, %v5085
      %v5112 = vadd.f32 %v4971, %v5087
      %v5113 = vadd.f32 %v4972, %v5090
      %v5114 = vadd.f32 %v4973, %v5092
      %v5115 = vadd.f32 %v4974, %v5095
      %v5116 = vadd.f32 %v4975, %v5097
      %s5117 = scalar_lea.vmem %s5, 192
      %v5118 = vld [vmem:[%s5117] sm:$0xf]
      %v5119 = vld [vmem:[%s5117 + $0x4] sm:$0xf]
      %v5120 = vld [vmem:[%s5117 + $0x8] sm:$0xf]
      %v5121 = vld [vmem:[%s5117 + $0xc] sm:$0xf]
      %v5122 = vld [vmem:[%s5117 + $0x10] sm:$0xf]
      %v5123 = vld [vmem:[%s5117 + $0x14] sm:$0xf]
      %v5124 = vld [vmem:[%s5117 + $0x18] sm:$0xf]
      %v5125 = vld [vmem:[%s5117 + $0x1c] sm:$0xf]
      %v5127 = vunpack.c.l.b16 %v4156
      %v5128 = vpack.c.b16 %v5127, %v5127
      %vm5129 = vcmask 1045504
      %v5130 = vrot.slane %v4985, 2
      %v5131 = vrot.slane %v4986, 2
      %v5132 = vsel %vm5129, %v5130, %v5131
      %v5133 = vrot.slane %v4987, 2
      %v5134 = vsel %vm5129, %v5131, %v5133
      %v5135 = vrot.slane %v4988, 2
      %v5136 = vsel %vm5129, %v5133, %v5135
      %v5137 = vrot.slane %v4989, 2
      %v5138 = vsel %vm5129, %v5135, %v5137
      %v5139 = vrot.slane %v4990, 2
      %v5140 = vsel %vm5129, %v5137, %v5139
      %v5141 = vrot.slane %v4991, 2
      %v5142 = vsel %vm5129, %v5139, %v5141
      %v5143 = vrot.slane %v4992, 2
      %v5144 = vsel %vm5129, %v5141, %v5143
      %v5145 = vrot.slane %v4993, 2
      %v5146 = vsel %vm5129, %v5143, %v5145
      %v5147 = vrot.slane %v5128, 2
      %v5148 = vsel %vm5129, %v5145, %v5147
      %v5157 = vunpack.c.l.b16 %v5118
      %v5158 = vunpack.c.l.b16 %v5119
      %v5159 = vunpack.c.l.b16 %v5120
      %v5160 = vunpack.c.l.b16 %v5121
      %v5161 = vunpack.c.l.b16 %v5122
      %v5162 = vunpack.c.l.b16 %v5123
      %v5163 = vunpack.c.l.b16 %v5124
      %v5164 = vunpack.c.l.b16 %v5125
      %v5165 = vpack.c.b16 %v5158, %v5157
      %v5166 = vpack.c.b16 %v5160, %v5159
      %v5167 = vpack.c.b16 %v5162, %v5161
      %v5168 = vpack.c.b16 %v5164, %v5163
      %v5174 = vsel %vm4322, %v5132, 0
      %v5177 = vsel %vm4322, %v5134, 0
      %v5180 = vsel %vm4322, %v5136, 0
      %v5183 = vsel %vm4322, %v5138, 0
      %v5186 = vsel %vm4322, %v5140, 0
      %v5189 = vsel %vm4322, %v5142, 0
      %v5192 = vsel %vm4322, %v5144, 0
      %v5195 = vsel %vm4322, %v5146, 0
      %v5198 = vsel %vm4322, %v5148, 0
      %5200 = vmatpush.bf16.msra.mxu0 0
      %5201 = vmatpush.bf16.msra.mxu0 0
      %5202 = vmatpush.bf16.msra.mxu0 0
      %5203 = vmatpush.bf16.msra.mxu0 0
      %5204 = vmatpush.bf16.msra.mxu0 %v5168
      %5205 = vmatpush.bf16.msra.mxu0 %v5167
      %5206 = vmatpush.bf16.msra.mxu0 %v5166
      %5207 = vmatpush.bf16.msra.mxu0 %v5165
      %5208 = vmatmul.bf16.gmra.mxu0 %v5174
      %v5209 = vpop.f32.mrf.mxu0
      %v5210 = vadd.f32 0.0, %v5209
      %v5211 = vpop.f32.mrf.mxu0
      %v5212 = vadd.f32 0.0, %v5211
      %5213 = vmatmul.bf16.gmra.mxu0 %v5177
      %v5214 = vpop.f32.mrf.mxu0
      %v5215 = vadd.f32 0.0, %v5214
      %v5216 = vpop.f32.mrf.mxu0
      %v5217 = vadd.f32 0.0, %v5216
      %5218 = vmatmul.bf16.gmra.mxu0 %v5180
      %v5219 = vpop.f32.mrf.mxu0
      %v5220 = vadd.f32 0.0, %v5219
      %v5221 = vpop.f32.mrf.mxu0
      %v5222 = vadd.f32 0.0, %v5221
      %5223 = vmatmul.bf16.gmra.mxu0 %v5183
      %v5224 = vpop.f32.mrf.mxu0
      %v5225 = vadd.f32 0.0, %v5224
      %v5226 = vpop.f32.mrf.mxu0
      %v5227 = vadd.f32 0.0, %v5226
      %5228 = vmatmul.bf16.gmra.mxu0 %v5186
      %v5229 = vpop.f32.mrf.mxu0
      %v5230 = vadd.f32 0.0, %v5229
      %v5231 = vpop.f32.mrf.mxu0
      %v5232 = vadd.f32 0.0, %v5231
      %5233 = vmatmul.bf16.gmra.mxu0 %v5189
      %v5234 = vpop.f32.mrf.mxu0
      %v5235 = vadd.f32 0.0, %v5234
      %v5236 = vpop.f32.mrf.mxu0
      %v5237 = vadd.f32 0.0, %v5236
      %5238 = vmatmul.bf16.gmra.mxu0 %v5192
      %v5239 = vpop.f32.mrf.mxu0
      %v5240 = vadd.f32 0.0, %v5239
      %v5241 = vpop.f32.mrf.mxu0
      %v5242 = vadd.f32 0.0, %v5241
      %5243 = vmatmul.bf16.gmra.mxu0 %v5195
      %v5244 = vpop.f32.mrf.mxu0
      %v5245 = vadd.f32 0.0, %v5244
      %v5246 = vpop.f32.mrf.mxu0
      %v5247 = vadd.f32 0.0, %v5246
      %5248 = vmatmul.bf16.gmra.mxu0 %v5198
      %v5249 = vpop.f32.mrf.mxu0
      %v5250 = vadd.f32 0.0, %v5249
      %v5251 = vpop.f32.mrf.mxu0
      %v5252 = vadd.f32 0.0, %v5251
      %5253 = vdwg.mxu0
      %v5254 = vadd.f32 %v5099, %v5210
      %v5255 = vadd.f32 %v5100, %v5212
      %v5256 = vadd.f32 %v5101, %v5215
      %v5257 = vadd.f32 %v5102, %v5217
      %v5258 = vadd.f32 %v5103, %v5220
      %v5259 = vadd.f32 %v5104, %v5222
      %v5260 = vadd.f32 %v5105, %v5225
      %v5261 = vadd.f32 %v5106, %v5227
      %v5262 = vadd.f32 %v5107, %v5230
      %v5263 = vadd.f32 %v5108, %v5232
      %v5264 = vadd.f32 %v5109, %v5235
      %v5265 = vadd.f32 %v5110, %v5237
      %v5266 = vadd.f32 %v5111, %v5240
      %v5267 = vadd.f32 %v5112, %v5242
      %v5268 = vadd.f32 %v5113, %v5245
      %v5269 = vadd.f32 %v5114, %v5247
      %v5270 = vadd.f32 %v5115, %v5250
      %v5271 = vadd.f32 %v5116, %v5252
      %s5272 = scalar_lea.vmem %s5, 224
      %v5273 = vld [vmem:[%s5272] sm:$0xf]
      %v5274 = vld [vmem:[%s5272 + $0x4] sm:$0xf]
      %v5275 = vld [vmem:[%s5272 + $0x8] sm:$0xf]
      %v5276 = vld [vmem:[%s5272 + $0xc] sm:$0xf]
      %v5277 = vld [vmem:[%s5272 + $0x10] sm:$0xf]
      %v5278 = vld [vmem:[%s5272 + $0x14] sm:$0xf]
      %v5279 = vld [vmem:[%s5272 + $0x18] sm:$0xf]
      %v5280 = vld [vmem:[%s5272 + $0x1c] sm:$0xf]
      %vm5281 = vsmask.f32 5376
      %v5282 = vshrl.u32 %v4985, 16
      %v5284 = vrot.slane %v5282, 2
      %v5285 = vshll.u32 %v4985, 16
      %v5287 = vrot.slane %v5285, 3
      %v5288 = vor.u32 %v5284, %v5287
      %v5289 = vshrl.u32 %v4986, 16
      %v5291 = vrot.slane %v5289, 2
      %v5292 = vshll.u32 %v4986, 16
      %v5294 = vrot.slane %v5292, 3
      %v5295 = vor.u32 %v5291, %v5294
      %v5296 = vsel %vm5281, %v5288, %v5295
      %v5297 = vshrl.u32 %v4987, 16
      %v5299 = vrot.slane %v5297, 2
      %v5300 = vshll.u32 %v4987, 16
      %v5302 = vrot.slane %v5300, 3
      %v5303 = vor.u32 %v5299, %v5302
      %v5304 = vsel %vm5281, %v5295, %v5303
      %v5305 = vshrl.u32 %v4988, 16
      %v5307 = vrot.slane %v5305, 2
      %v5308 = vshll.u32 %v4988, 16
      %v5310 = vrot.slane %v5308, 3
      %v5311 = vor.u32 %v5307, %v5310
      %v5312 = vsel %vm5281, %v5303, %v5311
      %v5313 = vshrl.u32 %v4989, 16
      %v5315 = vrot.slane %v5313, 2
      %v5316 = vshll.u32 %v4989, 16
      %v5318 = vrot.slane %v5316, 3
      %v5319 = vor.u32 %v5315, %v5318
      %v5320 = vsel %vm5281, %v5311, %v5319
      %v5321 = vshrl.u32 %v4990, 16
      %v5323 = vrot.slane %v5321, 2
      %v5324 = vshll.u32 %v4990, 16
      %v5326 = vrot.slane %v5324, 3
      %v5327 = vor.u32 %v5323, %v5326
      %v5328 = vsel %vm5281, %v5319, %v5327
      %v5329 = vshrl.u32 %v4991, 16
      %v5331 = vrot.slane %v5329, 2
      %v5332 = vshll.u32 %v4991, 16
      %v5334 = vrot.slane %v5332, 3
      %v5335 = vor.u32 %v5331, %v5334
      %v5336 = vsel %vm5281, %v5327, %v5335
      %v5337 = vshrl.u32 %v4992, 16
      %v5339 = vrot.slane %v5337, 2
      %v5340 = vshll.u32 %v4992, 16
      %v5342 = vrot.slane %v5340, 3
      %v5343 = vor.u32 %v5339, %v5342
      %v5344 = vsel %vm5281, %v5335, %v5343
      %v5345 = vshrl.u32 %v4993, 16
      %v5347 = vrot.slane %v5345, 2
      %v5348 = vshll.u32 %v4993, 16
      %v5350 = vrot.slane %v5348, 3
      %v5351 = vor.u32 %v5347, %v5350
      %v5352 = vsel %vm5281, %v5343, %v5351
      %v5354 = vshrl.u32 %v5128, 16
      %v5356 = vrot.slane %v5354, 2
      %v5357 = vshll.u32 %v5128, 16
      %v5359 = vrot.slane %v5357, 3
      %v5360 = vor.u32 %v5356, %v5359
      %v5361 = vsel %vm5281, %v5351, %v5360
      %v5370 = vunpack.c.l.b16 %v5273
      %v5371 = vunpack.c.l.b16 %v5274
      %v5372 = vunpack.c.l.b16 %v5275
      %v5373 = vunpack.c.l.b16 %v5276
      %v5374 = vunpack.c.l.b16 %v5277
      %v5375 = vunpack.c.l.b16 %v5278
      %v5376 = vunpack.c.l.b16 %v5279
      %v5377 = vunpack.c.l.b16 %v5280
      %v5378 = vpack.c.b16 %v5371, %v5370
      %v5379 = vpack.c.b16 %v5373, %v5372
      %v5380 = vpack.c.b16 %v5375, %v5374
      %v5381 = vpack.c.b16 %v5377, %v5376
      %v5387 = vsel %vm4322, %v5296, 0
      %v5390 = vsel %vm4322, %v5304, 0
      %v5393 = vsel %vm4322, %v5312, 0
      %v5396 = vsel %vm4322, %v5320, 0
      %v5399 = vsel %vm4322, %v5328, 0
      %v5402 = vsel %vm4322, %v5336, 0
      %v5405 = vsel %vm4322, %v5344, 0
      %v5408 = vsel %vm4322, %v5352, 0
      %v5411 = vsel %vm4322, %v5361, 0
      %5413 = vmatpush.bf16.msra.mxu0 0
      %5414 = vmatpush.bf16.msra.mxu0 0
      %5415 = vmatpush.bf16.msra.mxu0 0
      %5416 = vmatpush.bf16.msra.mxu0 0
      %5417 = vmatpush.bf16.msra.mxu0 %v5381
      %5418 = vmatpush.bf16.msra.mxu0 %v5380
      %5419 = vmatpush.bf16.msra.mxu0 %v5379
      %5420 = vmatpush.bf16.msra.mxu0 %v5378
      %5421 = vmatmul.bf16.gmra.mxu0 %v5387
      %v5422 = vpop.f32.mrf.mxu0
      %v5423 = vadd.f32 0.0, %v5422
      %v5424 = vpop.f32.mrf.mxu0
      %v5425 = vadd.f32 0.0, %v5424
      %5426 = vmatmul.bf16.gmra.mxu0 %v5390
      %v5427 = vpop.f32.mrf.mxu0
      %v5428 = vadd.f32 0.0, %v5427
      %v5429 = vpop.f32.mrf.mxu0
      %v5430 = vadd.f32 0.0, %v5429
      %5431 = vmatmul.bf16.gmra.mxu0 %v5393
      %v5432 = vpop.f32.mrf.mxu0
      %v5433 = vadd.f32 0.0, %v5432
      %v5434 = vpop.f32.mrf.mxu0
      %v5435 = vadd.f32 0.0, %v5434
      %5436 = vmatmul.bf16.gmra.mxu0 %v5396
      %v5437 = vpop.f32.mrf.mxu0
      %v5438 = vadd.f32 0.0, %v5437
      %v5439 = vpop.f32.mrf.mxu0
      %v5440 = vadd.f32 0.0, %v5439
      %5441 = vmatmul.bf16.gmra.mxu0 %v5399
      %v5442 = vpop.f32.mrf.mxu0
      %v5443 = vadd.f32 0.0, %v5442
      %v5444 = vpop.f32.mrf.mxu0
      %v5445 = vadd.f32 0.0, %v5444
      %5446 = vmatmul.bf16.gmra.mxu0 %v5402
      %v5447 = vpop.f32.mrf.mxu0
      %v5448 = vadd.f32 0.0, %v5447
      %v5449 = vpop.f32.mrf.mxu0
      %v5450 = vadd.f32 0.0, %v5449
      %5451 = vmatmul.bf16.gmra.mxu0 %v5405
      %v5452 = vpop.f32.mrf.mxu0
      %v5453 = vadd.f32 0.0, %v5452
      %v5454 = vpop.f32.mrf.mxu0
      %v5455 = vadd.f32 0.0, %v5454
      %5456 = vmatmul.bf16.gmra.mxu0 %v5408
      %v5457 = vpop.f32.mrf.mxu0
      %v5458 = vadd.f32 0.0, %v5457
      %v5459 = vpop.f32.mrf.mxu0
      %v5460 = vadd.f32 0.0, %v5459
      %5461 = vmatmul.bf16.gmra.mxu0 %v5411
      %v5462 = vpop.f32.mrf.mxu0
      %v5463 = vadd.f32 0.0, %v5462
      %v5464 = vpop.f32.mrf.mxu0
      %v5465 = vadd.f32 0.0, %v5464
      %5466 = vdwg.mxu0
      %v5467 = vadd.f32 %v5254, %v5423
      %v5468 = vadd.f32 %v5255, %v5425
      %v5469 = vadd.f32 %v5256, %v5428
      %v5470 = vadd.f32 %v5257, %v5430
      %v5471 = vadd.f32 %v5258, %v5433
      %v5472 = vadd.f32 %v5259, %v5435
      %v5473 = vadd.f32 %v5260, %v5438
      %v5474 = vadd.f32 %v5261, %v5440
      %v5475 = vadd.f32 %v5262, %v5443
      %v5476 = vadd.f32 %v5263, %v5445
      %v5477 = vadd.f32 %v5264, %v5448
      %v5478 = vadd.f32 %v5265, %v5450
      %v5479 = vadd.f32 %v5266, %v5453
      %v5480 = vadd.f32 %v5267, %v5455
      %v5481 = vadd.f32 %v5268, %v5458
      %v5482 = vadd.f32 %v5269, %v5460
      %v5483 = vadd.f32 %v5270, %v5463
      %v5484 = vadd.f32 %v5271, %v5465
      %s5485 = scalar_lea.vmem %s5, 256
      %v5486 = vld [vmem:[%s5485] sm:$0xf]
      %v5487 = vld [vmem:[%s5485 + $0x4] sm:$0xf]
      %v5488 = vld [vmem:[%s5485 + $0x8] sm:$0xf]
      %v5489 = vld [vmem:[%s5485 + $0xc] sm:$0xf]
      %v5490 = vld [vmem:[%s5485 + $0x10] sm:$0xf]
      %v5491 = vld [vmem:[%s5485 + $0x14] sm:$0xf]
      %v5492 = vld [vmem:[%s5485 + $0x18] sm:$0xf]
      %v5493 = vld [vmem:[%s5485 + $0x1c] sm:$0xf]
      %v5494 = vrot.slane %v4985, 3
      %v5495 = vrot.slane %v4986, 3
      %v5496 = vsel %vm2819, %v5494, %v5495
      %v5497 = vrot.slane %v4987, 3
      %v5498 = vsel %vm2819, %v5495, %v5497
      %v5499 = vrot.slane %v4988, 3
      %v5500 = vsel %vm2819, %v5497, %v5499
      %v5501 = vrot.slane %v4989, 3
      %v5502 = vsel %vm2819, %v5499, %v5501
      %v5503 = vrot.slane %v4990, 3
      %v5504 = vsel %vm2819, %v5501, %v5503
      %v5505 = vrot.slane %v4991, 3
      %v5506 = vsel %vm2819, %v5503, %v5505
      %v5507 = vrot.slane %v4992, 3
      %v5508 = vsel %vm2819, %v5505, %v5507
      %v5509 = vrot.slane %v4993, 3
      %v5510 = vsel %vm2819, %v5507, %v5509
      %v5511 = vrot.slane %v5128, 3
      %v5512 = vsel %vm2819, %v5509, %v5511
      %v5521 = vunpack.c.l.b16 %v5486
      %v5522 = vunpack.c.l.b16 %v5487
      %v5523 = vunpack.c.l.b16 %v5488
      %v5524 = vunpack.c.l.b16 %v5489
      %v5525 = vunpack.c.l.b16 %v5490
      %v5526 = vunpack.c.l.b16 %v5491
      %v5527 = vunpack.c.l.b16 %v5492
      %v5528 = vunpack.c.l.b16 %v5493
      %v5529 = vpack.c.b16 %v5522, %v5521
      %v5530 = vpack.c.b16 %v5524, %v5523
      %v5531 = vpack.c.b16 %v5526, %v5525
      %v5532 = vpack.c.b16 %v5528, %v5527
      %v5538 = vsel %vm4322, %v5496, 0
      %v5541 = vsel %vm4322, %v5498, 0
      %v5544 = vsel %vm4322, %v5500, 0
      %v5547 = vsel %vm4322, %v5502, 0
      %v5550 = vsel %vm4322, %v5504, 0
      %v5553 = vsel %vm4322, %v5506, 0
      %v5556 = vsel %vm4322, %v5508, 0
      %v5559 = vsel %vm4322, %v5510, 0
      %v5562 = vsel %vm4322, %v5512, 0
      %5564 = vmatpush.bf16.msra.mxu0 0
      %5565 = vmatpush.bf16.msra.mxu0 0
      %5566 = vmatpush.bf16.msra.mxu0 0
      %5567 = vmatpush.bf16.msra.mxu0 0
      %5568 = vmatpush.bf16.msra.mxu0 %v5532
      %5569 = vmatpush.bf16.msra.mxu0 %v5531
      %5570 = vmatpush.bf16.msra.mxu0 %v5530
      %5571 = vmatpush.bf16.msra.mxu0 %v5529
      %5572 = vmatmul.bf16.gmra.mxu0 %v5538
      %v5573 = vpop.f32.mrf.mxu0
      %v5574 = vadd.f32 0.0, %v5573
      %v5575 = vpop.f32.mrf.mxu0
      %v5576 = vadd.f32 0.0, %v5575
      %5577 = vmatmul.bf16.gmra.mxu0 %v5541
      %v5578 = vpop.f32.mrf.mxu0
      %v5579 = vadd.f32 0.0, %v5578
      %v5580 = vpop.f32.mrf.mxu0
      %v5581 = vadd.f32 0.0, %v5580
      %5582 = vmatmul.bf16.gmra.mxu0 %v5544
      %v5583 = vpop.f32.mrf.mxu0
      %v5584 = vadd.f32 0.0, %v5583
      %v5585 = vpop.f32.mrf.mxu0
      %v5586 = vadd.f32 0.0, %v5585
      %5587 = vmatmul.bf16.gmra.mxu0 %v5547
      %v5588 = vpop.f32.mrf.mxu0
      %v5589 = vadd.f32 0.0, %v5588
      %v5590 = vpop.f32.mrf.mxu0
      %v5591 = vadd.f32 0.0, %v5590
      %5592 = vmatmul.bf16.gmra.mxu0 %v5550
      %v5593 = vpop.f32.mrf.mxu0
      %v5594 = vadd.f32 0.0, %v5593
      %v5595 = vpop.f32.mrf.mxu0
      %v5596 = vadd.f32 0.0, %v5595
      %5597 = vmatmul.bf16.gmra.mxu0 %v5553
      %v5598 = vpop.f32.mrf.mxu0
      %v5599 = vadd.f32 0.0, %v5598
      %v5600 = vpop.f32.mrf.mxu0
      %v5601 = vadd.f32 0.0, %v5600
      %5602 = vmatmul.bf16.gmra.mxu0 %v5556
      %v5603 = vpop.f32.mrf.mxu0
      %v5604 = vadd.f32 0.0, %v5603
      %v5605 = vpop.f32.mrf.mxu0
      %v5606 = vadd.f32 0.0, %v5605
      %5607 = vmatmul.bf16.gmra.mxu0 %v5559
      %v5608 = vpop.f32.mrf.mxu0
      %v5609 = vadd.f32 0.0, %v5608
      %v5610 = vpop.f32.mrf.mxu0
      %v5611 = vadd.f32 0.0, %v5610
      %5612 = vmatmul.bf16.gmra.mxu0 %v5562
      %v5613 = vpop.f32.mrf.mxu0
      %v5614 = vadd.f32 0.0, %v5613
      %v5615 = vpop.f32.mrf.mxu0
      %v5616 = vadd.f32 0.0, %v5615
      %5617 = vdwg.mxu0
      %v5618 = vadd.f32 %v5467, %v5574
      %v5619 = vadd.f32 %v5468, %v5576
      %v5620 = vadd.f32 %v5469, %v5579
      %v5621 = vadd.f32 %v5470, %v5581
      %v5622 = vadd.f32 %v5471, %v5584
      %v5623 = vadd.f32 %v5472, %v5586
      %v5624 = vadd.f32 %v5473, %v5589
      %v5625 = vadd.f32 %v5474, %v5591
      %v5626 = vadd.f32 %v5475, %v5594
      %v5627 = vadd.f32 %v5476, %v5596
      %v5628 = vadd.f32 %v5477, %v5599
      %v5629 = vadd.f32 %v5478, %v5601
      %v5630 = vadd.f32 %v5479, %v5604
      %v5631 = vadd.f32 %v5480, %v5606
      %v5632 = vadd.f32 %v5481, %v5609
      %v5633 = vadd.f32 %v5482, %v5611
      %v5634 = vadd.f32 %v5483, %v5614
      %v5635 = vadd.f32 %v5484, %v5616
      %v5636 = vld [vmem:[%s6] sm:$0x1]
      %v5638 = vperm.slane %v5636, 0
      %v5640 = vadd.f32 %v5618, %v5638
      %v5641 = vadd.f32 %v5619, %v5638
      %v5642 = vadd.f32 %v5620, %v5638
      %v5643 = vadd.f32 %v5621, %v5638
      %v5644 = vadd.f32 %v5622, %v5638
      %v5645 = vadd.f32 %v5623, %v5638
      %v5646 = vadd.f32 %v5624, %v5638
      %v5647 = vadd.f32 %v5625, %v5638
      %v5648 = vadd.f32 %v5626, %v5638
      %v5649 = vadd.f32 %v5627, %v5638
      %v5650 = vadd.f32 %v5628, %v5638
      %v5651 = vadd.f32 %v5629, %v5638
      %v5652 = vadd.f32 %v5630, %v5638
      %v5653 = vadd.f32 %v5631, %v5638
      %v5654 = vadd.f32 %v5632, %v5638
      %v5655 = vadd.f32 %v5633, %v5638
      %v5656 = vadd.f32 %v5634, %v5638
      %v5657 = vadd.f32 %v5635, %v5638
      %v5658 = vmax.f32 %v5640, 0.0
      %v5659 = vmax.f32 %v5641, 0.0
      %v5660 = vmax.f32 %v5642, 0.0
      %v5661 = vmax.f32 %v5643, 0.0
      %v5662 = vmax.f32 %v5644, 0.0
      %v5663 = vmax.f32 %v5645, 0.0
      %v5664 = vmax.f32 %v5646, 0.0
      %v5665 = vmax.f32 %v5647, 0.0
      %v5666 = vmax.f32 %v5648, 0.0
      %v5667 = vmax.f32 %v5649, 0.0
      %v5668 = vmax.f32 %v5650, 0.0
      %v5669 = vmax.f32 %v5651, 0.0
      %v5670 = vmax.f32 %v5652, 0.0
      %v5671 = vmax.f32 %v5653, 0.0
      %v5672 = vmax.f32 %v5654, 0.0
      %v5673 = vmax.f32 %v5655, 0.0
      %v5674 = vmax.f32 %v5656, 0.0
      %v5675 = vmax.f32 %v5657, 0.0
      %5676 = vst.msk [vmem:[%s278] sm:$0xff] %vm4322, %v5658
      %5677 = vst.msk [vmem:[%s278 + $0x8] sm:$0xff] %vm4322, %v5659
      %5678 = vst.msk [vmem:[%s278 + $0x10] sm:$0xff] %vm4322, %v5660
      %5679 = vst.msk [vmem:[%s278 + $0x18] sm:$0xff] %vm4322, %v5661
      %5680 = vst.msk [vmem:[%s278 + $0x20] sm:$0xff] %vm4322, %v5662
      %5681 = vst.msk [vmem:[%s278 + $0x28] sm:$0xff] %vm4322, %v5663
      %5682 = vst.msk [vmem:[%s278 + $0x30] sm:$0xff] %vm4322, %v5664
      %5683 = vst.msk [vmem:[%s278 + $0x38] sm:$0xff] %vm4322, %v5665
      %5684 = vst.msk [vmem:[%s278 + $0x40] sm:$0xff] %vm4322, %v5666
      %5685 = vst.msk [vmem:[%s278 + $0x48] sm:$0xff] %vm4322, %v5667
      %5686 = vst.msk [vmem:[%s278 + $0x50] sm:$0xff] %vm4322, %v5668
      %5687 = vst.msk [vmem:[%s278 + $0x58] sm:$0xff] %vm4322, %v5669
      %5688 = vst.msk [vmem:[%s278 + $0x60] sm:$0xff] %vm4322, %v5670
      %5689 = vst.msk [vmem:[%s278 + $0x68] sm:$0xff] %vm4322, %v5671
      %5690 = vst.msk [vmem:[%s278 + $0x70] sm:$0xff] %vm4322, %v5672
      %5691 = vst.msk [vmem:[%s278 + $0x78] sm:$0xff] %vm4322, %v5673
      %5692 = vst.msk [vmem:[%s278 + $0x80] sm:$0xff] %vm4322, %v5674
      %5693 = vst.msk [vmem:[%s278 + $0x88] sm:$0xff] %vm4322, %v5675
      %p5694 = scmp.lt.s32.totalorder %s18, 1
      %s5695 = scalar_select %p5694, %s18, 1
      %s5696 = smul.addr %s5695, 18
      %s5697 = smul.addr %s5696, 8
      %s5698 = scalar_lea.vmem %s7, %s5697
      // Predicated region
      $region49: #{conv_front_end.1} parent=47 // pred_check
        %p5699 = pneg %p188
      $region50: #{conv_front_end.1} parent=47 // pred_check_branch
        %5701 = sbr.rel (%p5699) target = $region52
      $region51: #{conv_front_end.1} parent=47 // pred_region
        _
      $region52: #{conv_front_end.1} parent=47 // pred_fallthru
        _
    $region48: #{conv_front_end.1} parent=5 // pred_fallthru
      _
    %p5702 = scmp.le.s32.totalorder 2, %s13
    // Predicated region
    $region53: #{conv_front_end.1} parent=5 // pred_check
      %p5703 = pneg %p5702
    $region54: #{conv_front_end.1} parent=5 // pred_check_branch
      %5705 = sbr.rel (%p5703) target = $region56
    $region55: #{conv_front_end.1} parent=5 // pred_region
      %s5706 = ssub.s32 %s13, 2
      // Predicated region
      $region57: #{conv_front_end.1} parent=55 // pred_check
        %p5707 = pneg %p194
      $region58: #{conv_front_end.1} parent=55 // pred_check_branch
        %5709 = sbr.rel (%p5707) target = $region60
      $region59: #{conv_front_end.1} parent=55 // pred_region
        %p5710 = scmp.lt.s32.totalorder %s19, 1
        %s5711 = scalar_select %p5710, %s19, 1
        %s5712 = smul.addr %s5711, 18
        %s5713 = smul.addr %s5712, 8
        %s5714 = scalar_lea.vmem %s7, %s5713
      $region60: #{conv_front_end.1} parent=55 // pred_fallthru
        _
    $region56: #{conv_front_end.1} parent=5 // pred_fallthru
      _
  $region6: #{conv_front_end.1} parent=0 // loop_footer
    %s17 = sadd.s32 1, %s13
  $region7: #{conv_front_end.1} parent=0 // loop_footer_branch
    %12 = sbr.rel target = $region3
  $region8: #{conv_front_end.1} parent=0 // loop_exit
    _

</llo_original>
